<compile_context>
chip_gen: v6e
topology: v6e:2x2x1
jax: 0.10.0
libtpu: 0.0.40
codegen_flags: <defaults>
</compile_context>

<pallas_src>
import functools
import math

import jax
import jax.numpy as jnp
from jax.experimental import pallas as pl
from jax.experimental.pallas import tpu as pltpu


# -----------------------------------------------------------------------------
# In-kernel helpers (traced inline)
# -----------------------------------------------------------------------------
def _layer_norm(x, g, b, eps=1e-6):
    mu = jnp.mean(x, axis=-1, keepdims=True)
    var = jnp.mean((x - mu) ** 2, axis=-1, keepdims=True)
    return (x - mu) * jax.lax.rsqrt(var + eps) * g + b


def _attention(xq, xkv, bias, wq_ref, wk_ref, wv_ref, wo_ref, g_ref, b_ref,
               n_head, d_k, d_v):
    """Post-norm MHA on one batch element.

    xq, xkv : [L, D] f32.  bias : [L, L] additive mask (-1e9 at masked slots).
    wq/wk/wv refs : [H, D, d_k|d_v] (leading-axis indexed -> no lane slicing).
    Returns (LayerNorm(out + residual) [L, D], attention maps [L, H*L]).
    """
    scale = 1.0 / math.sqrt(d_k)
    residual = xq
    attns = []
    head_outs = []
    for h in range(n_head):                       # static, small head count
        qh = jnp.dot(xq, wq_ref[h], preferred_element_type=jnp.float32)   # [L, dk]
        kh = jnp.dot(xkv, wk_ref[h], preferred_element_type=jnp.float32)  # [L, dk]
        vh = jnp.dot(xkv, wv_ref[h], preferred_element_type=jnp.float32)  # [L, dv]
        s = jnp.dot(qh, kh.T, preferred_element_type=jnp.float32) * scale + bias
        m = jnp.max(s, axis=-1, keepdims=True)
        e = jnp.exp(s - m)
        inv = pl.reciprocal(jnp.sum(e, axis=-1, keepdims=True), approx=True)  # EUP
        attn = e * inv                                                        # [L, L]
        attns.append(attn)
        head_outs.append(jnp.dot(attn, vh, preferred_element_type=jnp.float32))
    # Lane-dense: one [L, H*L] attention slab, one concat + single Wo matmul.
    attn_cat = jnp.concatenate(attns, axis=-1)                   # [L, H*L]
    concat = jnp.concatenate(head_outs, axis=-1)                 # [L, H*dv]
    o = jnp.dot(concat, wo_ref[...], preferred_element_type=jnp.float32) + residual
    return _layer_norm(o, g_ref[...], b_ref[...]), attn_cat


# -----------------------------------------------------------------------------
# Fused decoder-layer kernel (one batch element per grid step)
# -----------------------------------------------------------------------------
def _decoder_kernel(n_head, d_k, d_v,
                    dec_ref, enc_ref, slf_bias_ref, enc_bias_ref,
                    s_wq, s_wk, s_wv, s_wo, s_g, s_b,
                    e_wq, e_wk, e_wv, e_wo, e_g, e_b,
                    f_w1, f_b1, f_w2, f_b2, f_g, f_be,
                    out_ref, slf_attn_ref, enc_attn_ref):
    dec = dec_ref[0].astype(jnp.float32)          # [L, D]
    enc = enc_ref[0].astype(jnp.float32)          # [L, D]
    slf_bias = slf_bias_ref[0]                    # [L, L] additive
    enc_bias = enc_bias_ref[0]                    # [L, L] additive

    # Masked self-attention
    x, slf_a = _attention(dec, dec, slf_bias, s_wq, s_wk, s_wv, s_wo, s_g, s_b,
                          n_head, d_k, d_v)
    # Encoder-decoder attention
    x, enc_a = _attention(x, enc, enc_bias, e_wq, e_wk, e_wv, e_wo, e_g, e_b,
                          n_head, d_k, d_v)
    # Position-wise feed-forward (fused epilogue)
    h = jnp.dot(x, f_w1[...], preferred_element_type=jnp.float32) + f_b1[...]
    h = jnp.maximum(h, 0.0)
    y = jnp.dot(h, f_w2[...], preferred_element_type=jnp.float32) + f_b2[...] + x
    out_ref[0] = _layer_norm(y, f_g[...], f_be[...]).astype(out_ref.dtype)

    slf_attn_ref[0] = slf_a
    enc_attn_ref[0] = enc_a


# -----------------------------------------------------------------------------
# Wrapper
# -----------------------------------------------------------------------------
def decoder_layer(params, dec_input, enc_output, slf_attn_mask, dec_enc_attn_mask,
                  *, n_head, d_k, d_v):
    B, L, D = dec_input.shape

    def bias_from_mask(mask):
        if mask is None:
            return jnp.zeros((B, L, L), jnp.float32)
        return jnp.where(mask == 0, -1e9, 0.0).astype(jnp.float32)

    slf_bias = bias_from_mask(slf_attn_mask)
    enc_bias = bias_from_mask(dec_enc_attn_mask)

    def split_heads(w, dh):                        # [D, H*dh] -> [H, D, dh]
        return w.reshape(D, n_head, dh).transpose(1, 0, 2)

    ps, pe, pf = params["slf_attn"], params["enc_attn"], params["pos_ffn"]
    args = [dec_input, enc_output, slf_bias, enc_bias,
            split_heads(ps["wq"], d_k), split_heads(ps["wk"], d_k),
            split_heads(ps["wv"], d_v), ps["wo"], ps["gamma"], ps["beta"],
            split_heads(pe["wq"], d_k), split_heads(pe["wk"], d_k),
            split_heads(pe["wv"], d_v), pe["wo"], pe["gamma"], pe["beta"],
            pf["w1"], pf["b1"], pf["w2"], pf["b2"], pf["gamma"], pf["beta"]]

    seq_spec = pl.BlockSpec((1, L, D), lambda b: (b, 0, 0))
    mask_spec = pl.BlockSpec((1, L, L), lambda b: (b, 0, 0))
    attn_spec = pl.BlockSpec((1, L, n_head * L), lambda b: (b, 0, 0))

    def wspec(a):                                  # full (untiled) weight block
        nd = a.ndim
        return pl.BlockSpec(a.shape, lambda b, _nd=nd: (0,) * _nd)

    in_specs = [seq_spec, seq_spec, mask_spec, mask_spec] + [wspec(a) for a in args[4:]]

    kernel = functools.partial(_decoder_kernel, n_head, d_k, d_v)
    out, slf_flat, enc_flat = pl.pallas_call(
        kernel,
        out_shape=(jax.ShapeDtypeStruct((B, L, D), dec_input.dtype),
                   jax.ShapeDtypeStruct((B, L, n_head * L), jnp.float32),
                   jax.ShapeDtypeStruct((B, L, n_head * L), jnp.float32)),
        grid=(B,),
        in_specs=in_specs,
        out_specs=(seq_spec, attn_spec, attn_spec),
        compiler_params=pltpu.CompilerParams(dimension_semantics=("parallel",)),
    )(*args)

    # [B, L, H*L] (lane-dense kernel layout) -> [B, H, L, L] (module layout)
    dec_slf_attn = slf_flat.reshape(B, L, n_head, L).transpose(0, 2, 1, 3)
    dec_enc_attn = enc_flat.reshape(B, L, n_head, L).transpose(0, 2, 1, 3)
    return out, dec_slf_attn, dec_enc_attn


# -----------------------------------------------------------------------------
# Pure-JAX reference (for verification)
# -----------------------------------------------------------------------------
def _ln(x, g, b):
    mu = x.mean(-1, keepdims=True)
    var = ((x - mu) ** 2).mean(-1, keepdims=True)
    return (x - mu) / jnp.sqrt(var + 1e-6) * g + b


def _mha_ref(q, k, v, mask, p, n_head, d_k, d_v):
    B, L, D = q.shape
    residual = q
    qp = (q @ p["wq"]).reshape(B, L, n_head, d_k).transpose(0, 2, 1, 3)
    kp = (k @ p["wk"]).reshape(B, L, n_head, d_k).transpose(0, 2, 1, 3)
    vp = (v @ p["wv"]).reshape(B, L, n_head, d_v).transpose(0, 2, 1, 3)
    scores = jnp.einsum("bhqd,bhkd->bhqk", qp, kp) / math.sqrt(d_k)
    scores = jnp.where(mask[:, None] == 0.0, -1e9, scores)
    attn = jax.nn.softmax(scores, axis=-1)
    o = jnp.einsum("bhqk,bhkd->bhqd", attn, vp).transpose(0, 2, 1, 3).reshape(B, L, n_head * d_v)
    o = o @ p["wo"] + residual
    return _ln(o, p["gamma"], p["beta"]), attn


def _decoder_ref(params, dec_input, enc_output, slf_mask, enc_mask, n_head, d_k, d_v):
    o, slf = _mha_ref(dec_input, dec_input, dec_input, slf_mask, params["slf_attn"], n_head, d_k, d_v)
    o, ea = _mha_ref(o, enc_output, enc_output, enc_mask, params["enc_attn"], n_head, d_k, d_v)
    p = params["pos_ffn"]
    y = jnp.maximum(o @ p["w1"] + p["b1"], 0.0) @ p["w2"] + p["b2"] + o
    return _ln(y, p["gamma"], p["beta"]), slf, ea


# -----------------------------------------------------------------------------
# Main
# -----------------------------------------------------------------------------
if __name__ == "__main__":
    B, L = 2, 8
    d_model, d_inner = 32, 64
    n_head, d_k, d_v = 4, 8, 8

    key = jax.random.PRNGKey(0)
    ks = jax.random.split(key, 16)
    s = 0.05

    def attn_params(k0, k1, k2, k3):
        return {
            "wq": jax.random.normal(k0, (d_model, n_head * d_k), jnp.float32) * s,
            "wk": jax.random.normal(k1, (d_model, n_head * d_k), jnp.float32) * s,
            "wv": jax.random.normal(k2, (d_model, n_head * d_v), jnp.float32) * s,
            "wo": jax.random.normal(k3, (n_head * d_v, d_model), jnp.float32) * s,
            "gamma": jnp.ones((1, d_model), jnp.float32),
            "beta": jnp.zeros((1, d_model), jnp.float32),
        }

    params = {
        "slf_attn": attn_params(ks[0], ks[1], ks[2], ks[3]),
        "enc_attn": attn_params(ks[4], ks[5], ks[6], ks[7]),
        "pos_ffn": {
            "w1": jax.random.normal(ks[8], (d_model, d_inner), jnp.float32) * s,
            "b1": jax.random.normal(ks[9], (1, d_inner), jnp.float32) * s,
            "w2": jax.random.normal(ks[10], (d_inner, d_model), jnp.float32) * s,
            "b2": jax.random.normal(ks[11], (1, d_model), jnp.float32) * s,
            "gamma": jnp.ones((1, d_model), jnp.float32),
            "beta": jnp.zeros((1, d_model), jnp.float32),
        },
    }

    dec_input = jax.random.normal(ks[12], (B, L, d_model), jnp.float32)
    enc_output = jax.random.normal(ks[13], (B, L, d_model), jnp.float32)
    # causal (lower-triangular) self-attention mask: 1 = visible, 0 = masked future
    slf_attn_mask = jnp.tril(jnp.ones((L, L), jnp.float32))[None].repeat(B, axis=0)
    dec_enc_attn_mask = None

    dec_out, slf_attn, enc_attn = decoder_layer(
        params, dec_input, enc_output, slf_attn_mask, dec_enc_attn_mask,
        n_head=n_head, d_k=d_k, d_v=d_v)
    jax.block_until_ready((dec_out, slf_attn, enc_attn))

    ref_out, ref_slf, ref_enc = _decoder_ref(
        params, dec_input, enc_output, slf_attn_mask,
        jnp.ones((B, L, L), jnp.float32), n_head, d_k, d_v)

    assert dec_out.shape == (B, L, d_model)
    assert slf_attn.shape == (B, n_head, L, L)
    assert enc_attn.shape == (B, n_head, L, L)
    # Tolerances account for pl.reciprocal(..., approx=True) in the softmax.
    assert jnp.allclose(dec_out, ref_out, atol=1e-2, rtol=1e-2)
    assert jnp.allclose(slf_attn, ref_slf, atol=1e-2, rtol=1e-2)
    assert jnp.allclose(enc_attn, ref_enc, atol=1e-2, rtol=1e-2)

    print("KERNEL_OK")
</pallas_src>

<mosaic_0001>
module attributes {stable_mosaic.version = 11 : i64} {
  func.func @_decoder_kernel(%arg0: i32, %arg1: memref<1x8x32xf32, #tpu.memory_space<vmem>>, %arg2: memref<1x8x32xf32, #tpu.memory_space<vmem>>, %arg3: memref<1x8x8xf32, #tpu.memory_space<vmem>>, %arg4: memref<1x8x8xf32, #tpu.memory_space<vmem>>, %arg5: memref<4x32x8xf32, #tpu.memory_space<vmem>>, %arg6: memref<4x32x8xf32, #tpu.memory_space<vmem>>, %arg7: memref<4x32x8xf32, #tpu.memory_space<vmem>>, %arg8: memref<32x32xf32, #tpu.memory_space<vmem>>, %arg9: memref<1x32xf32, #tpu.memory_space<vmem>>, %arg10: memref<1x32xf32, #tpu.memory_space<vmem>>, %arg11: memref<4x32x8xf32, #tpu.memory_space<vmem>>, %arg12: memref<4x32x8xf32, #tpu.memory_space<vmem>>, %arg13: memref<4x32x8xf32, #tpu.memory_space<vmem>>, %arg14: memref<32x32xf32, #tpu.memory_space<vmem>>, %arg15: memref<1x32xf32, #tpu.memory_space<vmem>>, %arg16: memref<1x32xf32, #tpu.memory_space<vmem>>, %arg17: memref<32x64xf32, #tpu.memory_space<vmem>>, %arg18: memref<1x64xf32, #tpu.memory_space<vmem>>, %arg19: memref<64x32xf32, #tpu.memory_space<vmem>>, %arg20: memref<1x32xf32, #tpu.memory_space<vmem>>, %arg21: memref<1x32xf32, #tpu.memory_space<vmem>>, %arg22: memref<1x32xf32, #tpu.memory_space<vmem>>, %arg23: memref<1x8x32xf32, #tpu.memory_space<vmem>>, %arg24: memref<1x8x32xf32, #tpu.memory_space<vmem>>, %arg25: memref<1x8x32xf32, #tpu.memory_space<vmem>>) attributes {dimension_semantics = [#tpu.dimension_semantics<parallel>], iteration_bounds = array<i64: 2>, scalar_prefetch = 0 : i64, scratch_operands = 0 : i64, tpu.core_type = #tpu.core_type<tc>, window_params = [{transform_indices = @transform_0, window_bounds = array<i64: 1, 8, 32>}, {transform_indices = @transform_1, window_bounds = array<i64: 1, 8, 32>}, {transform_indices = @transform_2, window_bounds = array<i64: 1, 8, 8>}, {transform_indices = @transform_3, window_bounds = array<i64: 1, 8, 8>}, {pipeline_mode = #tpu.pipeline_mode<synchronous>, transform_indices = @transform_4, window_bounds = array<i64: 4, 32, 8>}, {pipeline_mode = #tpu.pipeline_mode<synchronous>, transform_indices = @transform_5, window_bounds = array<i64: 4, 32, 8>}, {pipeline_mode = #tpu.pipeline_mode<synchronous>, transform_indices = @transform_6, window_bounds = array<i64: 4, 32, 8>}, {pipeline_mode = #tpu.pipeline_mode<synchronous>, transform_indices = @transform_7, window_bounds = array<i64: 32, 32>}, {pipeline_mode = #tpu.pipeline_mode<synchronous>, transform_indices = @transform_8, window_bounds = array<i64: 1, 32>}, {pipeline_mode = #tpu.pipeline_mode<synchronous>, transform_indices = @transform_9, window_bounds = array<i64: 1, 32>}, {pipeline_mode = #tpu.pipeline_mode<synchronous>, transform_indices = @transform_10, window_bounds = array<i64: 4, 32, 8>}, {pipeline_mode = #tpu.pipeline_mode<synchronous>, transform_indices = @transform_11, window_bounds = array<i64: 4, 32, 8>}, {pipeline_mode = #tpu.pipeline_mode<synchronous>, transform_indices = @transform_12, window_bounds = array<i64: 4, 32, 8>}, {pipeline_mode = #tpu.pipeline_mode<synchronous>, transform_indices = @transform_13, window_bounds = array<i64: 32, 32>}, {pipeline_mode = #tpu.pipeline_mode<synchronous>, transform_indices = @transform_14, window_bounds = array<i64: 1, 32>}, {pipeline_mode = #tpu.pipeline_mode<synchronous>, transform_indices = @transform_15, window_bounds = array<i64: 1, 32>}, {pipeline_mode = #tpu.pipeline_mode<synchronous>, transform_indices = @transform_16, window_bounds = array<i64: 32, 64>}, {pipeline_mode = #tpu.pipeline_mode<synchronous>, transform_indices = @transform_17, window_bounds = array<i64: 1, 64>}, {pipeline_mode = #tpu.pipeline_mode<synchronous>, transform_indices = @transform_18, window_bounds = array<i64: 64, 32>}, {pipeline_mode = #tpu.pipeline_mode<synchronous>, transform_indices = @transform_19, window_bounds = array<i64: 1, 32>}, {pipeline_mode = #tpu.pipeline_mode<synchronous>, transform_indices = @transform_20, window_bounds = array<i64: 1, 32>}, {pipeline_mode = #tpu.pipeline_mode<synchronous>, transform_indices = @transform_21, window_bounds = array<i64: 1, 32>}, {transform_indices = @transform_22, window_bounds = array<i64: 1, 8, 32>}, {transform_indices = @transform_23, window_bounds = array<i64: 1, 8, 32>}, {transform_indices = @transform_24, window_bounds = array<i64: 1, 8, 32>}]} {
    %c0 = arith.constant 0 : index
    %c0_0 = arith.constant 0 : index
    %c0_1 = arith.constant 0 : index
    %0 = vector.load %arg1[%c0, %c0_0, %c0_1] : memref<1x8x32xf32, #tpu.memory_space<vmem>>, vector<1x8x32xf32>
    %1 = vector.shape_cast %0 : vector<1x8x32xf32> to vector<8x32xf32>
    %c0_2 = arith.constant 0 : index
    %c0_3 = arith.constant 0 : index
    %c0_4 = arith.constant 0 : index
    %2 = vector.load %arg2[%c0_2, %c0_3, %c0_4] : memref<1x8x32xf32, #tpu.memory_space<vmem>>, vector<1x8x32xf32>
    %3 = vector.shape_cast %2 : vector<1x8x32xf32> to vector<8x32xf32>
    %c0_5 = arith.constant 0 : index
    %c0_6 = arith.constant 0 : index
    %c0_7 = arith.constant 0 : index
    %4 = vector.load %arg3[%c0_5, %c0_6, %c0_7] : memref<1x8x8xf32, #tpu.memory_space<vmem>>, vector<1x8x8xf32>
    %5 = vector.shape_cast %4 : vector<1x8x8xf32> to vector<8x8xf32>
    %c0_8 = arith.constant 0 : index
    %c0_9 = arith.constant 0 : index
    %c0_10 = arith.constant 0 : index
    %6 = vector.load %arg4[%c0_8, %c0_9, %c0_10] : memref<1x8x8xf32, #tpu.memory_space<vmem>>, vector<1x8x8xf32>
    %7 = vector.shape_cast %6 : vector<1x8x8xf32> to vector<8x8xf32>
    %c0_11 = arith.constant 0 : index
    %c0_12 = arith.constant 0 : index
    %c0_13 = arith.constant 0 : index
    %8 = vector.load %arg5[%c0_11, %c0_12, %c0_13] : memref<4x32x8xf32, #tpu.memory_space<vmem>>, vector<1x32x8xf32>
    %9 = vector.shape_cast %8 : vector<1x32x8xf32> to vector<32x8xf32>
    %cst = arith.constant dense<0.000000e+00> : vector<8x8xf32>
    %10 = tpu.matmul %1, %9, %cst {dimension_numbers = #tpu.dot_dimension_numbers<[1], [0], [0], [1], [0, 0, 1, 1], [], []>} : vector<8x32xf32>, vector<32x8xf32>, vector<8x8xf32> -> vector<8x8xf32>
    %c0_14 = arith.constant 0 : index
    %c0_15 = arith.constant 0 : index
    %c0_16 = arith.constant 0 : index
    %11 = vector.load %arg6[%c0_14, %c0_15, %c0_16] : memref<4x32x8xf32, #tpu.memory_space<vmem>>, vector<1x32x8xf32>
    %12 = vector.shape_cast %11 : vector<1x32x8xf32> to vector<32x8xf32>
    %cst_17 = arith.constant dense<0.000000e+00> : vector<8x8xf32>
    %13 = tpu.matmul %1, %12, %cst_17 {dimension_numbers = #tpu.dot_dimension_numbers<[1], [0], [0], [1], [0, 0, 1, 1], [], []>} : vector<8x32xf32>, vector<32x8xf32>, vector<8x8xf32> -> vector<8x8xf32>
    %c0_18 = arith.constant 0 : index
    %c0_19 = arith.constant 0 : index
    %c0_20 = arith.constant 0 : index
    %14 = vector.load %arg7[%c0_18, %c0_19, %c0_20] : memref<4x32x8xf32, #tpu.memory_space<vmem>>, vector<1x32x8xf32>
    %15 = vector.shape_cast %14 : vector<1x32x8xf32> to vector<32x8xf32>
    %cst_21 = arith.constant dense<0.000000e+00> : vector<8x8xf32>
    %16 = tpu.matmul %1, %15, %cst_21 {dimension_numbers = #tpu.dot_dimension_numbers<[1], [0], [0], [1], [0, 0, 1, 1], [], []>} : vector<8x32xf32>, vector<32x8xf32>, vector<8x8xf32> -> vector<8x8xf32>
    %17 = tpu.transpose %13, [1, 0] : vector<8x8xf32> -> vector<8x8xf32>
    %cst_22 = arith.constant dense<0.000000e+00> : vector<8x8xf32>
    %18 = tpu.matmul %10, %17, %cst_22 {dimension_numbers = #tpu.dot_dimension_numbers<[1], [0], [0], [1], [0, 0, 1, 1], [], []>} : vector<8x8xf32>, vector<8x8xf32>, vector<8x8xf32> -> vector<8x8xf32>
    %cst_23 = arith.constant 0.353553385 : f32
    %19 = vector.broadcast %cst_23 : f32 to vector<8x8xf32>
    %20 = arith.mulf %18, %19 : vector<8x8xf32>
    %21 = arith.addf %20, %5 : vector<8x8xf32>
    %cst_24 = arith.constant dense<0xFF800000> : vector<8xf32>
    %22 = vector.multi_reduction <maximumf>, %21, %cst_24 [1] : vector<8x8xf32> to vector<8xf32>
    %23 = vector.shape_cast %22 : vector<8xf32> to vector<8x1xf32>
    %24 = vector.broadcast %23 : vector<8x1xf32> to vector<8x8xf32>
    %25 = arith.subf %21, %24 : vector<8x8xf32>
    %26 = math.exp %25 : vector<8x8xf32>
    %cst_25 = arith.constant dense<0.000000e+00> : vector<8xf32>
    %27 = vector.multi_reduction <add>, %26, %cst_25 [1] : vector<8x8xf32> to vector<8xf32>
    %28 = vector.shape_cast %27 : vector<8xf32> to vector<8x1xf32>
    %29 = tpu.reciprocal %28 {approx = true} : vector<8x1xf32> -> vector<8x1xf32>
    %30 = vector.broadcast %29 : vector<8x1xf32> to vector<8x8xf32>
    %31 = arith.mulf %26, %30 : vector<8x8xf32>
    %cst_26 = arith.constant dense<0.000000e+00> : vector<8x8xf32>
    %32 = tpu.matmul %31, %16, %cst_26 {dimension_numbers = #tpu.dot_dimension_numbers<[1], [0], [0], [1], [0, 0, 1, 1], [], []>} : vector<8x8xf32>, vector<8x8xf32>, vector<8x8xf32> -> vector<8x8xf32>
    %c1 = arith.constant 1 : index
    %c0_27 = arith.constant 0 : index
    %c0_28 = arith.constant 0 : index
    %33 = vector.load %arg5[%c1, %c0_27, %c0_28] : memref<4x32x8xf32, #tpu.memory_space<vmem>>, vector<1x32x8xf32>
    %34 = vector.shape_cast %33 : vector<1x32x8xf32> to vector<32x8xf32>
    %cst_29 = arith.constant dense<0.000000e+00> : vector<8x8xf32>
    %35 = tpu.matmul %1, %34, %cst_29 {dimension_numbers = #tpu.dot_dimension_numbers<[1], [0], [0], [1], [0, 0, 1, 1], [], []>} : vector<8x32xf32>, vector<32x8xf32>, vector<8x8xf32> -> vector<8x8xf32>
    %c1_30 = arith.constant 1 : index
    %c0_31 = arith.constant 0 : index
    %c0_32 = arith.constant 0 : index
    %36 = vector.load %arg6[%c1_30, %c0_31, %c0_32] : memref<4x32x8xf32, #tpu.memory_space<vmem>>, vector<1x32x8xf32>
    %37 = vector.shape_cast %36 : vector<1x32x8xf32> to vector<32x8xf32>
    %cst_33 = arith.constant dense<0.000000e+00> : vector<8x8xf32>
    %38 = tpu.matmul %1, %37, %cst_33 {dimension_numbers = #tpu.dot_dimension_numbers<[1], [0], [0], [1], [0, 0, 1, 1], [], []>} : vector<8x32xf32>, vector<32x8xf32>, vector<8x8xf32> -> vector<8x8xf32>
    %c1_34 = arith.constant 1 : index
    %c0_35 = arith.constant 0 : index
    %c0_36 = arith.constant 0 : index
    %39 = vector.load %arg7[%c1_34, %c0_35, %c0_36] : memref<4x32x8xf32, #tpu.memory_space<vmem>>, vector<1x32x8xf32>
    %40 = vector.shape_cast %39 : vector<1x32x8xf32> to vector<32x8xf32>
    %cst_37 = arith.constant dense<0.000000e+00> : vector<8x8xf32>
    %41 = tpu.matmul %1, %40, %cst_37 {dimension_numbers = #tpu.dot_dimension_numbers<[1], [0], [0], [1], [0, 0, 1, 1], [], []>} : vector<8x32xf32>, vector<32x8xf32>, vector<8x8xf32> -> vector<8x8xf32>
    %42 = tpu.transpose %38, [1, 0] : vector<8x8xf32> -> vector<8x8xf32>
    %cst_38 = arith.constant dense<0.000000e+00> : vector<8x8xf32>
    %43 = tpu.matmul %35, %42, %cst_38 {dimension_numbers = #tpu.dot_dimension_numbers<[1], [0], [0], [1], [0, 0, 1, 1], [], []>} : vector<8x8xf32>, vector<8x8xf32>, vector<8x8xf32> -> vector<8x8xf32>
    %cst_39 = arith.constant 0.353553385 : f32
    %44 = vector.broadcast %cst_39 : f32 to vector<8x8xf32>
    %45 = arith.mulf %43, %44 : vector<8x8xf32>
    %46 = arith.addf %45, %5 : vector<8x8xf32>
    %cst_40 = arith.constant dense<0xFF800000> : vector<8xf32>
    %47 = vector.multi_reduction <maximumf>, %46, %cst_40 [1] : vector<8x8xf32> to vector<8xf32>
    %48 = vector.shape_cast %47 : vector<8xf32> to vector<8x1xf32>
    %49 = vector.broadcast %48 : vector<8x1xf32> to vector<8x8xf32>
    %50 = arith.subf %46, %49 : vector<8x8xf32>
    %51 = math.exp %50 : vector<8x8xf32>
    %cst_41 = arith.constant dense<0.000000e+00> : vector<8xf32>
    %52 = vector.multi_reduction <add>, %51, %cst_41 [1] : vector<8x8xf32> to vector<8xf32>
    %53 = vector.shape_cast %52 : vector<8xf32> to vector<8x1xf32>
    %54 = tpu.reciprocal %53 {approx = true} : vector<8x1xf32> -> vector<8x1xf32>
    %55 = vector.broadcast %54 : vector<8x1xf32> to vector<8x8xf32>
    %56 = arith.mulf %51, %55 : vector<8x8xf32>
    %cst_42 = arith.constant dense<0.000000e+00> : vector<8x8xf32>
    %57 = tpu.matmul %56, %41, %cst_42 {dimension_numbers = #tpu.dot_dimension_numbers<[1], [0], [0], [1], [0, 0, 1, 1], [], []>} : vector<8x8xf32>, vector<8x8xf32>, vector<8x8xf32> -> vector<8x8xf32>
    %c2 = arith.constant 2 : index
    %c0_43 = arith.constant 0 : index
    %c0_44 = arith.constant 0 : index
    %58 = vector.load %arg5[%c2, %c0_43, %c0_44] : memref<4x32x8xf32, #tpu.memory_space<vmem>>, vector<1x32x8xf32>
    %59 = vector.shape_cast %58 : vector<1x32x8xf32> to vector<32x8xf32>
    %cst_45 = arith.constant dense<0.000000e+00> : vector<8x8xf32>
    %60 = tpu.matmul %1, %59, %cst_45 {dimension_numbers = #tpu.dot_dimension_numbers<[1], [0], [0], [1], [0, 0, 1, 1], [], []>} : vector<8x32xf32>, vector<32x8xf32>, vector<8x8xf32> -> vector<8x8xf32>
    %c2_46 = arith.constant 2 : index
    %c0_47 = arith.constant 0 : index
    %c0_48 = arith.constant 0 : index
    %61 = vector.load %arg6[%c2_46, %c0_47, %c0_48] : memref<4x32x8xf32, #tpu.memory_space<vmem>>, vector<1x32x8xf32>
    %62 = vector.shape_cast %61 : vector<1x32x8xf32> to vector<32x8xf32>
    %cst_49 = arith.constant dense<0.000000e+00> : vector<8x8xf32>
    %63 = tpu.matmul %1, %62, %cst_49 {dimension_numbers = #tpu.dot_dimension_numbers<[1], [0], [0], [1], [0, 0, 1, 1], [], []>} : vector<8x32xf32>, vector<32x8xf32>, vector<8x8xf32> -> vector<8x8xf32>
    %c2_50 = arith.constant 2 : index
    %c0_51 = arith.constant 0 : index
    %c0_52 = arith.constant 0 : index
    %64 = vector.load %arg7[%c2_50, %c0_51, %c0_52] : memref<4x32x8xf32, #tpu.memory_space<vmem>>, vector<1x32x8xf32>
    %65 = vector.shape_cast %64 : vector<1x32x8xf32> to vector<32x8xf32>
    %cst_53 = arith.constant dense<0.000000e+00> : vector<8x8xf32>
    %66 = tpu.matmul %1, %65, %cst_53 {dimension_numbers = #tpu.dot_dimension_numbers<[1], [0], [0], [1], [0, 0, 1, 1], [], []>} : vector<8x32xf32>, vector<32x8xf32>, vector<8x8xf32> -> vector<8x8xf32>
    %67 = tpu.transpose %63, [1, 0] : vector<8x8xf32> -> vector<8x8xf32>
    %cst_54 = arith.constant dense<0.000000e+00> : vector<8x8xf32>
    %68 = tpu.matmul %60, %67, %cst_54 {dimension_numbers = #tpu.dot_dimension_numbers<[1], [0], [0], [1], [0, 0, 1, 1], [], []>} : vector<8x8xf32>, vector<8x8xf32>, vector<8x8xf32> -> vector<8x8xf32>
    %cst_55 = arith.constant 0.353553385 : f32
    %69 = vector.broadcast %cst_55 : f32 to vector<8x8xf32>
    %70 = arith.mulf %68, %69 : vector<8x8xf32>
    %71 = arith.addf %70, %5 : vector<8x8xf32>
    %cst_56 = arith.constant dense<0xFF800000> : vector<8xf32>
    %72 = vector.multi_reduction <maximumf>, %71, %cst_56 [1] : vector<8x8xf32> to vector<8xf32>
    %73 = vector.shape_cast %72 : vector<8xf32> to vector<8x1xf32>
    %74 = vector.broadcast %73 : vector<8x1xf32> to vector<8x8xf32>
    %75 = arith.subf %71, %74 : vector<8x8xf32>
    %76 = math.exp %75 : vector<8x8xf32>
    %cst_57 = arith.constant dense<0.000000e+00> : vector<8xf32>
    %77 = vector.multi_reduction <add>, %76, %cst_57 [1] : vector<8x8xf32> to vector<8xf32>
    %78 = vector.shape_cast %77 : vector<8xf32> to vector<8x1xf32>
    %79 = tpu.reciprocal %78 {approx = true} : vector<8x1xf32> -> vector<8x1xf32>
    %80 = vector.broadcast %79 : vector<8x1xf32> to vector<8x8xf32>
    %81 = arith.mulf %76, %80 : vector<8x8xf32>
    %cst_58 = arith.constant dense<0.000000e+00> : vector<8x8xf32>
    %82 = tpu.matmul %81, %66, %cst_58 {dimension_numbers = #tpu.dot_dimension_numbers<[1], [0], [0], [1], [0, 0, 1, 1], [], []>} : vector<8x8xf32>, vector<8x8xf32>, vector<8x8xf32> -> vector<8x8xf32>
    %c3 = arith.constant 3 : index
    %c0_59 = arith.constant 0 : index
    %c0_60 = arith.constant 0 : index
    %83 = vector.load %arg5[%c3, %c0_59, %c0_60] : memref<4x32x8xf32, #tpu.memory_space<vmem>>, vector<1x32x8xf32>
    %84 = vector.shape_cast %83 : vector<1x32x8xf32> to vector<32x8xf32>
    %cst_61 = arith.constant dense<0.000000e+00> : vector<8x8xf32>
    %85 = tpu.matmul %1, %84, %cst_61 {dimension_numbers = #tpu.dot_dimension_numbers<[1], [0], [0], [1], [0, 0, 1, 1], [], []>} : vector<8x32xf32>, vector<32x8xf32>, vector<8x8xf32> -> vector<8x8xf32>
    %c3_62 = arith.constant 3 : index
    %c0_63 = arith.constant 0 : index
    %c0_64 = arith.constant 0 : index
    %86 = vector.load %arg6[%c3_62, %c0_63, %c0_64] : memref<4x32x8xf32, #tpu.memory_space<vmem>>, vector<1x32x8xf32>
    %87 = vector.shape_cast %86 : vector<1x32x8xf32> to vector<32x8xf32>
    %cst_65 = arith.constant dense<0.000000e+00> : vector<8x8xf32>
    %88 = tpu.matmul %1, %87, %cst_65 {dimension_numbers = #tpu.dot_dimension_numbers<[1], [0], [0], [1], [0, 0, 1, 1], [], []>} : vector<8x32xf32>, vector<32x8xf32>, vector<8x8xf32> -> vector<8x8xf32>
    %c3_66 = arith.constant 3 : index
    %c0_67 = arith.constant 0 : index
    %c0_68 = arith.constant 0 : index
    %89 = vector.load %arg7[%c3_66, %c0_67, %c0_68] : memref<4x32x8xf32, #tpu.memory_space<vmem>>, vector<1x32x8xf32>
    %90 = vector.shape_cast %89 : vector<1x32x8xf32> to vector<32x8xf32>
    %cst_69 = arith.constant dense<0.000000e+00> : vector<8x8xf32>
    %91 = tpu.matmul %1, %90, %cst_69 {dimension_numbers = #tpu.dot_dimension_numbers<[1], [0], [0], [1], [0, 0, 1, 1], [], []>} : vector<8x32xf32>, vector<32x8xf32>, vector<8x8xf32> -> vector<8x8xf32>
    %92 = tpu.transpose %88, [1, 0] : vector<8x8xf32> -> vector<8x8xf32>
    %cst_70 = arith.constant dense<0.000000e+00> : vector<8x8xf32>
    %93 = tpu.matmul %85, %92, %cst_70 {dimension_numbers = #tpu.dot_dimension_numbers<[1], [0], [0], [1], [0, 0, 1, 1], [], []>} : vector<8x8xf32>, vector<8x8xf32>, vector<8x8xf32> -> vector<8x8xf32>
    %cst_71 = arith.constant 0.353553385 : f32
    %94 = vector.broadcast %cst_71 : f32 to vector<8x8xf32>
    %95 = arith.mulf %93, %94 : vector<8x8xf32>
    %96 = arith.addf %95, %5 : vector<8x8xf32>
    %cst_72 = arith.constant dense<0xFF800000> : vector<8xf32>
    %97 = vector.multi_reduction <maximumf>, %96, %cst_72 [1] : vector<8x8xf32> to vector<8xf32>
    %98 = vector.shape_cast %97 : vector<8xf32> to vector<8x1xf32>
    %99 = vector.broadcast %98 : vector<8x1xf32> to vector<8x8xf32>
    %100 = arith.subf %96, %99 : vector<8x8xf32>
    %101 = math.exp %100 : vector<8x8xf32>
    %cst_73 = arith.constant dense<0.000000e+00> : vector<8xf32>
    %102 = vector.multi_reduction <add>, %101, %cst_73 [1] : vector<8x8xf32> to vector<8xf32>
    %103 = vector.shape_cast %102 : vector<8xf32> to vector<8x1xf32>
    %104 = tpu.reciprocal %103 {approx = true} : vector<8x1xf32> -> vector<8x1xf32>
    %105 = vector.broadcast %104 : vector<8x1xf32> to vector<8x8xf32>
    %106 = arith.mulf %101, %105 : vector<8x8xf32>
    %cst_74 = arith.constant dense<0.000000e+00> : vector<8x8xf32>
    %107 = tpu.matmul %106, %91, %cst_74 {dimension_numbers = #tpu.dot_dimension_numbers<[1], [0], [0], [1], [0, 0, 1, 1], [], []>} : vector<8x8xf32>, vector<8x8xf32>, vector<8x8xf32> -> vector<8x8xf32>
    %108 = tpu.concatenate %31, %56, %81, %106 in 1 : vector<8x8xf32>, vector<8x8xf32>, vector<8x8xf32>, vector<8x8xf32> -> vector<8x32xf32>
    %109 = tpu.concatenate %32, %57, %82, %107 in 1 : vector<8x8xf32>, vector<8x8xf32>, vector<8x8xf32>, vector<8x8xf32> -> vector<8x32xf32>
    %c0_75 = arith.constant 0 : index
    %c0_76 = arith.constant 0 : index
    %110 = vector.load %arg8[%c0_75, %c0_76] : memref<32x32xf32, #tpu.memory_space<vmem>>, vector<32x32xf32>
    %cst_77 = arith.constant dense<0.000000e+00> : vector<8x32xf32>
    %111 = tpu.matmul %109, %110, %cst_77 {dimension_numbers = #tpu.dot_dimension_numbers<[1], [0], [0], [1], [0, 0, 1, 1], [], []>} : vector<8x32xf32>, vector<32x32xf32>, vector<8x32xf32> -> vector<8x32xf32>
    %112 = arith.addf %111, %1 : vector<8x32xf32>
    %c0_78 = arith.constant 0 : index
    %c0_79 = arith.constant 0 : index
    %113 = vector.load %arg9[%c0_78, %c0_79] : memref<1x32xf32, #tpu.memory_space<vmem>>, vector<1x32xf32>
    %c0_80 = arith.constant 0 : index
    %c0_81 = arith.constant 0 : index
    %114 = vector.load %arg10[%c0_80, %c0_81] : memref<1x32xf32, #tpu.memory_space<vmem>>, vector<1x32xf32>
    %cst_82 = arith.constant dense<0.000000e+00> : vector<8xf32>
    %115 = vector.multi_reduction <add>, %112, %cst_82 [1] : vector<8x32xf32> to vector<8xf32>
    %116 = vector.shape_cast %115 : vector<8xf32> to vector<8x1xf32>
    %cst_83 = arith.constant 3.200000e+01 : f32
    %117 = vector.broadcast %cst_83 : f32 to vector<8x1xf32>
    %118 = arith.divf %116, %117 : vector<8x1xf32>
    %119 = vector.broadcast %118 : vector<8x1xf32> to vector<8x32xf32>
    %120 = arith.subf %112, %119 : vector<8x32xf32>
    %121 = arith.mulf %120, %120 : vector<8x32xf32>
    %cst_84 = arith.constant dense<0.000000e+00> : vector<8xf32>
    %122 = vector.multi_reduction <add>, %121, %cst_84 [1] : vector<8x32xf32> to vector<8xf32>
    %123 = vector.shape_cast %122 : vector<8xf32> to vector<8x1xf32>
    %cst_85 = arith.constant 3.200000e+01 : f32
    %124 = vector.broadcast %cst_85 : f32 to vector<8x1xf32>
    %125 = arith.divf %123, %124 : vector<8x1xf32>
    %126 = vector.broadcast %118 : vector<8x1xf32> to vector<8x32xf32>
    %127 = arith.subf %112, %126 : vector<8x32xf32>
    %cst_86 = arith.constant 9.99999997E-7 : f32
    %128 = vector.broadcast %cst_86 : f32 to vector<8x1xf32>
    %129 = arith.addf %125, %128 : vector<8x1xf32>
    %130 = math.rsqrt %129 : vector<8x1xf32>
    %131 = vector.broadcast %130 : vector<8x1xf32> to vector<8x32xf32>
    %132 = arith.mulf %127, %131 : vector<8x32xf32>
    %133 = vector.broadcast %113 : vector<1x32xf32> to vector<8x32xf32>
    %134 = arith.mulf %132, %133 : vector<8x32xf32>
    %135 = vector.broadcast %114 : vector<1x32xf32> to vector<8x32xf32>
    %136 = arith.addf %134, %135 : vector<8x32xf32>
    %c0_87 = arith.constant 0 : index
    %c0_88 = arith.constant 0 : index
    %c0_89 = arith.constant 0 : index
    %137 = vector.load %arg11[%c0_87, %c0_88, %c0_89] : memref<4x32x8xf32, #tpu.memory_space<vmem>>, vector<1x32x8xf32>
    %138 = vector.shape_cast %137 : vector<1x32x8xf32> to vector<32x8xf32>
    %cst_90 = arith.constant dense<0.000000e+00> : vector<8x8xf32>
    %139 = tpu.matmul %136, %138, %cst_90 {dimension_numbers = #tpu.dot_dimension_numbers<[1], [0], [0], [1], [0, 0, 1, 1], [], []>} : vector<8x32xf32>, vector<32x8xf32>, vector<8x8xf32> -> vector<8x8xf32>
    %c0_91 = arith.constant 0 : index
    %c0_92 = arith.constant 0 : index
    %c0_93 = arith.constant 0 : index
    %140 = vector.load %arg12[%c0_91, %c0_92, %c0_93] : memref<4x32x8xf32, #tpu.memory_space<vmem>>, vector<1x32x8xf32>
    %141 = vector.shape_cast %140 : vector<1x32x8xf32> to vector<32x8xf32>
    %cst_94 = arith.constant dense<0.000000e+00> : vector<8x8xf32>
    %142 = tpu.matmul %3, %141, %cst_94 {dimension_numbers = #tpu.dot_dimension_numbers<[1], [0], [0], [1], [0, 0, 1, 1], [], []>} : vector<8x32xf32>, vector<32x8xf32>, vector<8x8xf32> -> vector<8x8xf32>
    %c0_95 = arith.constant 0 : index
    %c0_96 = arith.constant 0 : index
    %c0_97 = arith.constant 0 : index
    %143 = vector.load %arg13[%c0_95, %c0_96, %c0_97] : memref<4x32x8xf32, #tpu.memory_space<vmem>>, vector<1x32x8xf32>
    %144 = vector.shape_cast %143 : vector<1x32x8xf32> to vector<32x8xf32>
    %cst_98 = arith.constant dense<0.000000e+00> : vector<8x8xf32>
    %145 = tpu.matmul %3, %144, %cst_98 {dimension_numbers = #tpu.dot_dimension_numbers<[1], [0], [0], [1], [0, 0, 1, 1], [], []>} : vector<8x32xf32>, vector<32x8xf32>, vector<8x8xf32> -> vector<8x8xf32>
    %146 = tpu.transpose %142, [1, 0] : vector<8x8xf32> -> vector<8x8xf32>
    %cst_99 = arith.constant dense<0.000000e+00> : vector<8x8xf32>
    %147 = tpu.matmul %139, %146, %cst_99 {dimension_numbers = #tpu.dot_dimension_numbers<[1], [0], [0], [1], [0, 0, 1, 1], [], []>} : vector<8x8xf32>, vector<8x8xf32>, vector<8x8xf32> -> vector<8x8xf32>
    %cst_100 = arith.constant 0.353553385 : f32
    %148 = vector.broadcast %cst_100 : f32 to vector<8x8xf32>
    %149 = arith.mulf %147, %148 : vector<8x8xf32>
    %150 = arith.addf %149, %7 : vector<8x8xf32>
    %cst_101 = arith.constant dense<0xFF800000> : vector<8xf32>
    %151 = vector.multi_reduction <maximumf>, %150, %cst_101 [1] : vector<8x8xf32> to vector<8xf32>
    %152 = vector.shape_cast %151 : vector<8xf32> to vector<8x1xf32>
    %153 = vector.broadcast %152 : vector<8x1xf32> to vector<8x8xf32>
    %154 = arith.subf %150, %153 : vector<8x8xf32>
    %155 = math.exp %154 : vector<8x8xf32>
    %cst_102 = arith.constant dense<0.000000e+00> : vector<8xf32>
    %156 = vector.multi_reduction <add>, %155, %cst_102 [1] : vector<8x8xf32> to vector<8xf32>
    %157 = vector.shape_cast %156 : vector<8xf32> to vector<8x1xf32>
    %158 = tpu.reciprocal %157 {approx = true} : vector<8x1xf32> -> vector<8x1xf32>
    %159 = vector.broadcast %158 : vector<8x1xf32> to vector<8x8xf32>
    %160 = arith.mulf %155, %159 : vector<8x8xf32>
    %cst_103 = arith.constant dense<0.000000e+00> : vector<8x8xf32>
    %161 = tpu.matmul %160, %145, %cst_103 {dimension_numbers = #tpu.dot_dimension_numbers<[1], [0], [0], [1], [0, 0, 1, 1], [], []>} : vector<8x8xf32>, vector<8x8xf32>, vector<8x8xf32> -> vector<8x8xf32>
    %c1_104 = arith.constant 1 : index
    %c0_105 = arith.constant 0 : index
    %c0_106 = arith.constant 0 : index
    %162 = vector.load %arg11[%c1_104, %c0_105, %c0_106] : memref<4x32x8xf32, #tpu.memory_space<vmem>>, vector<1x32x8xf32>
    %163 = vector.shape_cast %162 : vector<1x32x8xf32> to vector<32x8xf32>
    %cst_107 = arith.constant dense<0.000000e+00> : vector<8x8xf32>
    %164 = tpu.matmul %136, %163, %cst_107 {dimension_numbers = #tpu.dot_dimension_numbers<[1], [0], [0], [1], [0, 0, 1, 1], [], []>} : vector<8x32xf32>, vector<32x8xf32>, vector<8x8xf32> -> vector<8x8xf32>
    %c1_108 = arith.constant 1 : index
    %c0_109 = arith.constant 0 : index
    %c0_110 = arith.constant 0 : index
    %165 = vector.load %arg12[%c1_108, %c0_109, %c0_110] : memref<4x32x8xf32, #tpu.memory_space<vmem>>, vector<1x32x8xf32>
    %166 = vector.shape_cast %165 : vector<1x32x8xf32> to vector<32x8xf32>
    %cst_111 = arith.constant dense<0.000000e+00> : vector<8x8xf32>
    %167 = tpu.matmul %3, %166, %cst_111 {dimension_numbers = #tpu.dot_dimension_numbers<[1], [0], [0], [1], [0, 0, 1, 1], [], []>} : vector<8x32xf32>, vector<32x8xf32>, vector<8x8xf32> -> vector<8x8xf32>
    %c1_112 = arith.constant 1 : index
    %c0_113 = arith.constant 0 : index
    %c0_114 = arith.constant 0 : index
    %168 = vector.load %arg13[%c1_112, %c0_113, %c0_114] : memref<4x32x8xf32, #tpu.memory_space<vmem>>, vector<1x32x8xf32>
    %169 = vector.shape_cast %168 : vector<1x32x8xf32> to vector<32x8xf32>
    %cst_115 = arith.constant dense<0.000000e+00> : vector<8x8xf32>
    %170 = tpu.matmul %3, %169, %cst_115 {dimension_numbers = #tpu.dot_dimension_numbers<[1], [0], [0], [1], [0, 0, 1, 1], [], []>} : vector<8x32xf32>, vector<32x8xf32>, vector<8x8xf32> -> vector<8x8xf32>
    %171 = tpu.transpose %167, [1, 0] : vector<8x8xf32> -> vector<8x8xf32>
    %cst_116 = arith.constant dense<0.000000e+00> : vector<8x8xf32>
    %172 = tpu.matmul %164, %171, %cst_116 {dimension_numbers = #tpu.dot_dimension_numbers<[1], [0], [0], [1], [0, 0, 1, 1], [], []>} : vector<8x8xf32>, vector<8x8xf32>, vector<8x8xf32> -> vector<8x8xf32>
    %cst_117 = arith.constant 0.353553385 : f32
    %173 = vector.broadcast %cst_117 : f32 to vector<8x8xf32>
    %174 = arith.mulf %172, %173 : vector<8x8xf32>
    %175 = arith.addf %174, %7 : vector<8x8xf32>
    %cst_118 = arith.constant dense<0xFF800000> : vector<8xf32>
    %176 = vector.multi_reduction <maximumf>, %175, %cst_118 [1] : vector<8x8xf32> to vector<8xf32>
    %177 = vector.shape_cast %176 : vector<8xf32> to vector<8x1xf32>
    %178 = vector.broadcast %177 : vector<8x1xf32> to vector<8x8xf32>
    %179 = arith.subf %175, %178 : vector<8x8xf32>
    %180 = math.exp %179 : vector<8x8xf32>
    %cst_119 = arith.constant dense<0.000000e+00> : vector<8xf32>
    %181 = vector.multi_reduction <add>, %180, %cst_119 [1] : vector<8x8xf32> to vector<8xf32>
    %182 = vector.shape_cast %181 : vector<8xf32> to vector<8x1xf32>
    %183 = tpu.reciprocal %182 {approx = true} : vector<8x1xf32> -> vector<8x1xf32>
    %184 = vector.broadcast %183 : vector<8x1xf32> to vector<8x8xf32>
    %185 = arith.mulf %180, %184 : vector<8x8xf32>
    %cst_120 = arith.constant dense<0.000000e+00> : vector<8x8xf32>
    %186 = tpu.matmul %185, %170, %cst_120 {dimension_numbers = #tpu.dot_dimension_numbers<[1], [0], [0], [1], [0, 0, 1, 1], [], []>} : vector<8x8xf32>, vector<8x8xf32>, vector<8x8xf32> -> vector<8x8xf32>
    %c2_121 = arith.constant 2 : index
    %c0_122 = arith.constant 0 : index
    %c0_123 = arith.constant 0 : index
    %187 = vector.load %arg11[%c2_121, %c0_122, %c0_123] : memref<4x32x8xf32, #tpu.memory_space<vmem>>, vector<1x32x8xf32>
    %188 = vector.shape_cast %187 : vector<1x32x8xf32> to vector<32x8xf32>
    %cst_124 = arith.constant dense<0.000000e+00> : vector<8x8xf32>
    %189 = tpu.matmul %136, %188, %cst_124 {dimension_numbers = #tpu.dot_dimension_numbers<[1], [0], [0], [1], [0, 0, 1, 1], [], []>} : vector<8x32xf32>, vector<32x8xf32>, vector<8x8xf32> -> vector<8x8xf32>
    %c2_125 = arith.constant 2 : index
    %c0_126 = arith.constant 0 : index
    %c0_127 = arith.constant 0 : index
    %190 = vector.load %arg12[%c2_125, %c0_126, %c0_127] : memref<4x32x8xf32, #tpu.memory_space<vmem>>, vector<1x32x8xf32>
    %191 = vector.shape_cast %190 : vector<1x32x8xf32> to vector<32x8xf32>
    %cst_128 = arith.constant dense<0.000000e+00> : vector<8x8xf32>
    %192 = tpu.matmul %3, %191, %cst_128 {dimension_numbers = #tpu.dot_dimension_numbers<[1], [0], [0], [1], [0, 0, 1, 1], [], []>} : vector<8x32xf32>, vector<32x8xf32>, vector<8x8xf32> -> vector<8x8xf32>
    %c2_129 = arith.constant 2 : index
    %c0_130 = arith.constant 0 : index
    %c0_131 = arith.constant 0 : index
    %193 = vector.load %arg13[%c2_129, %c0_130, %c0_131] : memref<4x32x8xf32, #tpu.memory_space<vmem>>, vector<1x32x8xf32>
    %194 = vector.shape_cast %193 : vector<1x32x8xf32> to vector<32x8xf32>
    %cst_132 = arith.constant dense<0.000000e+00> : vector<8x8xf32>
    %195 = tpu.matmul %3, %194, %cst_132 {dimension_numbers = #tpu.dot_dimension_numbers<[1], [0], [0], [1], [0, 0, 1, 1], [], []>} : vector<8x32xf32>, vector<32x8xf32>, vector<8x8xf32> -> vector<8x8xf32>
    %196 = tpu.transpose %192, [1, 0] : vector<8x8xf32> -> vector<8x8xf32>
    %cst_133 = arith.constant dense<0.000000e+00> : vector<8x8xf32>
    %197 = tpu.matmul %189, %196, %cst_133 {dimension_numbers = #tpu.dot_dimension_numbers<[1], [0], [0], [1], [0, 0, 1, 1], [], []>} : vector<8x8xf32>, vector<8x8xf32>, vector<8x8xf32> -> vector<8x8xf32>
    %cst_134 = arith.constant 0.353553385 : f32
    %198 = vector.broadcast %cst_134 : f32 to vector<8x8xf32>
    %199 = arith.mulf %197, %198 : vector<8x8xf32>
    %200 = arith.addf %199, %7 : vector<8x8xf32>
    %cst_135 = arith.constant dense<0xFF800000> : vector<8xf32>
    %201 = vector.multi_reduction <maximumf>, %200, %cst_135 [1] : vector<8x8xf32> to vector<8xf32>
    %202 = vector.shape_cast %201 : vector<8xf32> to vector<8x1xf32>
    %203 = vector.broadcast %202 : vector<8x1xf32> to vector<8x8xf32>
    %204 = arith.subf %200, %203 : vector<8x8xf32>
    %205 = math.exp %204 : vector<8x8xf32>
    %cst_136 = arith.constant dense<0.000000e+00> : vector<8xf32>
    %206 = vector.multi_reduction <add>, %205, %cst_136 [1] : vector<8x8xf32> to vector<8xf32>
    %207 = vector.shape_cast %206 : vector<8xf32> to vector<8x1xf32>
    %208 = tpu.reciprocal %207 {approx = true} : vector<8x1xf32> -> vector<8x1xf32>
    %209 = vector.broadcast %208 : vector<8x1xf32> to vector<8x8xf32>
    %210 = arith.mulf %205, %209 : vector<8x8xf32>
    %cst_137 = arith.constant dense<0.000000e+00> : vector<8x8xf32>
    %211 = tpu.matmul %210, %195, %cst_137 {dimension_numbers = #tpu.dot_dimension_numbers<[1], [0], [0], [1], [0, 0, 1, 1], [], []>} : vector<8x8xf32>, vector<8x8xf32>, vector<8x8xf32> -> vector<8x8xf32>
    %c3_138 = arith.constant 3 : index
    %c0_139 = arith.constant 0 : index
    %c0_140 = arith.constant 0 : index
    %212 = vector.load %arg11[%c3_138, %c0_139, %c0_140] : memref<4x32x8xf32, #tpu.memory_space<vmem>>, vector<1x32x8xf32>
    %213 = vector.shape_cast %212 : vector<1x32x8xf32> to vector<32x8xf32>
    %cst_141 = arith.constant dense<0.000000e+00> : vector<8x8xf32>
    %214 = tpu.matmul %136, %213, %cst_141 {dimension_numbers = #tpu.dot_dimension_numbers<[1], [0], [0], [1], [0, 0, 1, 1], [], []>} : vector<8x32xf32>, vector<32x8xf32>, vector<8x8xf32> -> vector<8x8xf32>
    %c3_142 = arith.constant 3 : index
    %c0_143 = arith.constant 0 : index
    %c0_144 = arith.constant 0 : index
    %215 = vector.load %arg12[%c3_142, %c0_143, %c0_144] : memref<4x32x8xf32, #tpu.memory_space<vmem>>, vector<1x32x8xf32>
    %216 = vector.shape_cast %215 : vector<1x32x8xf32> to vector<32x8xf32>
    %cst_145 = arith.constant dense<0.000000e+00> : vector<8x8xf32>
    %217 = tpu.matmul %3, %216, %cst_145 {dimension_numbers = #tpu.dot_dimension_numbers<[1], [0], [0], [1], [0, 0, 1, 1], [], []>} : vector<8x32xf32>, vector<32x8xf32>, vector<8x8xf32> -> vector<8x8xf32>
    %c3_146 = arith.constant 3 : index
    %c0_147 = arith.constant 0 : index
    %c0_148 = arith.constant 0 : index
    %218 = vector.load %arg13[%c3_146, %c0_147, %c0_148] : memref<4x32x8xf32, #tpu.memory_space<vmem>>, vector<1x32x8xf32>
    %219 = vector.shape_cast %218 : vector<1x32x8xf32> to vector<32x8xf32>
    %cst_149 = arith.constant dense<0.000000e+00> : vector<8x8xf32>
    %220 = tpu.matmul %3, %219, %cst_149 {dimension_numbers = #tpu.dot_dimension_numbers<[1], [0], [0], [1], [0, 0, 1, 1], [], []>} : vector<8x32xf32>, vector<32x8xf32>, vector<8x8xf32> -> vector<8x8xf32>
    %221 = tpu.transpose %217, [1, 0] : vector<8x8xf32> -> vector<8x8xf32>
    %cst_150 = arith.constant dense<0.000000e+00> : vector<8x8xf32>
    %222 = tpu.matmul %214, %221, %cst_150 {dimension_numbers = #tpu.dot_dimension_numbers<[1], [0], [0], [1], [0, 0, 1, 1], [], []>} : vector<8x8xf32>, vector<8x8xf32>, vector<8x8xf32> -> vector<8x8xf32>
    %cst_151 = arith.constant 0.353553385 : f32
    %223 = vector.broadcast %cst_151 : f32 to vector<8x8xf32>
    %224 = arith.mulf %222, %223 : vector<8x8xf32>
    %225 = arith.addf %224, %7 : vector<8x8xf32>
    %cst_152 = arith.constant dense<0xFF800000> : vector<8xf32>
    %226 = vector.multi_reduction <maximumf>, %225, %cst_152 [1] : vector<8x8xf32> to vector<8xf32>
    %227 = vector.shape_cast %226 : vector<8xf32> to vector<8x1xf32>
    %228 = vector.broadcast %227 : vector<8x1xf32> to vector<8x8xf32>
    %229 = arith.subf %225, %228 : vector<8x8xf32>
    %230 = math.exp %229 : vector<8x8xf32>
    %cst_153 = arith.constant dense<0.000000e+00> : vector<8xf32>
    %231 = vector.multi_reduction <add>, %230, %cst_153 [1] : vector<8x8xf32> to vector<8xf32>
    %232 = vector.shape_cast %231 : vector<8xf32> to vector<8x1xf32>
    %233 = tpu.reciprocal %232 {approx = true} : vector<8x1xf32> -> vector<8x1xf32>
    %234 = vector.broadcast %233 : vector<8x1xf32> to vector<8x8xf32>
    %235 = arith.mulf %230, %234 : vector<8x8xf32>
    %cst_154 = arith.constant dense<0.000000e+00> : vector<8x8xf32>
    %236 = tpu.matmul %235, %220, %cst_154 {dimension_numbers = #tpu.dot_dimension_numbers<[1], [0], [0], [1], [0, 0, 1, 1], [], []>} : vector<8x8xf32>, vector<8x8xf32>, vector<8x8xf32> -> vector<8x8xf32>
    %237 = tpu.concatenate %160, %185, %210, %235 in 1 : vector<8x8xf32>, vector<8x8xf32>, vector<8x8xf32>, vector<8x8xf32> -> vector<8x32xf32>
    %238 = tpu.concatenate %161, %186, %211, %236 in 1 : vector<8x8xf32>, vector<8x8xf32>, vector<8x8xf32>, vector<8x8xf32> -> vector<8x32xf32>
    %c0_155 = arith.constant 0 : index
    %c0_156 = arith.constant 0 : index
    %239 = vector.load %arg14[%c0_155, %c0_156] : memref<32x32xf32, #tpu.memory_space<vmem>>, vector<32x32xf32>
    %cst_157 = arith.constant dense<0.000000e+00> : vector<8x32xf32>
    %240 = tpu.matmul %238, %239, %cst_157 {dimension_numbers = #tpu.dot_dimension_numbers<[1], [0], [0], [1], [0, 0, 1, 1], [], []>} : vector<8x32xf32>, vector<32x32xf32>, vector<8x32xf32> -> vector<8x32xf32>
    %241 = arith.addf %240, %136 : vector<8x32xf32>
    %c0_158 = arith.constant 0 : index
    %c0_159 = arith.constant 0 : index
    %242 = vector.load %arg15[%c0_158, %c0_159] : memref<1x32xf32, #tpu.memory_space<vmem>>, vector<1x32xf32>
    %c0_160 = arith.constant 0 : index
    %c0_161 = arith.constant 0 : index
    %243 = vector.load %arg16[%c0_160, %c0_161] : memref<1x32xf32, #tpu.memory_space<vmem>>, vector<1x32xf32>
    %cst_162 = arith.constant dense<0.000000e+00> : vector<8xf32>
    %244 = vector.multi_reduction <add>, %241, %cst_162 [1] : vector<8x32xf32> to vector<8xf32>
    %245 = vector.shape_cast %244 : vector<8xf32> to vector<8x1xf32>
    %cst_163 = arith.constant 3.200000e+01 : f32
    %246 = vector.broadcast %cst_163 : f32 to vector<8x1xf32>
    %247 = arith.divf %245, %246 : vector<8x1xf32>
    %248 = vector.broadcast %247 : vector<8x1xf32> to vector<8x32xf32>
    %249 = arith.subf %241, %248 : vector<8x32xf32>
    %250 = arith.mulf %249, %249 : vector<8x32xf32>
    %cst_164 = arith.constant dense<0.000000e+00> : vector<8xf32>
    %251 = vector.multi_reduction <add>, %250, %cst_164 [1] : vector<8x32xf32> to vector<8xf32>
    %252 = vector.shape_cast %251 : vector<8xf32> to vector<8x1xf32>
    %cst_165 = arith.constant 3.200000e+01 : f32
    %253 = vector.broadcast %cst_165 : f32 to vector<8x1xf32>
    %254 = arith.divf %252, %253 : vector<8x1xf32>
    %255 = vector.broadcast %247 : vector<8x1xf32> to vector<8x32xf32>
    %256 = arith.subf %241, %255 : vector<8x32xf32>
    %cst_166 = arith.constant 9.99999997E-7 : f32
    %257 = vector.broadcast %cst_166 : f32 to vector<8x1xf32>
    %258 = arith.addf %254, %257 : vector<8x1xf32>
    %259 = math.rsqrt %258 : vector<8x1xf32>
    %260 = vector.broadcast %259 : vector<8x1xf32> to vector<8x32xf32>
    %261 = arith.mulf %256, %260 : vector<8x32xf32>
    %262 = vector.broadcast %242 : vector<1x32xf32> to vector<8x32xf32>
    %263 = arith.mulf %261, %262 : vector<8x32xf32>
    %264 = vector.broadcast %243 : vector<1x32xf32> to vector<8x32xf32>
    %265 = arith.addf %263, %264 : vector<8x32xf32>
    %c0_167 = arith.constant 0 : index
    %c0_168 = arith.constant 0 : index
    %266 = vector.load %arg17[%c0_167, %c0_168] : memref<32x64xf32, #tpu.memory_space<vmem>>, vector<32x64xf32>
    %cst_169 = arith.constant dense<0.000000e+00> : vector<8x64xf32>
    %267 = tpu.matmul %265, %266, %cst_169 {dimension_numbers = #tpu.dot_dimension_numbers<[1], [0], [0], [1], [0, 0, 1, 1], [], []>} : vector<8x32xf32>, vector<32x64xf32>, vector<8x64xf32> -> vector<8x64xf32>
    %c0_170 = arith.constant 0 : index
    %c0_171 = arith.constant 0 : index
    %268 = vector.load %arg18[%c0_170, %c0_171] : memref<1x64xf32, #tpu.memory_space<vmem>>, vector<1x64xf32>
    %269 = vector.broadcast %268 : vector<1x64xf32> to vector<8x64xf32>
    %270 = arith.addf %267, %269 : vector<8x64xf32>
    %cst_172 = arith.constant 0.000000e+00 : f32
    %271 = vector.broadcast %cst_172 : f32 to vector<8x64xf32>
    %272 = arith.maximumf %270, %271 : vector<8x64xf32>
    %c0_173 = arith.constant 0 : index
    %c0_174 = arith.constant 0 : index
    %273 = vector.load %arg19[%c0_173, %c0_174] : memref<64x32xf32, #tpu.memory_space<vmem>>, vector<64x32xf32>
    %cst_175 = arith.constant dense<0.000000e+00> : vector<8x32xf32>
    %274 = tpu.matmul %272, %273, %cst_175 {dimension_numbers = #tpu.dot_dimension_numbers<[1], [0], [0], [1], [0, 0, 1, 1], [], []>} : vector<8x64xf32>, vector<64x32xf32>, vector<8x32xf32> -> vector<8x32xf32>
    %c0_176 = arith.constant 0 : index
    %c0_177 = arith.constant 0 : index
    %275 = vector.load %arg20[%c0_176, %c0_177] : memref<1x32xf32, #tpu.memory_space<vmem>>, vector<1x32xf32>
    %276 = vector.broadcast %275 : vector<1x32xf32> to vector<8x32xf32>
    %277 = arith.addf %274, %276 : vector<8x32xf32>
    %278 = arith.addf %277, %265 : vector<8x32xf32>
    %c0_178 = arith.constant 0 : index
    %c0_179 = arith.constant 0 : index
    %279 = vector.load %arg21[%c0_178, %c0_179] : memref<1x32xf32, #tpu.memory_space<vmem>>, vector<1x32xf32>
    %c0_180 = arith.constant 0 : index
    %c0_181 = arith.constant 0 : index
    %280 = vector.load %arg22[%c0_180, %c0_181] : memref<1x32xf32, #tpu.memory_space<vmem>>, vector<1x32xf32>
    %cst_182 = arith.constant dense<0.000000e+00> : vector<8xf32>
    %281 = vector.multi_reduction <add>, %278, %cst_182 [1] : vector<8x32xf32> to vector<8xf32>
    %282 = vector.shape_cast %281 : vector<8xf32> to vector<8x1xf32>
    %cst_183 = arith.constant 3.200000e+01 : f32
    %283 = vector.broadcast %cst_183 : f32 to vector<8x1xf32>
    %284 = arith.divf %282, %283 : vector<8x1xf32>
    %285 = vector.broadcast %284 : vector<8x1xf32> to vector<8x32xf32>
    %286 = arith.subf %278, %285 : vector<8x32xf32>
    %287 = arith.mulf %286, %286 : vector<8x32xf32>
    %cst_184 = arith.constant dense<0.000000e+00> : vector<8xf32>
    %288 = vector.multi_reduction <add>, %287, %cst_184 [1] : vector<8x32xf32> to vector<8xf32>
    %289 = vector.shape_cast %288 : vector<8xf32> to vector<8x1xf32>
    %cst_185 = arith.constant 3.200000e+01 : f32
    %290 = vector.broadcast %cst_185 : f32 to vector<8x1xf32>
    %291 = arith.divf %289, %290 : vector<8x1xf32>
    %292 = vector.broadcast %284 : vector<8x1xf32> to vector<8x32xf32>
    %293 = arith.subf %278, %292 : vector<8x32xf32>
    %cst_186 = arith.constant 9.99999997E-7 : f32
    %294 = vector.broadcast %cst_186 : f32 to vector<8x1xf32>
    %295 = arith.addf %291, %294 : vector<8x1xf32>
    %296 = math.rsqrt %295 : vector<8x1xf32>
    %297 = vector.broadcast %296 : vector<8x1xf32> to vector<8x32xf32>
    %298 = arith.mulf %293, %297 : vector<8x32xf32>
    %299 = vector.broadcast %279 : vector<1x32xf32> to vector<8x32xf32>
    %300 = arith.mulf %298, %299 : vector<8x32xf32>
    %301 = vector.broadcast %280 : vector<1x32xf32> to vector<8x32xf32>
    %302 = arith.addf %300, %301 : vector<8x32xf32>
    %c0_187 = arith.constant 0 : index
    %c0_188 = arith.constant 0 : index
    %c0_189 = arith.constant 0 : index
    %303 = vector.load %arg23[%c0_187, %c0_188, %c0_189] : memref<1x8x32xf32, #tpu.memory_space<vmem>>, vector<1x8x32xf32>
    %304 = vector.shape_cast %303 : vector<1x8x32xf32> to vector<8x32xf32>
    %305 = vector.shape_cast %302 : vector<8x32xf32> to vector<1x8x32xf32>
    tpu.vector_store %arg23[%c0_187, %c0_188, %c0_189], %305 {strides = array<i32>} : memref<1x8x32xf32, #tpu.memory_space<vmem>>, vector<1x8x32xf32>,
    %c0_190 = arith.constant 0 : index
    %c0_191 = arith.constant 0 : index
    %c0_192 = arith.constant 0 : index
    %306 = vector.load %arg24[%c0_190, %c0_191, %c0_192] : memref<1x8x32xf32, #tpu.memory_space<vmem>>, vector<1x8x32xf32>
    %307 = vector.shape_cast %306 : vector<1x8x32xf32> to vector<8x32xf32>
    %308 = vector.shape_cast %108 : vector<8x32xf32> to vector<1x8x32xf32>
    tpu.vector_store %arg24[%c0_190, %c0_191, %c0_192], %308 {strides = array<i32>} : memref<1x8x32xf32, #tpu.memory_space<vmem>>, vector<1x8x32xf32>,
    %c0_193 = arith.constant 0 : index
    %c0_194 = arith.constant 0 : index
    %c0_195 = arith.constant 0 : index
    %309 = vector.load %arg25[%c0_193, %c0_194, %c0_195] : memref<1x8x32xf32, #tpu.memory_space<vmem>>, vector<1x8x32xf32>
    %310 = vector.shape_cast %309 : vector<1x8x32xf32> to vector<8x32xf32>
    %311 = vector.shape_cast %237 : vector<8x32xf32> to vector<1x8x32xf32>
    tpu.vector_store %arg25[%c0_193, %c0_194, %c0_195], %311 {strides = array<i32>} : memref<1x8x32xf32, #tpu.memory_space<vmem>>, vector<1x8x32xf32>,
    return
  }
  func.func @transform_0(%arg0: i32) -> (i32, i32, i32) {
    %c0_i32 = arith.constant 0 : i32
    %c0_i32_0 = arith.constant 0 : i32
    %c0_i32_1 = arith.constant 0 : i32
    return %arg0, %c0_i32, %c0_i32_0 : i32, i32, i32
  }
  func.func @transform_1(%arg0: i32) -> (i32, i32, i32) {
    %c0_i32 = arith.constant 0 : i32
    %c0_i32_0 = arith.constant 0 : i32
    %c0_i32_1 = arith.constant 0 : i32
    return %arg0, %c0_i32, %c0_i32_0 : i32, i32, i32
  }
  func.func @transform_2(%arg0: i32) -> (i32, i32, i32) {
    %c0_i32 = arith.constant 0 : i32
    %c0_i32_0 = arith.constant 0 : i32
    %c0_i32_1 = arith.constant 0 : i32
    return %arg0, %c0_i32, %c0_i32_0 : i32, i32, i32
  }
  func.func @transform_3(%arg0: i32) -> (i32, i32, i32) {
    %c0_i32 = arith.constant 0 : i32
    %c0_i32_0 = arith.constant 0 : i32
    %c0_i32_1 = arith.constant 0 : i32
    return %arg0, %c0_i32, %c0_i32_0 : i32, i32, i32
  }
  func.func @transform_4(%arg0: i32) -> (i32, i32, i32) {
    %c0_i32 = arith.constant 0 : i32
    %c0_i32_0 = arith.constant 0 : i32
    %c0_i32_1 = arith.constant 0 : i32
    %c0_i32_2 = arith.constant 0 : i32
    return %c0_i32, %c0_i32_0, %c0_i32_1 : i32, i32, i32
  }
  func.func @transform_5(%arg0: i32) -> (i32, i32, i32) {
    %c0_i32 = arith.constant 0 : i32
    %c0_i32_0 = arith.constant 0 : i32
    %c0_i32_1 = arith.constant 0 : i32
    %c0_i32_2 = arith.constant 0 : i32
    return %c0_i32, %c0_i32_0, %c0_i32_1 : i32, i32, i32
  }
  func.func @transform_6(%arg0: i32) -> (i32, i32, i32) {
    %c0_i32 = arith.constant 0 : i32
    %c0_i32_0 = arith.constant 0 : i32
    %c0_i32_1 = arith.constant 0 : i32
    %c0_i32_2 = arith.constant 0 : i32
    return %c0_i32, %c0_i32_0, %c0_i32_1 : i32, i32, i32
  }
  func.func @transform_7(%arg0: i32) -> (i32, i32) {
    %c0_i32 = arith.constant 0 : i32
    %c0_i32_0 = arith.constant 0 : i32
    %c0_i32_1 = arith.constant 0 : i32
    return %c0_i32, %c0_i32_0 : i32, i32
  }
  func.func @transform_8(%arg0: i32) -> (i32, i32) {
    %c0_i32 = arith.constant 0 : i32
    %c0_i32_0 = arith.constant 0 : i32
    %c0_i32_1 = arith.constant 0 : i32
    return %c0_i32, %c0_i32_0 : i32, i32
  }
  func.func @transform_9(%arg0: i32) -> (i32, i32) {
    %c0_i32 = arith.constant 0 : i32
    %c0_i32_0 = arith.constant 0 : i32
    %c0_i32_1 = arith.constant 0 : i32
    return %c0_i32, %c0_i32_0 : i32, i32
  }
  func.func @transform_10(%arg0: i32) -> (i32, i32, i32) {
    %c0_i32 = arith.constant 0 : i32
    %c0_i32_0 = arith.constant 0 : i32
    %c0_i32_1 = arith.constant 0 : i32
    %c0_i32_2 = arith.constant 0 : i32
    return %c0_i32, %c0_i32_0, %c0_i32_1 : i32, i32, i32
  }
  func.func @transform_11(%arg0: i32) -> (i32, i32, i32) {
    %c0_i32 = arith.constant 0 : i32
    %c0_i32_0 = arith.constant 0 : i32
    %c0_i32_1 = arith.constant 0 : i32
    %c0_i32_2 = arith.constant 0 : i32
    return %c0_i32, %c0_i32_0, %c0_i32_1 : i32, i32, i32
  }
  func.func @transform_12(%arg0: i32) -> (i32, i32, i32) {
    %c0_i32 = arith.constant 0 : i32
    %c0_i32_0 = arith.constant 0 : i32
    %c0_i32_1 = arith.constant 0 : i32
    %c0_i32_2 = arith.constant 0 : i32
    return %c0_i32, %c0_i32_0, %c0_i32_1 : i32, i32, i32
  }
  func.func @transform_13(%arg0: i32) -> (i32, i32) {
    %c0_i32 = arith.constant 0 : i32
    %c0_i32_0 = arith.constant 0 : i32
    %c0_i32_1 = arith.constant 0 : i32
    return %c0_i32, %c0_i32_0 : i32, i32
  }
  func.func @transform_14(%arg0: i32) -> (i32, i32) {
    %c0_i32 = arith.constant 0 : i32
    %c0_i32_0 = arith.constant 0 : i32
    %c0_i32_1 = arith.constant 0 : i32
    return %c0_i32, %c0_i32_0 : i32, i32
  }
  func.func @transform_15(%arg0: i32) -> (i32, i32) {
    %c0_i32 = arith.constant 0 : i32
    %c0_i32_0 = arith.constant 0 : i32
    %c0_i32_1 = arith.constant 0 : i32
    return %c0_i32, %c0_i32_0 : i32, i32
  }
  func.func @transform_16(%arg0: i32) -> (i32, i32) {
    %c0_i32 = arith.constant 0 : i32
    %c0_i32_0 = arith.constant 0 : i32
    %c0_i32_1 = arith.constant 0 : i32
    return %c0_i32, %c0_i32_0 : i32, i32
  }
  func.func @transform_17(%arg0: i32) -> (i32, i32) {
    %c0_i32 = arith.constant 0 : i32
    %c0_i32_0 = arith.constant 0 : i32
    %c0_i32_1 = arith.constant 0 : i32
    return %c0_i32, %c0_i32_0 : i32, i32
  }
  func.func @transform_18(%arg0: i32) -> (i32, i32) {
    %c0_i32 = arith.constant 0 : i32
    %c0_i32_0 = arith.constant 0 : i32
    %c0_i32_1 = arith.constant 0 : i32
    return %c0_i32, %c0_i32_0 : i32, i32
  }
  func.func @transform_19(%arg0: i32) -> (i32, i32) {
    %c0_i32 = arith.constant 0 : i32
    %c0_i32_0 = arith.constant 0 : i32
    %c0_i32_1 = arith.constant 0 : i32
    return %c0_i32, %c0_i32_0 : i32, i32
  }
  func.func @transform_20(%arg0: i32) -> (i32, i32) {
    %c0_i32 = arith.constant 0 : i32
    %c0_i32_0 = arith.constant 0 : i32
    %c0_i32_1 = arith.constant 0 : i32
    return %c0_i32, %c0_i32_0 : i32, i32
  }
  func.func @transform_21(%arg0: i32) -> (i32, i32) {
    %c0_i32 = arith.constant 0 : i32
    %c0_i32_0 = arith.constant 0 : i32
    %c0_i32_1 = arith.constant 0 : i32
    return %c0_i32, %c0_i32_0 : i32, i32
  }
  func.func @transform_22(%arg0: i32) -> (i32, i32, i32) {
    %c0_i32 = arith.constant 0 : i32
    %c0_i32_0 = arith.constant 0 : i32
    %c0_i32_1 = arith.constant 0 : i32
    return %arg0, %c0_i32, %c0_i32_0 : i32, i32, i32
  }
  func.func @transform_23(%arg0: i32) -> (i32, i32, i32) {
    %c0_i32 = arith.constant 0 : i32
    %c0_i32_0 = arith.constant 0 : i32
    %c0_i32_1 = arith.constant 0 : i32
    return %arg0, %c0_i32, %c0_i32_0 : i32, i32, i32
  }
  func.func @transform_24(%arg0: i32) -> (i32, i32, i32) {
    %c0_i32 = arith.constant 0 : i32
    %c0_i32_0 = arith.constant 0 : i32
    %c0_i32_1 = arith.constant 0 : i32
    return %arg0, %c0_i32, %c0_i32_0 : i32, i32, i32
  }
}

</mosaic_0001>

<llo_original>
// kernel: tpu_custom_call.1
$region0: #{tpu_custom_call.1}
  #allocation0 [shape = 'u32[]', space=smem, size = 0x4, offset = 0x4, fixed_abs, tag = 'smem constant byte address 0x4 - core index']
  #allocation1 [shape = 'u32[144,128]{1,0:T(1,128)}', space=vmem, size = 0x12000, scoped, tag = 'internal scratch']
  %s0 = inlined_call_operand.vmem [shape: f32[2,8,32], index: 0, kind: input, shape index: {}]
  %s1 = inlined_call_operand.vmem [shape: f32[2,8,32], index: 1, kind: input, shape index: {}]
  %s2 = inlined_call_operand.vmem [shape: f32[2,8,8], index: 2, kind: input, shape index: {}]
  %s3 = inlined_call_operand.vmem [shape: f32[2,8,8], index: 3, kind: input, shape index: {}]
  %s4 = inlined_call_operand.vmem [shape: f32[4,32,8], index: 4, kind: input, shape index: {}]
  %s5 = inlined_call_operand.vmem [shape: f32[4,32,8], index: 5, kind: input, shape index: {}]
  %s6 = inlined_call_operand.vmem [shape: f32[4,32,8], index: 6, kind: input, shape index: {}]
  %s7 = inlined_call_operand.vmem [shape: f32[32,32], index: 7, kind: input, shape index: {}]
  %s8 = inlined_call_operand.vmem [shape: f32[1,32], index: 8, kind: input, shape index: {}]
  %s9 = inlined_call_operand.vmem [shape: f32[1,32], index: 9, kind: input, shape index: {}]
  %s10 = inlined_call_operand.vmem [shape: f32[4,32,8], index: 10, kind: input, shape index: {}]
  %s11 = inlined_call_operand.vmem [shape: f32[4,32,8], index: 11, kind: input, shape index: {}]
  %s12 = inlined_call_operand.vmem [shape: f32[4,32,8], index: 12, kind: input, shape index: {}]
  %s13 = inlined_call_operand.vmem [shape: f32[32,32], index: 13, kind: input, shape index: {}]
  %s14 = inlined_call_operand.vmem [shape: f32[1,32], index: 14, kind: input, shape index: {}]
  %s15 = inlined_call_operand.vmem [shape: f32[1,32], index: 15, kind: input, shape index: {}]
  %s16 = inlined_call_operand.vmem [shape: f32[32,64], index: 16, kind: input, shape index: {}]
  %s17 = inlined_call_operand.vmem [shape: f32[1,64], index: 17, kind: input, shape index: {}]
  %s18 = inlined_call_operand.vmem [shape: f32[64,32], index: 18, kind: input, shape index: {}]
  %s19 = inlined_call_operand.vmem [shape: f32[1,32], index: 19, kind: input, shape index: {}]
  %s20 = inlined_call_operand.vmem [shape: f32[1,32], index: 20, kind: input, shape index: {}]
  %s21 = inlined_call_operand.vmem [shape: f32[1,32], index: 21, kind: input, shape index: {}]
  %s22 = inlined_call_operand.hbm [shape: f32[2,8,32], index: 22, kind: output, shape index: {0}]
  %s23 = inlined_call_operand.hbm [shape: f32[2,8,32], index: 23, kind: output, shape index: {1}]
  %s24 = inlined_call_operand.hbm [shape: f32[2,8,32], index: 24, kind: output, shape index: {2}]
  %25 = xla_tuple %s22, %s23, %s24
  %s26 = sld [smem:[#allocation0]]
  $region137: #{tpu_custom_call.1} parent=0
    _
  %s28 = ssub.s32 1, %s26
  %s29 = scalar_select 0, %s28, %s26
  $region1: #{tpu_custom_call.1} parent=0
    #allocation2 [shape = 'u8[8192]{0}', space=vmem, size = 0x2000, scoped, tag = 'output window, operand 0']
    #allocation3 [shape = 's32[2]{0}', space=sflag, size = 0x8, scoped, tag = 'scoped memory for tpu_custom_call.1']
    #allocation4 [shape = 'u8[8192]{0}', space=vmem, size = 0x2000, scoped, tag = 'output window, operand 1']
    #allocation5 [shape = 's32[2]{0}', space=sflag, size = 0x8, scoped, tag = 'scoped memory for tpu_custom_call.1']
    #allocation6 [shape = 'u8[8192]{0}', space=vmem, size = 0x2000, scoped, tag = 'output window, operand 2']
    %30 = vsyncpa [#allocation3], 0
    %s31 = scalar_lea.sflag [#allocation3], 1
    %32 = vsyncpa %s31, 0
    %33 = vsyncpa [#allocation5], 0
    %s34 = scalar_lea.sflag [#allocation5], 1
    %35 = vsyncpa %s34, 0
    loop: start=0, step=1, limit=4
    $region2: #{tpu_custom_call.1} parent=1 // loop_pre_header
      _
    $region3: #{tpu_custom_call.1} parent=1 // loop_header
      %s37 = sphi 0, %s41
      %p38 = scmp.ge.s32.totalorder %s37, 4
      %s47 = sphi 0, %s49
      %s50 = sphi 0, %s47
      %s51 = sphi 0, %s50
      %s67 = sphi 0, %s51
      %s73 = sphi 0, %s75
      %s76 = sphi 0, %s73
      %s77 = sphi 0, %s76
      %s93 = sphi 0, %s77
      %s99 = sphi 0, %s101
      %s102 = sphi 0, %s99
      %s103 = sphi 0, %s102
      %s119 = sphi 0, %s103
      %s125 = sphi 0, %s127
      %s128 = sphi 0, %s125
      %s129 = sphi 0, %s128
      %s145 = sphi 0, %s129
      %s149 = sphi 0, %s149
      %s151 = sphi 0, %s149
      %s152 = sphi 0, %s151
      %s166 = sphi 0, %s152
      %s170 = sphi 0, %s170
      %s172 = sphi 0, %s170
      %s173 = sphi 0, %s172
      %s187 = sphi 0, %s173
      %s191 = sphi 0, %s191
      %s193 = sphi 0, %s191
      %s194 = sphi 0, %s193
      %s208 = sphi 0, %s194
      %s212 = sphi 0, %s212
      %s214 = sphi 0, %s212
      %s215 = sphi 0, %s214
      %s229 = sphi 0, %s215
      %s233 = sphi 0, %s233
      %s235 = sphi 0, %s233
      %s236 = sphi 0, %s235
      %s250 = sphi 0, %s236
      %s254 = sphi 0, %s254
      %s256 = sphi 0, %s254
      %s257 = sphi 0, %s256
      %s271 = sphi 0, %s257
      %s275 = sphi 0, %s275
      %s277 = sphi 0, %s275
      %s278 = sphi 0, %s277
      %s292 = sphi 0, %s278
      %s296 = sphi 0, %s296
      %s298 = sphi 0, %s296
      %s299 = sphi 0, %s298
      %s313 = sphi 0, %s299
      %s317 = sphi 0, %s317
      %s319 = sphi 0, %s317
      %s320 = sphi 0, %s319
      %s334 = sphi 0, %s320
      %s338 = sphi 0, %s338
      %s340 = sphi 0, %s338
      %s341 = sphi 0, %s340
      %s355 = sphi 0, %s341
      %s359 = sphi 0, %s359
      %s361 = sphi 0, %s359
      %s362 = sphi 0, %s361
      %s376 = sphi 0, %s362
      %s380 = sphi 0, %s380
      %s382 = sphi 0, %s380
      %s383 = sphi 0, %s382
      %s397 = sphi 0, %s383
      %s401 = sphi 0, %s401
      %s403 = sphi 0, %s401
      %s404 = sphi 0, %s403
      %s418 = sphi 0, %s404
      %s422 = sphi 0, %s422
      %s424 = sphi 0, %s422
      %s425 = sphi 0, %s424
      %s439 = sphi 0, %s425
      %s443 = sphi 0, %s443
      %s445 = sphi 0, %s443
      %s446 = sphi 0, %s445
      %s460 = sphi 0, %s446
      %s464 = sphi 0, %s464
      %s466 = sphi 0, %s464
      %s467 = sphi 0, %s466
      %s481 = sphi 0, %s467
      %s485 = sphi 0, %s485
      %s487 = sphi 0, %s485
      %s488 = sphi 0, %s487
      %s502 = sphi 0, %s488
      %s506 = sphi 0, %s506
      %s508 = sphi 0, %s506
      %s509 = sphi 0, %s508
      %s523 = sphi 0, %s509
      %s529 = sphi 0, %s531
      %s532 = sphi 0, %s529
      %s533 = sphi 0, %s532
      %s549 = sphi 0, %s533
      %s555 = sphi 0, %s557
      %s558 = sphi 0, %s555
      %s559 = sphi 0, %s558
      %s575 = sphi 0, %s559
      %s581 = sphi 0, %s583
      %s584 = sphi 0, %s581
      %s585 = sphi 0, %s584
      %s601 = sphi 0, %s585
    $region4: #{tpu_custom_call.1} parent=1 // loop_header_branch
      %40 = sbr.rel (%p38) target = $region8
    $region5: #{tpu_custom_call.1} parent=1 // loop_body
      %s42 = ssub.s32 %s37, 1
      %s43 = ssub.s32 %s37, 2
      %s44 = sadd.s32 %s37, 1
      %s45 = ssub.s32 %s37, %s44
      %p46 = scmp.eq.s32.totalorder %s45, 0
      %s48 = sadd.s32 %s47, 1
      %s49 = scalar_select %p46, %s47, %s48
      %p52 = pneg %p46
      %p53 = scmp.eq.s32.totalorder %s37, 1
      %p54 = por %p52, %p53
      %p55 = scmp.ne.s32.totalorder %s47, %s50
      %p56 = scmp.eq.s32.totalorder %s37, 0
      %p57 = por %p55, %p56
      %p58 = scmp.ne.s32.totalorder %s47, %s50
      %p59 = scmp.eq.s32.totalorder %s42, 1
      %p60 = por %p58, %p59
      %p61 = scmp.ne.s32.totalorder %s50, %s51
      %p62 = scmp.eq.s32.totalorder %s42, 0
      %p63 = por %p61, %p62
      %p64 = scmp.ne.s32.totalorder %s50, %s51
      %p65 = scmp.eq.s32.totalorder %s43, 1
      %p66 = por %p64, %p65
      %p68 = scmp.ne.s32.totalorder %s51, %s67
      %p69 = scmp.eq.s32.totalorder %s43, 0
      %p70 = por %p68, %p69
      %s71 = ssub.s32 %s37, %s44
      %p72 = scmp.eq.s32.totalorder %s71, 0
      %s74 = sadd.s32 %s73, 1
      %s75 = scalar_select %p72, %s73, %s74
      %p78 = pneg %p72
      %p79 = scmp.eq.s32.totalorder %s37, 1
      %p80 = por %p78, %p79
      %p81 = scmp.ne.s32.totalorder %s73, %s76
      %p82 = scmp.eq.s32.totalorder %s37, 0
      %p83 = por %p81, %p82
      %p84 = scmp.ne.s32.totalorder %s73, %s76
      %p85 = scmp.eq.s32.totalorder %s42, 1
      %p86 = por %p84, %p85
      %p87 = scmp.ne.s32.totalorder %s76, %s77
      %p88 = scmp.eq.s32.totalorder %s42, 0
      %p89 = por %p87, %p88
      %p90 = scmp.ne.s32.totalorder %s76, %s77
      %p91 = scmp.eq.s32.totalorder %s43, 1
      %p92 = por %p90, %p91
      %p94 = scmp.ne.s32.totalorder %s77, %s93
      %p95 = scmp.eq.s32.totalorder %s43, 0
      %p96 = por %p94, %p95
      %s97 = ssub.s32 %s37, %s44
      %p98 = scmp.eq.s32.totalorder %s97, 0
      %s100 = sadd.s32 %s99, 1
      %s101 = scalar_select %p98, %s99, %s100
      %p104 = pneg %p98
      %p105 = scmp.eq.s32.totalorder %s37, 1
      %p106 = por %p104, %p105
      %p107 = scmp.ne.s32.totalorder %s99, %s102
      %p108 = scmp.eq.s32.totalorder %s37, 0
      %p109 = por %p107, %p108
      %p110 = scmp.ne.s32.totalorder %s99, %s102
      %p111 = scmp.eq.s32.totalorder %s42, 1
      %p112 = por %p110, %p111
      %p113 = scmp.ne.s32.totalorder %s102, %s103
      %p114 = scmp.eq.s32.totalorder %s42, 0
      %p115 = por %p113, %p114
      %p116 = scmp.ne.s32.totalorder %s102, %s103
      %p117 = scmp.eq.s32.totalorder %s43, 1
      %p118 = por %p116, %p117
      %p120 = scmp.ne.s32.totalorder %s103, %s119
      %p121 = scmp.eq.s32.totalorder %s43, 0
      %p122 = por %p120, %p121
      %s123 = ssub.s32 %s37, %s44
      %p124 = scmp.eq.s32.totalorder %s123, 0
      %s126 = sadd.s32 %s125, 1
      %s127 = scalar_select %p124, %s125, %s126
      %p130 = pneg %p124
      %p131 = scmp.eq.s32.totalorder %s37, 1
      %p132 = por %p130, %p131
      %p133 = scmp.ne.s32.totalorder %s125, %s128
      %p134 = scmp.eq.s32.totalorder %s37, 0
      %p135 = por %p133, %p134
      %p136 = scmp.ne.s32.totalorder %s125, %s128
      %p137 = scmp.eq.s32.totalorder %s42, 1
      %p138 = por %p136, %p137
      %p139 = scmp.ne.s32.totalorder %s128, %s129
      %p140 = scmp.eq.s32.totalorder %s42, 0
      %p141 = por %p139, %p140
      %p142 = scmp.ne.s32.totalorder %s128, %s129
      %p143 = scmp.eq.s32.totalorder %s43, 1
      %p144 = por %p142, %p143
      %p146 = scmp.ne.s32.totalorder %s129, %s145
      %p147 = scmp.eq.s32.totalorder %s43, 0
      %p148 = por %p146, %p147
      %s150 = sadd.s32 %s149, 1
      %p153 = scmp.eq.s32.totalorder %s37, 1
      %p154 = scmp.ne.s32.totalorder %s149, %s151
      %p155 = scmp.eq.s32.totalorder %s37, 0
      %p156 = por %p154, %p155
      %p157 = scmp.ne.s32.totalorder %s149, %s151
      %p158 = scmp.eq.s32.totalorder %s42, 1
      %p159 = por %p157, %p158
      %p160 = scmp.ne.s32.totalorder %s151, %s152
      %p161 = scmp.eq.s32.totalorder %s42, 0
      %p162 = por %p160, %p161
      %p163 = scmp.ne.s32.totalorder %s151, %s152
      %p164 = scmp.eq.s32.totalorder %s43, 1
      %p165 = por %p163, %p164
      %p167 = scmp.ne.s32.totalorder %s152, %s166
      %p168 = scmp.eq.s32.totalorder %s43, 0
      %p169 = por %p167, %p168
      %s171 = sadd.s32 %s170, 1
      %p174 = scmp.eq.s32.totalorder %s37, 1
      %p175 = scmp.ne.s32.totalorder %s170, %s172
      %p176 = scmp.eq.s32.totalorder %s37, 0
      %p177 = por %p175, %p176
      %p178 = scmp.ne.s32.totalorder %s170, %s172
      %p179 = scmp.eq.s32.totalorder %s42, 1
      %p180 = por %p178, %p179
      %p181 = scmp.ne.s32.totalorder %s172, %s173
      %p182 = scmp.eq.s32.totalorder %s42, 0
      %p183 = por %p181, %p182
      %p184 = scmp.ne.s32.totalorder %s172, %s173
      %p185 = scmp.eq.s32.totalorder %s43, 1
      %p186 = por %p184, %p185
      %p188 = scmp.ne.s32.totalorder %s173, %s187
      %p189 = scmp.eq.s32.totalorder %s43, 0
      %p190 = por %p188, %p189
      %s192 = sadd.s32 %s191, 1
      %p195 = scmp.eq.s32.totalorder %s37, 1
      %p196 = scmp.ne.s32.totalorder %s191, %s193
      %p197 = scmp.eq.s32.totalorder %s37, 0
      %p198 = por %p196, %p197
      %p199 = scmp.ne.s32.totalorder %s191, %s193
      %p200 = scmp.eq.s32.totalorder %s42, 1
      %p201 = por %p199, %p200
      %p202 = scmp.ne.s32.totalorder %s193, %s194
      %p203 = scmp.eq.s32.totalorder %s42, 0
      %p204 = por %p202, %p203
      %p205 = scmp.ne.s32.totalorder %s193, %s194
      %p206 = scmp.eq.s32.totalorder %s43, 1
      %p207 = por %p205, %p206
      %p209 = scmp.ne.s32.totalorder %s194, %s208
      %p210 = scmp.eq.s32.totalorder %s43, 0
      %p211 = por %p209, %p210
      %s213 = sadd.s32 %s212, 1
      %p216 = scmp.eq.s32.totalorder %s37, 1
      %p217 = scmp.ne.s32.totalorder %s212, %s214
      %p218 = scmp.eq.s32.totalorder %s37, 0
      %p219 = por %p217, %p218
      %p220 = scmp.ne.s32.totalorder %s212, %s214
      %p221 = scmp.eq.s32.totalorder %s42, 1
      %p222 = por %p220, %p221
      %p223 = scmp.ne.s32.totalorder %s214, %s215
      %p224 = scmp.eq.s32.totalorder %s42, 0
      %p225 = por %p223, %p224
      %p226 = scmp.ne.s32.totalorder %s214, %s215
      %p227 = scmp.eq.s32.totalorder %s43, 1
      %p228 = por %p226, %p227
      %p230 = scmp.ne.s32.totalorder %s215, %s229
      %p231 = scmp.eq.s32.totalorder %s43, 0
      %p232 = por %p230, %p231
      %s234 = sadd.s32 %s233, 1
      %p237 = scmp.eq.s32.totalorder %s37, 1
      %p238 = scmp.ne.s32.totalorder %s233, %s235
      %p239 = scmp.eq.s32.totalorder %s37, 0
      %p240 = por %p238, %p239
      %p241 = scmp.ne.s32.totalorder %s233, %s235
      %p242 = scmp.eq.s32.totalorder %s42, 1
      %p243 = por %p241, %p242
      %p244 = scmp.ne.s32.totalorder %s235, %s236
      %p245 = scmp.eq.s32.totalorder %s42, 0
      %p246 = por %p244, %p245
      %p247 = scmp.ne.s32.totalorder %s235, %s236
      %p248 = scmp.eq.s32.totalorder %s43, 1
      %p249 = por %p247, %p248
      %p251 = scmp.ne.s32.totalorder %s236, %s250
      %p252 = scmp.eq.s32.totalorder %s43, 0
      %p253 = por %p251, %p252
      %s255 = sadd.s32 %s254, 1
      %p258 = scmp.eq.s32.totalorder %s37, 1
      %p259 = scmp.ne.s32.totalorder %s254, %s256
      %p260 = scmp.eq.s32.totalorder %s37, 0
      %p261 = por %p259, %p260
      %p262 = scmp.ne.s32.totalorder %s254, %s256
      %p263 = scmp.eq.s32.totalorder %s42, 1
      %p264 = por %p262, %p263
      %p265 = scmp.ne.s32.totalorder %s256, %s257
      %p266 = scmp.eq.s32.totalorder %s42, 0
      %p267 = por %p265, %p266
      %p268 = scmp.ne.s32.totalorder %s256, %s257
      %p269 = scmp.eq.s32.totalorder %s43, 1
      %p270 = por %p268, %p269
      %p272 = scmp.ne.s32.totalorder %s257, %s271
      %p273 = scmp.eq.s32.totalorder %s43, 0
      %p274 = por %p272, %p273
      %s276 = sadd.s32 %s275, 1
      %p279 = scmp.eq.s32.totalorder %s37, 1
      %p280 = scmp.ne.s32.totalorder %s275, %s277
      %p281 = scmp.eq.s32.totalorder %s37, 0
      %p282 = por %p280, %p281
      %p283 = scmp.ne.s32.totalorder %s275, %s277
      %p284 = scmp.eq.s32.totalorder %s42, 1
      %p285 = por %p283, %p284
      %p286 = scmp.ne.s32.totalorder %s277, %s278
      %p287 = scmp.eq.s32.totalorder %s42, 0
      %p288 = por %p286, %p287
      %p289 = scmp.ne.s32.totalorder %s277, %s278
      %p290 = scmp.eq.s32.totalorder %s43, 1
      %p291 = por %p289, %p290
      %p293 = scmp.ne.s32.totalorder %s278, %s292
      %p294 = scmp.eq.s32.totalorder %s43, 0
      %p295 = por %p293, %p294
      %s297 = sadd.s32 %s296, 1
      %p300 = scmp.eq.s32.totalorder %s37, 1
      %p301 = scmp.ne.s32.totalorder %s296, %s298
      %p302 = scmp.eq.s32.totalorder %s37, 0
      %p303 = por %p301, %p302
      %p304 = scmp.ne.s32.totalorder %s296, %s298
      %p305 = scmp.eq.s32.totalorder %s42, 1
      %p306 = por %p304, %p305
      %p307 = scmp.ne.s32.totalorder %s298, %s299
      %p308 = scmp.eq.s32.totalorder %s42, 0
      %p309 = por %p307, %p308
      %p310 = scmp.ne.s32.totalorder %s298, %s299
      %p311 = scmp.eq.s32.totalorder %s43, 1
      %p312 = por %p310, %p311
      %p314 = scmp.ne.s32.totalorder %s299, %s313
      %p315 = scmp.eq.s32.totalorder %s43, 0
      %p316 = por %p314, %p315
      %s318 = sadd.s32 %s317, 1
      %p321 = scmp.eq.s32.totalorder %s37, 1
      %p322 = scmp.ne.s32.totalorder %s317, %s319
      %p323 = scmp.eq.s32.totalorder %s37, 0
      %p324 = por %p322, %p323
      %p325 = scmp.ne.s32.totalorder %s317, %s319
      %p326 = scmp.eq.s32.totalorder %s42, 1
      %p327 = por %p325, %p326
      %p328 = scmp.ne.s32.totalorder %s319, %s320
      %p329 = scmp.eq.s32.totalorder %s42, 0
      %p330 = por %p328, %p329
      %p331 = scmp.ne.s32.totalorder %s319, %s320
      %p332 = scmp.eq.s32.totalorder %s43, 1
      %p333 = por %p331, %p332
      %p335 = scmp.ne.s32.totalorder %s320, %s334
      %p336 = scmp.eq.s32.totalorder %s43, 0
      %p337 = por %p335, %p336
      %s339 = sadd.s32 %s338, 1
      %p342 = scmp.eq.s32.totalorder %s37, 1
      %p343 = scmp.ne.s32.totalorder %s338, %s340
      %p344 = scmp.eq.s32.totalorder %s37, 0
      %p345 = por %p343, %p344
      %p346 = scmp.ne.s32.totalorder %s338, %s340
      %p347 = scmp.eq.s32.totalorder %s42, 1
      %p348 = por %p346, %p347
      %p349 = scmp.ne.s32.totalorder %s340, %s341
      %p350 = scmp.eq.s32.totalorder %s42, 0
      %p351 = por %p349, %p350
      %p352 = scmp.ne.s32.totalorder %s340, %s341
      %p353 = scmp.eq.s32.totalorder %s43, 1
      %p354 = por %p352, %p353
      %p356 = scmp.ne.s32.totalorder %s341, %s355
      %p357 = scmp.eq.s32.totalorder %s43, 0
      %p358 = por %p356, %p357
      %s360 = sadd.s32 %s359, 1
      %p363 = scmp.eq.s32.totalorder %s37, 1
      %p364 = scmp.ne.s32.totalorder %s359, %s361
      %p365 = scmp.eq.s32.totalorder %s37, 0
      %p366 = por %p364, %p365
      %p367 = scmp.ne.s32.totalorder %s359, %s361
      %p368 = scmp.eq.s32.totalorder %s42, 1
      %p369 = por %p367, %p368
      %p370 = scmp.ne.s32.totalorder %s361, %s362
      %p371 = scmp.eq.s32.totalorder %s42, 0
      %p372 = por %p370, %p371
      %p373 = scmp.ne.s32.totalorder %s361, %s362
      %p374 = scmp.eq.s32.totalorder %s43, 1
      %p375 = por %p373, %p374
      %p377 = scmp.ne.s32.totalorder %s362, %s376
      %p378 = scmp.eq.s32.totalorder %s43, 0
      %p379 = por %p377, %p378
      %s381 = sadd.s32 %s380, 1
      %p384 = scmp.eq.s32.totalorder %s37, 1
      %p385 = scmp.ne.s32.totalorder %s380, %s382
      %p386 = scmp.eq.s32.totalorder %s37, 0
      %p387 = por %p385, %p386
      %p388 = scmp.ne.s32.totalorder %s380, %s382
      %p389 = scmp.eq.s32.totalorder %s42, 1
      %p390 = por %p388, %p389
      %p391 = scmp.ne.s32.totalorder %s382, %s383
      %p392 = scmp.eq.s32.totalorder %s42, 0
      %p393 = por %p391, %p392
      %p394 = scmp.ne.s32.totalorder %s382, %s383
      %p395 = scmp.eq.s32.totalorder %s43, 1
      %p396 = por %p394, %p395
      %p398 = scmp.ne.s32.totalorder %s383, %s397
      %p399 = scmp.eq.s32.totalorder %s43, 0
      %p400 = por %p398, %p399
      %s402 = sadd.s32 %s401, 1
      %p405 = scmp.eq.s32.totalorder %s37, 1
      %p406 = scmp.ne.s32.totalorder %s401, %s403
      %p407 = scmp.eq.s32.totalorder %s37, 0
      %p408 = por %p406, %p407
      %p409 = scmp.ne.s32.totalorder %s401, %s403
      %p410 = scmp.eq.s32.totalorder %s42, 1
      %p411 = por %p409, %p410
      %p412 = scmp.ne.s32.totalorder %s403, %s404
      %p413 = scmp.eq.s32.totalorder %s42, 0
      %p414 = por %p412, %p413
      %p415 = scmp.ne.s32.totalorder %s403, %s404
      %p416 = scmp.eq.s32.totalorder %s43, 1
      %p417 = por %p415, %p416
      %p419 = scmp.ne.s32.totalorder %s404, %s418
      %p420 = scmp.eq.s32.totalorder %s43, 0
      %p421 = por %p419, %p420
      %s423 = sadd.s32 %s422, 1
      %p426 = scmp.eq.s32.totalorder %s37, 1
      %p427 = scmp.ne.s32.totalorder %s422, %s424
      %p428 = scmp.eq.s32.totalorder %s37, 0
      %p429 = por %p427, %p428
      %p430 = scmp.ne.s32.totalorder %s422, %s424
      %p431 = scmp.eq.s32.totalorder %s42, 1
      %p432 = por %p430, %p431
      %p433 = scmp.ne.s32.totalorder %s424, %s425
      %p434 = scmp.eq.s32.totalorder %s42, 0
      %p435 = por %p433, %p434
      %p436 = scmp.ne.s32.totalorder %s424, %s425
      %p437 = scmp.eq.s32.totalorder %s43, 1
      %p438 = por %p436, %p437
      %p440 = scmp.ne.s32.totalorder %s425, %s439
      %p441 = scmp.eq.s32.totalorder %s43, 0
      %p442 = por %p440, %p441
      %s444 = sadd.s32 %s443, 1
      %p447 = scmp.eq.s32.totalorder %s37, 1
      %p448 = scmp.ne.s32.totalorder %s443, %s445
      %p449 = scmp.eq.s32.totalorder %s37, 0
      %p450 = por %p448, %p449
      %p451 = scmp.ne.s32.totalorder %s443, %s445
      %p452 = scmp.eq.s32.totalorder %s42, 1
      %p453 = por %p451, %p452
      %p454 = scmp.ne.s32.totalorder %s445, %s446
      %p455 = scmp.eq.s32.totalorder %s42, 0
      %p456 = por %p454, %p455
      %p457 = scmp.ne.s32.totalorder %s445, %s446
      %p458 = scmp.eq.s32.totalorder %s43, 1
      %p459 = por %p457, %p458
      %p461 = scmp.ne.s32.totalorder %s446, %s460
      %p462 = scmp.eq.s32.totalorder %s43, 0
      %p463 = por %p461, %p462
      %s465 = sadd.s32 %s464, 1
      %p468 = scmp.eq.s32.totalorder %s37, 1
      %p469 = scmp.ne.s32.totalorder %s464, %s466
      %p470 = scmp.eq.s32.totalorder %s37, 0
      %p471 = por %p469, %p470
      %p472 = scmp.ne.s32.totalorder %s464, %s466
      %p473 = scmp.eq.s32.totalorder %s42, 1
      %p474 = por %p472, %p473
      %p475 = scmp.ne.s32.totalorder %s466, %s467
      %p476 = scmp.eq.s32.totalorder %s42, 0
      %p477 = por %p475, %p476
      %p478 = scmp.ne.s32.totalorder %s466, %s467
      %p479 = scmp.eq.s32.totalorder %s43, 1
      %p480 = por %p478, %p479
      %p482 = scmp.ne.s32.totalorder %s467, %s481
      %p483 = scmp.eq.s32.totalorder %s43, 0
      %p484 = por %p482, %p483
      %s486 = sadd.s32 %s485, 1
      %p489 = scmp.eq.s32.totalorder %s37, 1
      %p490 = scmp.ne.s32.totalorder %s485, %s487
      %p491 = scmp.eq.s32.totalorder %s37, 0
      %p492 = por %p490, %p491
      %p493 = scmp.ne.s32.totalorder %s485, %s487
      %p494 = scmp.eq.s32.totalorder %s42, 1
      %p495 = por %p493, %p494
      %p496 = scmp.ne.s32.totalorder %s487, %s488
      %p497 = scmp.eq.s32.totalorder %s42, 0
      %p498 = por %p496, %p497
      %p499 = scmp.ne.s32.totalorder %s487, %s488
      %p500 = scmp.eq.s32.totalorder %s43, 1
      %p501 = por %p499, %p500
      %p503 = scmp.ne.s32.totalorder %s488, %s502
      %p504 = scmp.eq.s32.totalorder %s43, 0
      %p505 = por %p503, %p504
      %s507 = sadd.s32 %s506, 1
      %p510 = scmp.eq.s32.totalorder %s37, 1
      %p511 = scmp.ne.s32.totalorder %s506, %s508
      %p512 = scmp.eq.s32.totalorder %s37, 0
      %p513 = por %p511, %p512
      %p514 = scmp.ne.s32.totalorder %s506, %s508
      %p515 = scmp.eq.s32.totalorder %s42, 1
      %p516 = por %p514, %p515
      %p517 = scmp.ne.s32.totalorder %s508, %s509
      %p518 = scmp.eq.s32.totalorder %s42, 0
      %p519 = por %p517, %p518
      %p520 = scmp.ne.s32.totalorder %s508, %s509
      %p521 = scmp.eq.s32.totalorder %s43, 1
      %p522 = por %p520, %p521
      %p524 = scmp.ne.s32.totalorder %s509, %s523
      %p525 = scmp.eq.s32.totalorder %s43, 0
      %p526 = por %p524, %p525
      %s527 = ssub.s32 %s37, %s44
      %p528 = scmp.eq.s32.totalorder %s527, 0
      %s530 = sadd.s32 %s529, 1
      %s531 = scalar_select %p528, %s529, %s530
      %p534 = pneg %p528
      %p535 = scmp.eq.s32.totalorder %s37, 1
      %p536 = por %p534, %p535
      %p537 = scmp.ne.s32.totalorder %s529, %s532
      %p538 = scmp.eq.s32.totalorder %s37, 0
      %p539 = por %p537, %p538
      %p540 = scmp.ne.s32.totalorder %s529, %s532
      %p541 = scmp.eq.s32.totalorder %s42, 1
      %p542 = por %p540, %p541
      %p543 = scmp.ne.s32.totalorder %s532, %s533
      %p544 = scmp.eq.s32.totalorder %s42, 0
      %p545 = por %p543, %p544
      %p546 = scmp.ne.s32.totalorder %s532, %s533
      %p547 = scmp.eq.s32.totalorder %s43, 1
      %p548 = por %p546, %p547
      %p550 = scmp.ne.s32.totalorder %s533, %s549
      %p551 = scmp.eq.s32.totalorder %s43, 0
      %p552 = por %p550, %p551
      %s553 = ssub.s32 %s37, %s44
      %p554 = scmp.eq.s32.totalorder %s553, 0
      %s556 = sadd.s32 %s555, 1
      %s557 = scalar_select %p554, %s555, %s556
      %p560 = pneg %p554
      %p561 = scmp.eq.s32.totalorder %s37, 1
      %p562 = por %p560, %p561
      %p563 = scmp.ne.s32.totalorder %s555, %s558
      %p564 = scmp.eq.s32.totalorder %s37, 0
      %p565 = por %p563, %p564
      %p566 = scmp.ne.s32.totalorder %s555, %s558
      %p567 = scmp.eq.s32.totalorder %s42, 1
      %p568 = por %p566, %p567
      %p569 = scmp.ne.s32.totalorder %s558, %s559
      %p570 = scmp.eq.s32.totalorder %s42, 0
      %p571 = por %p569, %p570
      %p572 = scmp.ne.s32.totalorder %s558, %s559
      %p573 = scmp.eq.s32.totalorder %s43, 1
      %p574 = por %p572, %p573
      %p576 = scmp.ne.s32.totalorder %s559, %s575
      %p577 = scmp.eq.s32.totalorder %s43, 0
      %p578 = por %p576, %p577
      %s579 = ssub.s32 %s37, %s44
      %p580 = scmp.eq.s32.totalorder %s579, 0
      %s582 = sadd.s32 %s581, 1
      %s583 = scalar_select %p580, %s581, %s582
      %p586 = pneg %p580
      %p587 = scmp.eq.s32.totalorder %s37, 1
      %p588 = por %p586, %p587
      %p589 = scmp.ne.s32.totalorder %s581, %s584
      %p590 = scmp.eq.s32.totalorder %s37, 0
      %p591 = por %p589, %p590
      %p592 = scmp.ne.s32.totalorder %s581, %s584
      %p593 = scmp.eq.s32.totalorder %s42, 1
      %p594 = por %p592, %p593
      %p595 = scmp.ne.s32.totalorder %s584, %s585
      %p596 = scmp.eq.s32.totalorder %s42, 0
      %p597 = por %p595, %p596
      %p598 = scmp.ne.s32.totalorder %s584, %s585
      %p599 = scmp.eq.s32.totalorder %s43, 1
      %p600 = por %p598, %p599
      %p602 = scmp.ne.s32.totalorder %s585, %s601
      %p603 = scmp.eq.s32.totalorder %s43, 0
      %p604 = por %p602, %p603
      %p605 = scmp.le.s32.totalorder 1, %s37
      %p606 = scmp.lt.s32.totalorder %s37, 3
      %p607 = pnand %p605, %p606
      %p608 = pneg %p607
      // Predicated region
      $region9: #{tpu_custom_call.1} parent=5 // pred_check
        _
      $region10: #{tpu_custom_call.1} parent=5 // pred_check_branch
        %610 = sbr.rel (%p607) target = $region12
      $region11: #{tpu_custom_call.1} parent=5 // pred_region
        %s611 = ssub.s32 %s37, 1
        // Predicated region
        $region13: #{tpu_custom_call.1} parent=11 // pred_check
          %p612 = pneg %p162
        $region14: #{tpu_custom_call.1} parent=11 // pred_check_branch
          %614 = sbr.rel (%p612) target = $region16
        $region15: #{tpu_custom_call.1} parent=11 // pred_region
          _
        $region16: #{tpu_custom_call.1} parent=11 // pred_fallthru
          _
        // Predicated region
        $region17: #{tpu_custom_call.1} parent=11 // pred_check
          %p615 = pneg %p183
        $region18: #{tpu_custom_call.1} parent=11 // pred_check_branch
          %617 = sbr.rel (%p615) target = $region20
        $region19: #{tpu_custom_call.1} parent=11 // pred_region
          _
        $region20: #{tpu_custom_call.1} parent=11 // pred_fallthru
          _
        // Predicated region
        $region21: #{tpu_custom_call.1} parent=11 // pred_check
          %p618 = pneg %p204
        $region22: #{tpu_custom_call.1} parent=11 // pred_check_branch
          %620 = sbr.rel (%p618) target = $region24
        $region23: #{tpu_custom_call.1} parent=11 // pred_region
          _
        $region24: #{tpu_custom_call.1} parent=11 // pred_fallthru
          _
        // Predicated region
        $region25: #{tpu_custom_call.1} parent=11 // pred_check
          %p621 = pneg %p225
        $region26: #{tpu_custom_call.1} parent=11 // pred_check_branch
          %623 = sbr.rel (%p621) target = $region28
        $region27: #{tpu_custom_call.1} parent=11 // pred_region
          _
        $region28: #{tpu_custom_call.1} parent=11 // pred_fallthru
          _
        // Predicated region
        $region29: #{tpu_custom_call.1} parent=11 // pred_check
          %p624 = pneg %p246
        $region30: #{tpu_custom_call.1} parent=11 // pred_check_branch
          %626 = sbr.rel (%p624) target = $region32
        $region31: #{tpu_custom_call.1} parent=11 // pred_region
          _
        $region32: #{tpu_custom_call.1} parent=11 // pred_fallthru
          _
        // Predicated region
        $region33: #{tpu_custom_call.1} parent=11 // pred_check
          %p627 = pneg %p267
        $region34: #{tpu_custom_call.1} parent=11 // pred_check_branch
          %629 = sbr.rel (%p627) target = $region36
        $region35: #{tpu_custom_call.1} parent=11 // pred_region
          _
        $region36: #{tpu_custom_call.1} parent=11 // pred_fallthru
          _
        // Predicated region
        $region37: #{tpu_custom_call.1} parent=11 // pred_check
          %p630 = pneg %p288
        $region38: #{tpu_custom_call.1} parent=11 // pred_check_branch
          %632 = sbr.rel (%p630) target = $region40
        $region39: #{tpu_custom_call.1} parent=11 // pred_region
          _
        $region40: #{tpu_custom_call.1} parent=11 // pred_fallthru
          _
        // Predicated region
        $region41: #{tpu_custom_call.1} parent=11 // pred_check
          %p633 = pneg %p309
        $region42: #{tpu_custom_call.1} parent=11 // pred_check_branch
          %635 = sbr.rel (%p633) target = $region44
        $region43: #{tpu_custom_call.1} parent=11 // pred_region
          _
        $region44: #{tpu_custom_call.1} parent=11 // pred_fallthru
          _
        // Predicated region
        $region45: #{tpu_custom_call.1} parent=11 // pred_check
          %p636 = pneg %p330
        $region46: #{tpu_custom_call.1} parent=11 // pred_check_branch
          %638 = sbr.rel (%p636) target = $region48
        $region47: #{tpu_custom_call.1} parent=11 // pred_region
          _
        $region48: #{tpu_custom_call.1} parent=11 // pred_fallthru
          _
        // Predicated region
        $region49: #{tpu_custom_call.1} parent=11 // pred_check
          %p639 = pneg %p351
        $region50: #{tpu_custom_call.1} parent=11 // pred_check_branch
          %641 = sbr.rel (%p639) target = $region52
        $region51: #{tpu_custom_call.1} parent=11 // pred_region
          _
        $region52: #{tpu_custom_call.1} parent=11 // pred_fallthru
          _
        // Predicated region
        $region53: #{tpu_custom_call.1} parent=11 // pred_check
          %p642 = pneg %p372
        $region54: #{tpu_custom_call.1} parent=11 // pred_check_branch
          %644 = sbr.rel (%p642) target = $region56
        $region55: #{tpu_custom_call.1} parent=11 // pred_region
          _
        $region56: #{tpu_custom_call.1} parent=11 // pred_fallthru
          _
        // Predicated region
        $region57: #{tpu_custom_call.1} parent=11 // pred_check
          %p645 = pneg %p393
        $region58: #{tpu_custom_call.1} parent=11 // pred_check_branch
          %647 = sbr.rel (%p645) target = $region60
        $region59: #{tpu_custom_call.1} parent=11 // pred_region
          _
        $region60: #{tpu_custom_call.1} parent=11 // pred_fallthru
          _
        // Predicated region
        $region61: #{tpu_custom_call.1} parent=11 // pred_check
          %p648 = pneg %p414
        $region62: #{tpu_custom_call.1} parent=11 // pred_check_branch
          %650 = sbr.rel (%p648) target = $region64
        $region63: #{tpu_custom_call.1} parent=11 // pred_region
          _
        $region64: #{tpu_custom_call.1} parent=11 // pred_fallthru
          _
        // Predicated region
        $region65: #{tpu_custom_call.1} parent=11 // pred_check
          %p651 = pneg %p435
        $region66: #{tpu_custom_call.1} parent=11 // pred_check_branch
          %653 = sbr.rel (%p651) target = $region68
        $region67: #{tpu_custom_call.1} parent=11 // pred_region
          _
        $region68: #{tpu_custom_call.1} parent=11 // pred_fallthru
          _
        // Predicated region
        $region69: #{tpu_custom_call.1} parent=11 // pred_check
          %p654 = pneg %p456
        $region70: #{tpu_custom_call.1} parent=11 // pred_check_branch
          %656 = sbr.rel (%p654) target = $region72
        $region71: #{tpu_custom_call.1} parent=11 // pred_region
          _
        $region72: #{tpu_custom_call.1} parent=11 // pred_fallthru
          _
        // Predicated region
        $region73: #{tpu_custom_call.1} parent=11 // pred_check
          %p657 = pneg %p477
        $region74: #{tpu_custom_call.1} parent=11 // pred_check_branch
          %659 = sbr.rel (%p657) target = $region76
        $region75: #{tpu_custom_call.1} parent=11 // pred_region
          _
        $region76: #{tpu_custom_call.1} parent=11 // pred_fallthru
          _
        // Predicated region
        $region77: #{tpu_custom_call.1} parent=11 // pred_check
          %p660 = pneg %p498
        $region78: #{tpu_custom_call.1} parent=11 // pred_check_branch
          %662 = sbr.rel (%p660) target = $region80
        $region79: #{tpu_custom_call.1} parent=11 // pred_region
          _
        $region80: #{tpu_custom_call.1} parent=11 // pred_fallthru
          _
        // Predicated region
        $region81: #{tpu_custom_call.1} parent=11 // pred_check
          %p663 = pneg %p519
        $region82: #{tpu_custom_call.1} parent=11 // pred_check_branch
          %665 = sbr.rel (%p663) target = $region84
        $region83: #{tpu_custom_call.1} parent=11 // pred_region
          _
        $region84: #{tpu_custom_call.1} parent=11 // pred_fallthru
          _
      $region12: #{tpu_custom_call.1} parent=5 // pred_fallthru
        _
      %p666 = scmp.lt.s32.totalorder %s37, 2
      // Predicated region
      $region85: #{tpu_custom_call.1} parent=5 // pred_check
        %p667 = pneg %p666
      $region86: #{tpu_custom_call.1} parent=5 // pred_check_branch
        %669 = sbr.rel (%p667) target = $region88
      $region87: #{tpu_custom_call.1} parent=5 // pred_region
        // Predicated region
        $region89: #{tpu_custom_call.1} parent=87 // pred_check
          %p670 = pneg %p57
        $region90: #{tpu_custom_call.1} parent=87 // pred_check_branch
          %672 = sbr.rel (%p670) target = $region92
        $region91: #{tpu_custom_call.1} parent=87 // pred_region
          %p673 = scmp.lt.s32.totalorder %s37, 1
          %s674 = scalar_select %p673, %s37, 1
          %s675 = smul.addr %s674, 8
          %s676 = scalar_lea.vmem %s0, %s675
        $region92: #{tpu_custom_call.1} parent=87 // pred_fallthru
          _
        // Predicated region
        $region93: #{tpu_custom_call.1} parent=87 // pred_check
          %p677 = pneg %p83
        $region94: #{tpu_custom_call.1} parent=87 // pred_check_branch
          %679 = sbr.rel (%p677) target = $region96
        $region95: #{tpu_custom_call.1} parent=87 // pred_region
          %p680 = scmp.lt.s32.totalorder %s37, 1
          %s681 = scalar_select %p680, %s37, 1
          %s682 = smul.addr %s681, 8
          %s683 = scalar_lea.vmem %s1, %s682
        $region96: #{tpu_custom_call.1} parent=87 // pred_fallthru
          _
        // Predicated region
        $region97: #{tpu_custom_call.1} parent=87 // pred_check
          %p684 = pneg %p109
        $region98: #{tpu_custom_call.1} parent=87 // pred_check_branch
          %686 = sbr.rel (%p684) target = $region100
        $region99: #{tpu_custom_call.1} parent=87 // pred_region
          %p687 = scmp.lt.s32.totalorder %s37, 1
          %s688 = scalar_select %p687, %s37, 1
          %s689 = smul.addr %s688, 8
          %s690 = scalar_lea.vmem %s2, %s689
        $region100: #{tpu_custom_call.1} parent=87 // pred_fallthru
          _
        // Predicated region
        $region101: #{tpu_custom_call.1} parent=87 // pred_check
          %p691 = pneg %p135
        $region102: #{tpu_custom_call.1} parent=87 // pred_check_branch
          %693 = sbr.rel (%p691) target = $region104
        $region103: #{tpu_custom_call.1} parent=87 // pred_region
          %p694 = scmp.lt.s32.totalorder %s37, 1
          %s695 = scalar_select %p694, %s37, 1
          %s696 = smul.addr %s695, 8
          %s697 = scalar_lea.vmem %s3, %s696
        $region104: #{tpu_custom_call.1} parent=87 // pred_fallthru
          _
      $region88: #{tpu_custom_call.1} parent=5 // pred_fallthru
        _
      %p698 = scmp.le.s32.totalorder 1, %s37
      %p699 = scmp.lt.s32.totalorder %s37, 3
      %p700 = pnand %p698, %p699
      %p701 = pneg %p700
      // Predicated region
      $region105: #{tpu_custom_call.1} parent=5 // pred_check
        _
      $region106: #{tpu_custom_call.1} parent=5 // pred_check_branch
        %703 = sbr.rel (%p700) target = $region108
      $region107: #{tpu_custom_call.1} parent=5 // pred_region
        %s704 = ssub.s32 %s37, 1
        %p705 = scmp.lt.s32.totalorder %s42, 1
        %s706 = scalar_select %p705, %s42, 1
        %s707 = smul.addr %s706, 8
        %s708 = scalar_lea.vmem %s0, %s707
        %p709 = pneg %p63
        %p710 = pneg %p60
        %p711 = scmp.lt.s32.totalorder %s42, 1
        %s712 = scalar_select %p711, %s42, 1
        %s713 = smul.addr %s712, 8
        %s714 = scalar_lea.vmem %s1, %s713
        %p715 = pneg %p89
        %p716 = pneg %p86
        %p717 = scmp.lt.s32.totalorder %s42, 1
        %s718 = scalar_select %p717, %s42, 1
        %s719 = smul.addr %s718, 8
        %s720 = scalar_lea.vmem %s2, %s719
        %p721 = pneg %p115
        %p722 = pneg %p112
        %p723 = scmp.lt.s32.totalorder %s42, 1
        %s724 = scalar_select %p723, %s42, 1
        %s725 = smul.addr %s724, 8
        %s726 = scalar_lea.vmem %s3, %s725
        %p727 = pneg %p141
        %p728 = pneg %p138
        %p729 = pneg %p162
        %p730 = pneg %p159
        %p731 = pneg %p183
        %p732 = pneg %p180
        %p733 = pneg %p204
        %p734 = pneg %p201
        %p735 = pneg %p225
        %p736 = pneg %p222
        %p737 = pneg %p246
        %p738 = pneg %p243
        %p739 = pneg %p267
        %p740 = pneg %p264
        %p741 = pneg %p288
        %p742 = pneg %p285
        %p743 = pneg %p309
        %p744 = pneg %p306
        %p745 = pneg %p330
        %p746 = pneg %p327
        %p747 = pneg %p351
        %p748 = pneg %p348
        %p749 = pneg %p372
        %p750 = pneg %p369
        %p751 = pneg %p393
        %p752 = pneg %p390
        %p753 = pneg %p414
        %p754 = pneg %p411
        %p755 = pneg %p435
        %p756 = pneg %p432
        %p757 = pneg %p456
        %p758 = pneg %p453
        %p759 = pneg %p477
        %p760 = pneg %p474
        %p761 = pneg %p498
        %p762 = pneg %p495
        %p763 = pneg %p519
        %p764 = pneg %p516
        %p765 = pneg %p545
        %p766 = pneg %p542
        %s767 = sand.u32 %s532, 1
        %s768 = scalar_lea.sflag [#allocation3], %s767
        %s769 = sand.u32 %s532, 1
        %s770 = smul.addr %s769, 8
        %s771 = scalar_lea.vmem [#allocation2], %s770
        %p772 = pneg %p571
        %p773 = pneg %p568
        %s774 = sand.u32 %s42, 1
        %s775 = scalar_lea.sflag [#allocation5], %s774
        %s776 = sand.u32 %s558, 1
        %s777 = smul.addr %s776, 8
        %s778 = scalar_lea.vmem [#allocation4], %s777
        %p779 = pneg %p597
        %p780 = pneg %p594
        %s781 = sand.u32 %s42, 1
        %s782 = scalar_lea.sflag [#allocation5], %s781
        %s783 = sand.u32 %s584, 1
        %s784 = smul.addr %s783, 8
        %s785 = scalar_lea.vmem [#allocation6], %s784
        %p786 = scmp.lt.s32.totalorder %s42, 1
        %s787 = scalar_select %p786, %s42, 1
        %s788 = smul.addr %s787, 8
        %s789 = scalar_lea.vmem %s0, %s788
        %p790 = scmp.lt.s32.totalorder %s42, 1
        %s791 = scalar_select %p790, %s42, 1
        %s792 = smul.addr %s791, 8
        %s793 = scalar_lea.vmem %s1, %s792
        %p794 = scmp.lt.s32.totalorder %s42, 1
        %s795 = scalar_select %p794, %s42, 1
        %s796 = smul.addr %s795, 8
        %s797 = scalar_lea.vmem %s2, %s796
        %p798 = scmp.lt.s32.totalorder %s42, 1
        %s799 = scalar_select %p798, %s42, 1
        %s800 = smul.addr %s799, 8
        %s801 = scalar_lea.vmem %s3, %s800
        %v802 = vld [vmem:[%s789] sm:$0xff]
        %v803 = vld [vmem:[%s793] sm:$0xff]
        %v804 = vld [vmem:[%s797] sm:$0xff]
        %v805 = vld [vmem:[%s801] sm:$0xff]
        %v806 = vld [vmem:[%s4] sm:$0xff]
        %v807 = vld [vmem:[%s4 + $0x8] sm:$0xff]
        %v808 = vld [vmem:[%s4 + $0x10] sm:$0xff]
        %v809 = vld [vmem:[%s4 + $0x18] sm:$0xff]
        %vm810 = vcmask 261120
        %v812 = vsel %vm810, %v802, 0
        %814 = vmatprep.subr.mxu0 0.0
        %815 = vmatpush1.msra.mxu0 0.0
        %816 = vmatprep.subr.mxu0 0.0
        %817 = vmatpush1.msra.mxu0 0.0
        %818 = vmatprep.subr.mxu0 0.0
        %819 = vmatpush1.msra.mxu0 0.0
        %820 = vmatprep.subr.mxu0 0.0
        %821 = vmatpush1.msra.mxu0 0.0
        %822 = vmatprep.subr.mxu0 0.0
        %823 = vmatpush1.msra.mxu0 0.0
        %824 = vmatprep.subr.mxu0 0.0
        %825 = vmatpush1.msra.mxu0 0.0
        %826 = vmatprep.subr.mxu0 0.0
        %827 = vmatpush1.msra.mxu0 0.0
        %828 = vmatprep.subr.mxu0 0.0
        %829 = vmatpush1.msra.mxu0 0.0
        %830 = vmatprep.subr.mxu0 0.0
        %831 = vmatpush1.msra.mxu0 0.0
        %832 = vmatprep.subr.mxu0 0.0
        %833 = vmatpush1.msra.mxu0 0.0
        %834 = vmatprep.subr.mxu0 0.0
        %835 = vmatpush1.msra.mxu0 0.0
        %836 = vmatprep.subr.mxu0 0.0
        %837 = vmatpush1.msra.mxu0 0.0
        %838 = vmatprep.subr.mxu0 0.0
        %839 = vmatpush1.msra.mxu0 %v809
        %840 = vmatprep.subr.mxu0 0.0
        %841 = vmatpush1.msra.mxu0 %v808
        %842 = vmatprep.subr.mxu0 0.0
        %843 = vmatpush1.msra.mxu0 %v807
        %844 = vmatprep.subr.mxu0 0.0
        %845 = vmatpush1.msra.mxu0 %v806
        %846 = vmatprep.subr.mxu0 0.0
        %847 = vmatpush2.msra.mxu0 0.0
        %848 = vmatprep.subr.mxu0 0.0
        %849 = vmatpush2.msra.mxu0 0.0
        %850 = vmatprep.subr.mxu0 0.0
        %851 = vmatpush2.msra.mxu0 0.0
        %852 = vmatprep.subr.mxu0 0.0
        %853 = vmatpush2.msra.mxu0 0.0
        %854 = vmatprep.subr.mxu0 0.0
        %855 = vmatpush2.msra.mxu0 0.0
        %856 = vmatprep.subr.mxu0 0.0
        %857 = vmatpush2.msra.mxu0 0.0
        %858 = vmatprep.subr.mxu0 0.0
        %859 = vmatpush2.msra.mxu0 0.0
        %860 = vmatprep.subr.mxu0 0.0
        %861 = vmatpush2.msra.mxu0 0.0
        %862 = vmatprep.subr.mxu0 0.0
        %863 = vmatpush2.msra.mxu0 0.0
        %864 = vmatprep.subr.mxu0 0.0
        %865 = vmatpush2.msra.mxu0 0.0
        %866 = vmatprep.subr.mxu0 0.0
        %867 = vmatpush2.msra.mxu0 0.0
        %868 = vmatprep.subr.mxu0 0.0
        %869 = vmatpush2.msra.mxu0 0.0
        %870 = vmatprep.subr.mxu0 0.0
        %871 = vmatpush2.msra.mxu0 0.0
        %872 = vmatprep.subr.mxu0 0.0
        %873 = vmatpush2.msra.mxu0 0.0
        %874 = vmatprep.subr.mxu0 0.0
        %875 = vmatpush2.msra.mxu0 0.0
        %876 = vmatprep.subr.mxu0 0.0
        %877 = vmatpush2.msra.mxu0 0.0
        %878 = vmatprep.mubr.f32.mxu0 0.0
        %879 = vmatmul.mubr.f32.gmra.mxu0 %v812
        %v880 = vpop.f32.mrf.mxu0
        %v881 = vadd.f32 0.0, %v880
        %v882 = vpop.f32.mrf.mxu0
        %883 = vdwg.mxu0
        %v884 = vld [vmem:[%s5] sm:$0xff]
        %v885 = vld [vmem:[%s5 + $0x8] sm:$0xff]
        %v886 = vld [vmem:[%s5 + $0x10] sm:$0xff]
        %v887 = vld [vmem:[%s5 + $0x18] sm:$0xff]
        %888 = vmatprep.subr.mxu0 0.0
        %889 = vmatpush1.msra.mxu0 0.0
        %890 = vmatprep.subr.mxu0 0.0
        %891 = vmatpush1.msra.mxu0 0.0
        %892 = vmatprep.subr.mxu0 0.0
        %893 = vmatpush1.msra.mxu0 0.0
        %894 = vmatprep.subr.mxu0 0.0
        %895 = vmatpush1.msra.mxu0 0.0
        %896 = vmatprep.subr.mxu0 0.0
        %897 = vmatpush1.msra.mxu0 0.0
        %898 = vmatprep.subr.mxu0 0.0
        %899 = vmatpush1.msra.mxu0 0.0
        %900 = vmatprep.subr.mxu0 0.0
        %901 = vmatpush1.msra.mxu0 0.0
        %902 = vmatprep.subr.mxu0 0.0
        %903 = vmatpush1.msra.mxu0 0.0
        %904 = vmatprep.subr.mxu0 0.0
        %905 = vmatpush1.msra.mxu0 0.0
        %906 = vmatprep.subr.mxu0 0.0
        %907 = vmatpush1.msra.mxu0 0.0
        %908 = vmatprep.subr.mxu0 0.0
        %909 = vmatpush1.msra.mxu0 0.0
        %910 = vmatprep.subr.mxu0 0.0
        %911 = vmatpush1.msra.mxu0 0.0
        %912 = vmatprep.subr.mxu0 0.0
        %913 = vmatpush1.msra.mxu0 %v887
        %914 = vmatprep.subr.mxu0 0.0
        %915 = vmatpush1.msra.mxu0 %v886
        %916 = vmatprep.subr.mxu0 0.0
        %917 = vmatpush1.msra.mxu0 %v885
        %918 = vmatprep.subr.mxu0 0.0
        %919 = vmatpush1.msra.mxu0 %v884
        %920 = vmatprep.subr.mxu0 0.0
        %921 = vmatpush2.msra.mxu0 0.0
        %922 = vmatprep.subr.mxu0 0.0
        %923 = vmatpush2.msra.mxu0 0.0
        %924 = vmatprep.subr.mxu0 0.0
        %925 = vmatpush2.msra.mxu0 0.0
        %926 = vmatprep.subr.mxu0 0.0
        %927 = vmatpush2.msra.mxu0 0.0
        %928 = vmatprep.subr.mxu0 0.0
        %929 = vmatpush2.msra.mxu0 0.0
        %930 = vmatprep.subr.mxu0 0.0
        %931 = vmatpush2.msra.mxu0 0.0
        %932 = vmatprep.subr.mxu0 0.0
        %933 = vmatpush2.msra.mxu0 0.0
        %934 = vmatprep.subr.mxu0 0.0
        %935 = vmatpush2.msra.mxu0 0.0
        %936 = vmatprep.subr.mxu0 0.0
        %937 = vmatpush2.msra.mxu0 0.0
        %938 = vmatprep.subr.mxu0 0.0
        %939 = vmatpush2.msra.mxu0 0.0
        %940 = vmatprep.subr.mxu0 0.0
        %941 = vmatpush2.msra.mxu0 0.0
        %942 = vmatprep.subr.mxu0 0.0
        %943 = vmatpush2.msra.mxu0 0.0
        %944 = vmatprep.subr.mxu0 0.0
        %945 = vmatpush2.msra.mxu0 0.0
        %946 = vmatprep.subr.mxu0 0.0
        %947 = vmatpush2.msra.mxu0 0.0
        %948 = vmatprep.subr.mxu0 0.0
        %949 = vmatpush2.msra.mxu0 0.0
        %950 = vmatprep.subr.mxu0 0.0
        %951 = vmatpush2.msra.mxu0 0.0
        %952 = vmatprep.mubr.f32.mxu0 0.0
        %953 = vmatmul.mubr.f32.gmra.mxu0 %v812
        %v954 = vpop.f32.mrf.mxu0
        %v955 = vadd.f32 0.0, %v954
        %v956 = vpop.f32.mrf.mxu0
        %957 = vdwg.mxu0
        %v958 = vld [vmem:[%s6] sm:$0xff]
        %v959 = vld [vmem:[%s6 + $0x8] sm:$0xff]
        %v960 = vld [vmem:[%s6 + $0x10] sm:$0xff]
        %v961 = vld [vmem:[%s6 + $0x18] sm:$0xff]
        %962 = vmatprep.subr.mxu0 0.0
        %963 = vmatpush1.msra.mxu0 0.0
        %964 = vmatprep.subr.mxu0 0.0
        %965 = vmatpush1.msra.mxu0 0.0
        %966 = vmatprep.subr.mxu0 0.0
        %967 = vmatpush1.msra.mxu0 0.0
        %968 = vmatprep.subr.mxu0 0.0
        %969 = vmatpush1.msra.mxu0 0.0
        %970 = vmatprep.subr.mxu0 0.0
        %971 = vmatpush1.msra.mxu0 0.0
        %972 = vmatprep.subr.mxu0 0.0
        %973 = vmatpush1.msra.mxu0 0.0
        %974 = vmatprep.subr.mxu0 0.0
        %975 = vmatpush1.msra.mxu0 0.0
        %976 = vmatprep.subr.mxu0 0.0
        %977 = vmatpush1.msra.mxu0 0.0
        %978 = vmatprep.subr.mxu0 0.0
        %979 = vmatpush1.msra.mxu0 0.0
        %980 = vmatprep.subr.mxu0 0.0
        %981 = vmatpush1.msra.mxu0 0.0
        %982 = vmatprep.subr.mxu0 0.0
        %983 = vmatpush1.msra.mxu0 0.0
        %984 = vmatprep.subr.mxu0 0.0
        %985 = vmatpush1.msra.mxu0 0.0
        %986 = vmatprep.subr.mxu0 0.0
        %987 = vmatpush1.msra.mxu0 %v961
        %988 = vmatprep.subr.mxu0 0.0
        %989 = vmatpush1.msra.mxu0 %v960
        %990 = vmatprep.subr.mxu0 0.0
        %991 = vmatpush1.msra.mxu0 %v959
        %992 = vmatprep.subr.mxu0 0.0
        %993 = vmatpush1.msra.mxu0 %v958
        %994 = vmatprep.subr.mxu0 0.0
        %995 = vmatpush2.msra.mxu0 0.0
        %996 = vmatprep.subr.mxu0 0.0
        %997 = vmatpush2.msra.mxu0 0.0
        %998 = vmatprep.subr.mxu0 0.0
        %999 = vmatpush2.msra.mxu0 0.0
        %1000 = vmatprep.subr.mxu0 0.0
        %1001 = vmatpush2.msra.mxu0 0.0
        %1002 = vmatprep.subr.mxu0 0.0
        %1003 = vmatpush2.msra.mxu0 0.0
        %1004 = vmatprep.subr.mxu0 0.0
        %1005 = vmatpush2.msra.mxu0 0.0
        %1006 = vmatprep.subr.mxu0 0.0
        %1007 = vmatpush2.msra.mxu0 0.0
        %1008 = vmatprep.subr.mxu0 0.0
        %1009 = vmatpush2.msra.mxu0 0.0
        %1010 = vmatprep.subr.mxu0 0.0
        %1011 = vmatpush2.msra.mxu0 0.0
        %1012 = vmatprep.subr.mxu0 0.0
        %1013 = vmatpush2.msra.mxu0 0.0
        %1014 = vmatprep.subr.mxu0 0.0
        %1015 = vmatpush2.msra.mxu0 0.0
        %1016 = vmatprep.subr.mxu0 0.0
        %1017 = vmatpush2.msra.mxu0 0.0
        %1018 = vmatprep.subr.mxu0 0.0
        %1019 = vmatpush2.msra.mxu0 0.0
        %1020 = vmatprep.subr.mxu0 0.0
        %1021 = vmatpush2.msra.mxu0 0.0
        %1022 = vmatprep.subr.mxu0 0.0
        %1023 = vmatpush2.msra.mxu0 0.0
        %1024 = vmatprep.subr.mxu0 0.0
        %1025 = vmatpush2.msra.mxu0 0.0
        %1026 = vmatprep.mubr.f32.mxu0 0.0
        %1027 = vmatmul.mubr.f32.gmra.mxu0 %v812
        %v1028 = vpop.f32.mrf.mxu0
        %v1029 = vadd.f32 0.0, %v1028
        %v1030 = vpop.f32.mrf.mxu0
        %1031 = vdwg.mxu0
        %vm1032 = vcmask 64512
        %v1034 = vsel %vm1032, %v881, 0
        %v1037 = vsel %vm1032, %v955, 0
        %1039 = vmatprep.subr.mxu0 0.0
        %1040 = vmatpush1.xpose.msra.mxu0 0.0
        %1041 = vmatprep.subr.mxu0 0.0
        %1042 = vmatpush1.xpose.msra.mxu0 0.0
        %1043 = vmatprep.subr.mxu0 0.0
        %1044 = vmatpush1.xpose.msra.mxu0 0.0
        %1045 = vmatprep.subr.mxu0 0.0
        %1046 = vmatpush1.xpose.msra.mxu0 0.0
        %1047 = vmatprep.subr.mxu0 0.0
        %1048 = vmatpush1.xpose.msra.mxu0 0.0
        %1049 = vmatprep.subr.mxu0 0.0
        %1050 = vmatpush1.xpose.msra.mxu0 0.0
        %1051 = vmatprep.subr.mxu0 0.0
        %1052 = vmatpush1.xpose.msra.mxu0 0.0
        %1053 = vmatprep.subr.mxu0 0.0
        %1054 = vmatpush1.xpose.msra.mxu0 0.0
        %1055 = vmatprep.subr.mxu0 0.0
        %1056 = vmatpush1.xpose.msra.mxu0 0.0
        %1057 = vmatprep.subr.mxu0 0.0
        %1058 = vmatpush1.xpose.msra.mxu0 0.0
        %1059 = vmatprep.subr.mxu0 0.0
        %1060 = vmatpush1.xpose.msra.mxu0 0.0
        %1061 = vmatprep.subr.mxu0 0.0
        %1062 = vmatpush1.xpose.msra.mxu0 0.0
        %1063 = vmatprep.subr.mxu0 0.0
        %1064 = vmatpush1.xpose.msra.mxu0 0.0
        %1065 = vmatprep.subr.mxu0 0.0
        %1066 = vmatpush1.xpose.msra.mxu0 0.0
        %1067 = vmatprep.subr.mxu0 0.0
        %1068 = vmatpush1.xpose.msra.mxu0 0.0
        %1069 = vmatprep.subr.mxu0 0.0
        %1070 = vmatpush1.xpose.msra.mxu0 %v1037
        %1071 = vmatprep.subr.mxu0 0.0
        %1072 = vmatpush2.xpose.msra.mxu0 0.0
        %1073 = vmatprep.subr.mxu0 0.0
        %1074 = vmatpush2.xpose.msra.mxu0 0.0
        %1075 = vmatprep.subr.mxu0 0.0
        %1076 = vmatpush2.xpose.msra.mxu0 0.0
        %1077 = vmatprep.subr.mxu0 0.0
        %1078 = vmatpush2.xpose.msra.mxu0 0.0
        %1079 = vmatprep.subr.mxu0 0.0
        %1080 = vmatpush2.xpose.msra.mxu0 0.0
        %1081 = vmatprep.subr.mxu0 0.0
        %1082 = vmatpush2.xpose.msra.mxu0 0.0
        %1083 = vmatprep.subr.mxu0 0.0
        %1084 = vmatpush2.xpose.msra.mxu0 0.0
        %1085 = vmatprep.subr.mxu0 0.0
        %1086 = vmatpush2.xpose.msra.mxu0 0.0
        %1087 = vmatprep.subr.mxu0 0.0
        %1088 = vmatpush2.xpose.msra.mxu0 0.0
        %1089 = vmatprep.subr.mxu0 0.0
        %1090 = vmatpush2.xpose.msra.mxu0 0.0
        %1091 = vmatprep.subr.mxu0 0.0
        %1092 = vmatpush2.xpose.msra.mxu0 0.0
        %1093 = vmatprep.subr.mxu0 0.0
        %1094 = vmatpush2.xpose.msra.mxu0 0.0
        %1095 = vmatprep.subr.mxu0 0.0
        %1096 = vmatpush2.xpose.msra.mxu0 0.0
        %1097 = vmatprep.subr.mxu0 0.0
        %1098 = vmatpush2.xpose.msra.mxu0 0.0
        %1099 = vmatprep.subr.mxu0 0.0
        %1100 = vmatpush2.xpose.msra.mxu0 0.0
        %1101 = vmatprep.subr.mxu0 0.0
        %1102 = vmatpush2.xpose.msra.mxu0 0.0
        %1103 = vmatprep.mubr.f32.mxu0 0.0
        %1104 = vmatmul.mubr.f32.gmra.mxu0 %v1034
        %v1105 = vpop.f32.mrf.mxu0
        %v1106 = vadd.f32 0.0, %v1105
        %v1107 = vpop.f32.mrf.mxu0
        %1108 = vdwg.mxu0
        %v1109 = vmul.f32 %v1106, 0.35355338
        %v1110 = vadd.f32 %v1109, %v804
        %v1111 = vsel %vm1032, %v1110, -inf
        %1112 = vmax.xlane.f32.xlu0 %v1111
        %v1113 = vpop.xlane.xlu0 %1112
        %v1114 = vsub.f32 %v1110, %v1113
        %v1115 = vmul.f32 %v1114, 1.442695
        %v1116 = vpow.pop %v1115
        %v1117 = vsel %vm1032, %v1116, 0.0
        %1118 = vadd.xlane.f32.xlu0 %v1117
        %v1119 = vpop.xlane.xlu0 %1118
        %v1120 = vrcp.pop %v1119
        %v1121 = vmul.f32 %v1116, %v1120
        %v1123 = vsel %vm1032, %v1121, 0
        %1125 = vmatprep.subr.mxu0 0.0
        %1126 = vmatpush1.msra.mxu0 0.0
        %1127 = vmatprep.subr.mxu0 0.0
        %1128 = vmatpush1.msra.mxu0 0.0
        %1129 = vmatprep.subr.mxu0 0.0
        %1130 = vmatpush1.msra.mxu0 0.0
        %1131 = vmatprep.subr.mxu0 0.0
        %1132 = vmatpush1.msra.mxu0 0.0
        %1133 = vmatprep.subr.mxu0 0.0
        %1134 = vmatpush1.msra.mxu0 0.0
        %1135 = vmatprep.subr.mxu0 0.0
        %1136 = vmatpush1.msra.mxu0 0.0
        %1137 = vmatprep.subr.mxu0 0.0
        %1138 = vmatpush1.msra.mxu0 0.0
        %1139 = vmatprep.subr.mxu0 0.0
        %1140 = vmatpush1.msra.mxu0 0.0
        %1141 = vmatprep.subr.mxu0 0.0
        %1142 = vmatpush1.msra.mxu0 0.0
        %1143 = vmatprep.subr.mxu0 0.0
        %1144 = vmatpush1.msra.mxu0 0.0
        %1145 = vmatprep.subr.mxu0 0.0
        %1146 = vmatpush1.msra.mxu0 0.0
        %1147 = vmatprep.subr.mxu0 0.0
        %1148 = vmatpush1.msra.mxu0 0.0
        %1149 = vmatprep.subr.mxu0 0.0
        %1150 = vmatpush1.msra.mxu0 0.0
        %1151 = vmatprep.subr.mxu0 0.0
        %1152 = vmatpush1.msra.mxu0 0.0
        %1153 = vmatprep.subr.mxu0 0.0
        %1154 = vmatpush1.msra.mxu0 0.0
        %1155 = vmatprep.subr.mxu0 0.0
        %1156 = vmatpush1.msra.mxu0 %v1029
        %1157 = vmatprep.subr.mxu0 0.0
        %1158 = vmatpush2.msra.mxu0 0.0
        %1159 = vmatprep.subr.mxu0 0.0
        %1160 = vmatpush2.msra.mxu0 0.0
        %1161 = vmatprep.subr.mxu0 0.0
        %1162 = vmatpush2.msra.mxu0 0.0
        %1163 = vmatprep.subr.mxu0 0.0
        %1164 = vmatpush2.msra.mxu0 0.0
        %1165 = vmatprep.subr.mxu0 0.0
        %1166 = vmatpush2.msra.mxu0 0.0
        %1167 = vmatprep.subr.mxu0 0.0
        %1168 = vmatpush2.msra.mxu0 0.0
        %1169 = vmatprep.subr.mxu0 0.0
        %1170 = vmatpush2.msra.mxu0 0.0
        %1171 = vmatprep.subr.mxu0 0.0
        %1172 = vmatpush2.msra.mxu0 0.0
        %1173 = vmatprep.subr.mxu0 0.0
        %1174 = vmatpush2.msra.mxu0 0.0
        %1175 = vmatprep.subr.mxu0 0.0
        %1176 = vmatpush2.msra.mxu0 0.0
        %1177 = vmatprep.subr.mxu0 0.0
        %1178 = vmatpush2.msra.mxu0 0.0
        %1179 = vmatprep.subr.mxu0 0.0
        %1180 = vmatpush2.msra.mxu0 0.0
        %1181 = vmatprep.subr.mxu0 0.0
        %1182 = vmatpush2.msra.mxu0 0.0
        %1183 = vmatprep.subr.mxu0 0.0
        %1184 = vmatpush2.msra.mxu0 0.0
        %1185 = vmatprep.subr.mxu0 0.0
        %1186 = vmatpush2.msra.mxu0 0.0
        %1187 = vmatprep.subr.mxu0 0.0
        %1188 = vmatpush2.msra.mxu0 0.0
        %1189 = vmatprep.mubr.f32.mxu0 0.0
        %1190 = vmatmul.mubr.f32.gmra.mxu0 %v1123
        %v1191 = vpop.f32.mrf.mxu0
        %v1192 = vadd.f32 0.0, %v1191
        %v1193 = vpop.f32.mrf.mxu0
        %1194 = vdwg.mxu0
        %s1195 = scalar_lea.vmem %s4, 32
        %v1196 = vld [vmem:[%s1195] sm:$0xff]
        %v1197 = vld [vmem:[%s1195 + $0x8] sm:$0xff]
        %v1198 = vld [vmem:[%s1195 + $0x10] sm:$0xff]
        %v1199 = vld [vmem:[%s1195 + $0x18] sm:$0xff]
        %1200 = vmatprep.subr.mxu0 0.0
        %1201 = vmatpush1.msra.mxu0 0.0
        %1202 = vmatprep.subr.mxu0 0.0
        %1203 = vmatpush1.msra.mxu0 0.0
        %1204 = vmatprep.subr.mxu0 0.0
        %1205 = vmatpush1.msra.mxu0 0.0
        %1206 = vmatprep.subr.mxu0 0.0
        %1207 = vmatpush1.msra.mxu0 0.0
        %1208 = vmatprep.subr.mxu0 0.0
        %1209 = vmatpush1.msra.mxu0 0.0
        %1210 = vmatprep.subr.mxu0 0.0
        %1211 = vmatpush1.msra.mxu0 0.0
        %1212 = vmatprep.subr.mxu0 0.0
        %1213 = vmatpush1.msra.mxu0 0.0
        %1214 = vmatprep.subr.mxu0 0.0
        %1215 = vmatpush1.msra.mxu0 0.0
        %1216 = vmatprep.subr.mxu0 0.0
        %1217 = vmatpush1.msra.mxu0 0.0
        %1218 = vmatprep.subr.mxu0 0.0
        %1219 = vmatpush1.msra.mxu0 0.0
        %1220 = vmatprep.subr.mxu0 0.0
        %1221 = vmatpush1.msra.mxu0 0.0
        %1222 = vmatprep.subr.mxu0 0.0
        %1223 = vmatpush1.msra.mxu0 0.0
        %1224 = vmatprep.subr.mxu0 0.0
        %1225 = vmatpush1.msra.mxu0 %v1199
        %1226 = vmatprep.subr.mxu0 0.0
        %1227 = vmatpush1.msra.mxu0 %v1198
        %1228 = vmatprep.subr.mxu0 0.0
        %1229 = vmatpush1.msra.mxu0 %v1197
        %1230 = vmatprep.subr.mxu0 0.0
        %1231 = vmatpush1.msra.mxu0 %v1196
        %1232 = vmatprep.subr.mxu0 0.0
        %1233 = vmatpush2.msra.mxu0 0.0
        %1234 = vmatprep.subr.mxu0 0.0
        %1235 = vmatpush2.msra.mxu0 0.0
        %1236 = vmatprep.subr.mxu0 0.0
        %1237 = vmatpush2.msra.mxu0 0.0
        %1238 = vmatprep.subr.mxu0 0.0
        %1239 = vmatpush2.msra.mxu0 0.0
        %1240 = vmatprep.subr.mxu0 0.0
        %1241 = vmatpush2.msra.mxu0 0.0
        %1242 = vmatprep.subr.mxu0 0.0
        %1243 = vmatpush2.msra.mxu0 0.0
        %1244 = vmatprep.subr.mxu0 0.0
        %1245 = vmatpush2.msra.mxu0 0.0
        %1246 = vmatprep.subr.mxu0 0.0
        %1247 = vmatpush2.msra.mxu0 0.0
        %1248 = vmatprep.subr.mxu0 0.0
        %1249 = vmatpush2.msra.mxu0 0.0
        %1250 = vmatprep.subr.mxu0 0.0
        %1251 = vmatpush2.msra.mxu0 0.0
        %1252 = vmatprep.subr.mxu0 0.0
        %1253 = vmatpush2.msra.mxu0 0.0
        %1254 = vmatprep.subr.mxu0 0.0
        %1255 = vmatpush2.msra.mxu0 0.0
        %1256 = vmatprep.subr.mxu0 0.0
        %1257 = vmatpush2.msra.mxu0 0.0
        %1258 = vmatprep.subr.mxu0 0.0
        %1259 = vmatpush2.msra.mxu0 0.0
        %1260 = vmatprep.subr.mxu0 0.0
        %1261 = vmatpush2.msra.mxu0 0.0
        %1262 = vmatprep.subr.mxu0 0.0
        %1263 = vmatpush2.msra.mxu0 0.0
        %1264 = vmatprep.mubr.f32.mxu0 0.0
        %1265 = vmatmul.mubr.f32.gmra.mxu0 %v812
        %v1266 = vpop.f32.mrf.mxu0
        %v1267 = vadd.f32 0.0, %v1266
        %v1268 = vpop.f32.mrf.mxu0
        %1269 = vdwg.mxu0
        %s1270 = scalar_lea.vmem %s5, 32
        %v1271 = vld [vmem:[%s1270] sm:$0xff]
        %v1272 = vld [vmem:[%s1270 + $0x8] sm:$0xff]
        %v1273 = vld [vmem:[%s1270 + $0x10] sm:$0xff]
        %v1274 = vld [vmem:[%s1270 + $0x18] sm:$0xff]
        %1275 = vmatprep.subr.mxu0 0.0
        %1276 = vmatpush1.msra.mxu0 0.0
        %1277 = vmatprep.subr.mxu0 0.0
        %1278 = vmatpush1.msra.mxu0 0.0
        %1279 = vmatprep.subr.mxu0 0.0
        %1280 = vmatpush1.msra.mxu0 0.0
        %1281 = vmatprep.subr.mxu0 0.0
        %1282 = vmatpush1.msra.mxu0 0.0
        %1283 = vmatprep.subr.mxu0 0.0
        %1284 = vmatpush1.msra.mxu0 0.0
        %1285 = vmatprep.subr.mxu0 0.0
        %1286 = vmatpush1.msra.mxu0 0.0
        %1287 = vmatprep.subr.mxu0 0.0
        %1288 = vmatpush1.msra.mxu0 0.0
        %1289 = vmatprep.subr.mxu0 0.0
        %1290 = vmatpush1.msra.mxu0 0.0
        %1291 = vmatprep.subr.mxu0 0.0
        %1292 = vmatpush1.msra.mxu0 0.0
        %1293 = vmatprep.subr.mxu0 0.0
        %1294 = vmatpush1.msra.mxu0 0.0
        %1295 = vmatprep.subr.mxu0 0.0
        %1296 = vmatpush1.msra.mxu0 0.0
        %1297 = vmatprep.subr.mxu0 0.0
        %1298 = vmatpush1.msra.mxu0 0.0
        %1299 = vmatprep.subr.mxu0 0.0
        %1300 = vmatpush1.msra.mxu0 %v1274
        %1301 = vmatprep.subr.mxu0 0.0
        %1302 = vmatpush1.msra.mxu0 %v1273
        %1303 = vmatprep.subr.mxu0 0.0
        %1304 = vmatpush1.msra.mxu0 %v1272
        %1305 = vmatprep.subr.mxu0 0.0
        %1306 = vmatpush1.msra.mxu0 %v1271
        %1307 = vmatprep.subr.mxu0 0.0
        %1308 = vmatpush2.msra.mxu0 0.0
        %1309 = vmatprep.subr.mxu0 0.0
        %1310 = vmatpush2.msra.mxu0 0.0
        %1311 = vmatprep.subr.mxu0 0.0
        %1312 = vmatpush2.msra.mxu0 0.0
        %1313 = vmatprep.subr.mxu0 0.0
        %1314 = vmatpush2.msra.mxu0 0.0
        %1315 = vmatprep.subr.mxu0 0.0
        %1316 = vmatpush2.msra.mxu0 0.0
        %1317 = vmatprep.subr.mxu0 0.0
        %1318 = vmatpush2.msra.mxu0 0.0
        %1319 = vmatprep.subr.mxu0 0.0
        %1320 = vmatpush2.msra.mxu0 0.0
        %1321 = vmatprep.subr.mxu0 0.0
        %1322 = vmatpush2.msra.mxu0 0.0
        %1323 = vmatprep.subr.mxu0 0.0
        %1324 = vmatpush2.msra.mxu0 0.0
        %1325 = vmatprep.subr.mxu0 0.0
        %1326 = vmatpush2.msra.mxu0 0.0
        %1327 = vmatprep.subr.mxu0 0.0
        %1328 = vmatpush2.msra.mxu0 0.0
        %1329 = vmatprep.subr.mxu0 0.0
        %1330 = vmatpush2.msra.mxu0 0.0
        %1331 = vmatprep.subr.mxu0 0.0
        %1332 = vmatpush2.msra.mxu0 0.0
        %1333 = vmatprep.subr.mxu0 0.0
        %1334 = vmatpush2.msra.mxu0 0.0
        %1335 = vmatprep.subr.mxu0 0.0
        %1336 = vmatpush2.msra.mxu0 0.0
        %1337 = vmatprep.subr.mxu0 0.0
        %1338 = vmatpush2.msra.mxu0 0.0
        %1339 = vmatprep.mubr.f32.mxu0 0.0
        %1340 = vmatmul.mubr.f32.gmra.mxu0 %v812
        %v1341 = vpop.f32.mrf.mxu0
        %v1342 = vadd.f32 0.0, %v1341
        %v1343 = vpop.f32.mrf.mxu0
        %1344 = vdwg.mxu0
        %s1345 = scalar_lea.vmem %s6, 32
        %v1346 = vld [vmem:[%s1345] sm:$0xff]
        %v1347 = vld [vmem:[%s1345 + $0x8] sm:$0xff]
        %v1348 = vld [vmem:[%s1345 + $0x10] sm:$0xff]
        %v1349 = vld [vmem:[%s1345 + $0x18] sm:$0xff]
        %1350 = vmatprep.subr.mxu0 0.0
        %1351 = vmatpush1.msra.mxu0 0.0
        %1352 = vmatprep.subr.mxu0 0.0
        %1353 = vmatpush1.msra.mxu0 0.0
        %1354 = vmatprep.subr.mxu0 0.0
        %1355 = vmatpush1.msra.mxu0 0.0
        %1356 = vmatprep.subr.mxu0 0.0
        %1357 = vmatpush1.msra.mxu0 0.0
        %1358 = vmatprep.subr.mxu0 0.0
        %1359 = vmatpush1.msra.mxu0 0.0
        %1360 = vmatprep.subr.mxu0 0.0
        %1361 = vmatpush1.msra.mxu0 0.0
        %1362 = vmatprep.subr.mxu0 0.0
        %1363 = vmatpush1.msra.mxu0 0.0
        %1364 = vmatprep.subr.mxu0 0.0
        %1365 = vmatpush1.msra.mxu0 0.0
        %1366 = vmatprep.subr.mxu0 0.0
        %1367 = vmatpush1.msra.mxu0 0.0
        %1368 = vmatprep.subr.mxu0 0.0
        %1369 = vmatpush1.msra.mxu0 0.0
        %1370 = vmatprep.subr.mxu0 0.0
        %1371 = vmatpush1.msra.mxu0 0.0
        %1372 = vmatprep.subr.mxu0 0.0
        %1373 = vmatpush1.msra.mxu0 0.0
        %1374 = vmatprep.subr.mxu0 0.0
        %1375 = vmatpush1.msra.mxu0 %v1349
        %1376 = vmatprep.subr.mxu0 0.0
        %1377 = vmatpush1.msra.mxu0 %v1348
        %1378 = vmatprep.subr.mxu0 0.0
        %1379 = vmatpush1.msra.mxu0 %v1347
        %1380 = vmatprep.subr.mxu0 0.0
        %1381 = vmatpush1.msra.mxu0 %v1346
        %1382 = vmatprep.subr.mxu0 0.0
        %1383 = vmatpush2.msra.mxu0 0.0
        %1384 = vmatprep.subr.mxu0 0.0
        %1385 = vmatpush2.msra.mxu0 0.0
        %1386 = vmatprep.subr.mxu0 0.0
        %1387 = vmatpush2.msra.mxu0 0.0
        %1388 = vmatprep.subr.mxu0 0.0
        %1389 = vmatpush2.msra.mxu0 0.0
        %1390 = vmatprep.subr.mxu0 0.0
        %1391 = vmatpush2.msra.mxu0 0.0
        %1392 = vmatprep.subr.mxu0 0.0
        %1393 = vmatpush2.msra.mxu0 0.0
        %1394 = vmatprep.subr.mxu0 0.0
        %1395 = vmatpush2.msra.mxu0 0.0
        %1396 = vmatprep.subr.mxu0 0.0
        %1397 = vmatpush2.msra.mxu0 0.0
        %1398 = vmatprep.subr.mxu0 0.0
        %1399 = vmatpush2.msra.mxu0 0.0
        %1400 = vmatprep.subr.mxu0 0.0
        %1401 = vmatpush2.msra.mxu0 0.0
        %1402 = vmatprep.subr.mxu0 0.0
        %1403 = vmatpush2.msra.mxu0 0.0
        %1404 = vmatprep.subr.mxu0 0.0
        %1405 = vmatpush2.msra.mxu0 0.0
        %1406 = vmatprep.subr.mxu0 0.0
        %1407 = vmatpush2.msra.mxu0 0.0
        %1408 = vmatprep.subr.mxu0 0.0
        %1409 = vmatpush2.msra.mxu0 0.0
        %1410 = vmatprep.subr.mxu0 0.0
        %1411 = vmatpush2.msra.mxu0 0.0
        %1412 = vmatprep.subr.mxu0 0.0
        %1413 = vmatpush2.msra.mxu0 0.0
        %1414 = vmatprep.mubr.f32.mxu0 0.0
        %1415 = vmatmul.mubr.f32.gmra.mxu0 %v812
        %v1416 = vpop.f32.mrf.mxu0
        %v1417 = vadd.f32 0.0, %v1416
        %v1418 = vpop.f32.mrf.mxu0
        %1419 = vdwg.mxu0
        %v1421 = vsel %vm1032, %v1267, 0
        %v1424 = vsel %vm1032, %v1342, 0
        %1426 = vmatprep.subr.mxu0 0.0
        %1427 = vmatpush1.xpose.msra.mxu0 0.0
        %1428 = vmatprep.subr.mxu0 0.0
        %1429 = vmatpush1.xpose.msra.mxu0 0.0
        %1430 = vmatprep.subr.mxu0 0.0
        %1431 = vmatpush1.xpose.msra.mxu0 0.0
        %1432 = vmatprep.subr.mxu0 0.0
        %1433 = vmatpush1.xpose.msra.mxu0 0.0
        %1434 = vmatprep.subr.mxu0 0.0
        %1435 = vmatpush1.xpose.msra.mxu0 0.0
        %1436 = vmatprep.subr.mxu0 0.0
        %1437 = vmatpush1.xpose.msra.mxu0 0.0
        %1438 = vmatprep.subr.mxu0 0.0
        %1439 = vmatpush1.xpose.msra.mxu0 0.0
        %1440 = vmatprep.subr.mxu0 0.0
        %1441 = vmatpush1.xpose.msra.mxu0 0.0
        %1442 = vmatprep.subr.mxu0 0.0
        %1443 = vmatpush1.xpose.msra.mxu0 0.0
        %1444 = vmatprep.subr.mxu0 0.0
        %1445 = vmatpush1.xpose.msra.mxu0 0.0
        %1446 = vmatprep.subr.mxu0 0.0
        %1447 = vmatpush1.xpose.msra.mxu0 0.0
        %1448 = vmatprep.subr.mxu0 0.0
        %1449 = vmatpush1.xpose.msra.mxu0 0.0
        %1450 = vmatprep.subr.mxu0 0.0
        %1451 = vmatpush1.xpose.msra.mxu0 0.0
        %1452 = vmatprep.subr.mxu0 0.0
        %1453 = vmatpush1.xpose.msra.mxu0 0.0
        %1454 = vmatprep.subr.mxu0 0.0
        %1455 = vmatpush1.xpose.msra.mxu0 0.0
        %1456 = vmatprep.subr.mxu0 0.0
        %1457 = vmatpush1.xpose.msra.mxu0 %v1424
        %1458 = vmatprep.subr.mxu0 0.0
        %1459 = vmatpush2.xpose.msra.mxu0 0.0
        %1460 = vmatprep.subr.mxu0 0.0
        %1461 = vmatpush2.xpose.msra.mxu0 0.0
        %1462 = vmatprep.subr.mxu0 0.0
        %1463 = vmatpush2.xpose.msra.mxu0 0.0
        %1464 = vmatprep.subr.mxu0 0.0
        %1465 = vmatpush2.xpose.msra.mxu0 0.0
        %1466 = vmatprep.subr.mxu0 0.0
        %1467 = vmatpush2.xpose.msra.mxu0 0.0
        %1468 = vmatprep.subr.mxu0 0.0
        %1469 = vmatpush2.xpose.msra.mxu0 0.0
        %1470 = vmatprep.subr.mxu0 0.0
        %1471 = vmatpush2.xpose.msra.mxu0 0.0
        %1472 = vmatprep.subr.mxu0 0.0
        %1473 = vmatpush2.xpose.msra.mxu0 0.0
        %1474 = vmatprep.subr.mxu0 0.0
        %1475 = vmatpush2.xpose.msra.mxu0 0.0
        %1476 = vmatprep.subr.mxu0 0.0
        %1477 = vmatpush2.xpose.msra.mxu0 0.0
        %1478 = vmatprep.subr.mxu0 0.0
        %1479 = vmatpush2.xpose.msra.mxu0 0.0
        %1480 = vmatprep.subr.mxu0 0.0
        %1481 = vmatpush2.xpose.msra.mxu0 0.0
        %1482 = vmatprep.subr.mxu0 0.0
        %1483 = vmatpush2.xpose.msra.mxu0 0.0
        %1484 = vmatprep.subr.mxu0 0.0
        %1485 = vmatpush2.xpose.msra.mxu0 0.0
        %1486 = vmatprep.subr.mxu0 0.0
        %1487 = vmatpush2.xpose.msra.mxu0 0.0
        %1488 = vmatprep.subr.mxu0 0.0
        %1489 = vmatpush2.xpose.msra.mxu0 0.0
        %1490 = vmatprep.mubr.f32.mxu0 0.0
        %1491 = vmatmul.mubr.f32.gmra.mxu0 %v1421
        %v1492 = vpop.f32.mrf.mxu0
        %v1493 = vadd.f32 0.0, %v1492
        %v1494 = vpop.f32.mrf.mxu0
        %1495 = vdwg.mxu0
        %v1496 = vmul.f32 %v1493, 0.35355338
        %v1497 = vadd.f32 %v1496, %v804
        %v1498 = vsel %vm1032, %v1497, -inf
        %1499 = vmax.xlane.f32.xlu0 %v1498
        %v1500 = vpop.xlane.xlu0 %1499
        %v1501 = vsub.f32 %v1497, %v1500
        %v1502 = vmul.f32 %v1501, 1.442695
        %v1503 = vpow.pop %v1502
        %v1504 = vsel %vm1032, %v1503, 0.0
        %1505 = vadd.xlane.f32.xlu0 %v1504
        %v1506 = vpop.xlane.xlu0 %1505
        %v1507 = vrcp.pop %v1506
        %v1508 = vmul.f32 %v1503, %v1507
        %v1510 = vsel %vm1032, %v1508, 0
        %1512 = vmatprep.subr.mxu0 0.0
        %1513 = vmatpush1.msra.mxu0 0.0
        %1514 = vmatprep.subr.mxu0 0.0
        %1515 = vmatpush1.msra.mxu0 0.0
        %1516 = vmatprep.subr.mxu0 0.0
        %1517 = vmatpush1.msra.mxu0 0.0
        %1518 = vmatprep.subr.mxu0 0.0
        %1519 = vmatpush1.msra.mxu0 0.0
        %1520 = vmatprep.subr.mxu0 0.0
        %1521 = vmatpush1.msra.mxu0 0.0
        %1522 = vmatprep.subr.mxu0 0.0
        %1523 = vmatpush1.msra.mxu0 0.0
        %1524 = vmatprep.subr.mxu0 0.0
        %1525 = vmatpush1.msra.mxu0 0.0
        %1526 = vmatprep.subr.mxu0 0.0
        %1527 = vmatpush1.msra.mxu0 0.0
        %1528 = vmatprep.subr.mxu0 0.0
        %1529 = vmatpush1.msra.mxu0 0.0
        %1530 = vmatprep.subr.mxu0 0.0
        %1531 = vmatpush1.msra.mxu0 0.0
        %1532 = vmatprep.subr.mxu0 0.0
        %1533 = vmatpush1.msra.mxu0 0.0
        %1534 = vmatprep.subr.mxu0 0.0
        %1535 = vmatpush1.msra.mxu0 0.0
        %1536 = vmatprep.subr.mxu0 0.0
        %1537 = vmatpush1.msra.mxu0 0.0
        %1538 = vmatprep.subr.mxu0 0.0
        %1539 = vmatpush1.msra.mxu0 0.0
        %1540 = vmatprep.subr.mxu0 0.0
        %1541 = vmatpush1.msra.mxu0 0.0
        %1542 = vmatprep.subr.mxu0 0.0
        %1543 = vmatpush1.msra.mxu0 %v1417
        %1544 = vmatprep.subr.mxu0 0.0
        %1545 = vmatpush2.msra.mxu0 0.0
        %1546 = vmatprep.subr.mxu0 0.0
        %1547 = vmatpush2.msra.mxu0 0.0
        %1548 = vmatprep.subr.mxu0 0.0
        %1549 = vmatpush2.msra.mxu0 0.0
        %1550 = vmatprep.subr.mxu0 0.0
        %1551 = vmatpush2.msra.mxu0 0.0
        %1552 = vmatprep.subr.mxu0 0.0
        %1553 = vmatpush2.msra.mxu0 0.0
        %1554 = vmatprep.subr.mxu0 0.0
        %1555 = vmatpush2.msra.mxu0 0.0
        %1556 = vmatprep.subr.mxu0 0.0
        %1557 = vmatpush2.msra.mxu0 0.0
        %1558 = vmatprep.subr.mxu0 0.0
        %1559 = vmatpush2.msra.mxu0 0.0
        %1560 = vmatprep.subr.mxu0 0.0
        %1561 = vmatpush2.msra.mxu0 0.0
        %1562 = vmatprep.subr.mxu0 0.0
        %1563 = vmatpush2.msra.mxu0 0.0
        %1564 = vmatprep.subr.mxu0 0.0
        %1565 = vmatpush2.msra.mxu0 0.0
        %1566 = vmatprep.subr.mxu0 0.0
        %1567 = vmatpush2.msra.mxu0 0.0
        %1568 = vmatprep.subr.mxu0 0.0
        %1569 = vmatpush2.msra.mxu0 0.0
        %1570 = vmatprep.subr.mxu0 0.0
        %1571 = vmatpush2.msra.mxu0 0.0
        %1572 = vmatprep.subr.mxu0 0.0
        %1573 = vmatpush2.msra.mxu0 0.0
        %1574 = vmatprep.subr.mxu0 0.0
        %1575 = vmatpush2.msra.mxu0 0.0
        %1576 = vmatprep.mubr.f32.mxu0 0.0
        %1577 = vmatmul.mubr.f32.gmra.mxu0 %v1510
        %v1578 = vpop.f32.mrf.mxu0
        %v1579 = vadd.f32 0.0, %v1578
        %v1580 = vpop.f32.mrf.mxu0
        %1581 = vdwg.mxu0
        %s1582 = scalar_lea.vmem %s4, 64
        %v1583 = vld [vmem:[%s1582] sm:$0xff]
        %v1584 = vld [vmem:[%s1582 + $0x8] sm:$0xff]
        %v1585 = vld [vmem:[%s1582 + $0x10] sm:$0xff]
        %v1586 = vld [vmem:[%s1582 + $0x18] sm:$0xff]
        %1587 = vmatprep.subr.mxu0 0.0
        %1588 = vmatpush1.msra.mxu0 0.0
        %1589 = vmatprep.subr.mxu0 0.0
        %1590 = vmatpush1.msra.mxu0 0.0
        %1591 = vmatprep.subr.mxu0 0.0
        %1592 = vmatpush1.msra.mxu0 0.0
        %1593 = vmatprep.subr.mxu0 0.0
        %1594 = vmatpush1.msra.mxu0 0.0
        %1595 = vmatprep.subr.mxu0 0.0
        %1596 = vmatpush1.msra.mxu0 0.0
        %1597 = vmatprep.subr.mxu0 0.0
        %1598 = vmatpush1.msra.mxu0 0.0
        %1599 = vmatprep.subr.mxu0 0.0
        %1600 = vmatpush1.msra.mxu0 0.0
        %1601 = vmatprep.subr.mxu0 0.0
        %1602 = vmatpush1.msra.mxu0 0.0
        %1603 = vmatprep.subr.mxu0 0.0
        %1604 = vmatpush1.msra.mxu0 0.0
        %1605 = vmatprep.subr.mxu0 0.0
        %1606 = vmatpush1.msra.mxu0 0.0
        %1607 = vmatprep.subr.mxu0 0.0
        %1608 = vmatpush1.msra.mxu0 0.0
        %1609 = vmatprep.subr.mxu0 0.0
        %1610 = vmatpush1.msra.mxu0 0.0
        %1611 = vmatprep.subr.mxu0 0.0
        %1612 = vmatpush1.msra.mxu0 %v1586
        %1613 = vmatprep.subr.mxu0 0.0
        %1614 = vmatpush1.msra.mxu0 %v1585
        %1615 = vmatprep.subr.mxu0 0.0
        %1616 = vmatpush1.msra.mxu0 %v1584
        %1617 = vmatprep.subr.mxu0 0.0
        %1618 = vmatpush1.msra.mxu0 %v1583
        %1619 = vmatprep.subr.mxu0 0.0
        %1620 = vmatpush2.msra.mxu0 0.0
        %1621 = vmatprep.subr.mxu0 0.0
        %1622 = vmatpush2.msra.mxu0 0.0
        %1623 = vmatprep.subr.mxu0 0.0
        %1624 = vmatpush2.msra.mxu0 0.0
        %1625 = vmatprep.subr.mxu0 0.0
        %1626 = vmatpush2.msra.mxu0 0.0
        %1627 = vmatprep.subr.mxu0 0.0
        %1628 = vmatpush2.msra.mxu0 0.0
        %1629 = vmatprep.subr.mxu0 0.0
        %1630 = vmatpush2.msra.mxu0 0.0
        %1631 = vmatprep.subr.mxu0 0.0
        %1632 = vmatpush2.msra.mxu0 0.0
        %1633 = vmatprep.subr.mxu0 0.0
        %1634 = vmatpush2.msra.mxu0 0.0
        %1635 = vmatprep.subr.mxu0 0.0
        %1636 = vmatpush2.msra.mxu0 0.0
        %1637 = vmatprep.subr.mxu0 0.0
        %1638 = vmatpush2.msra.mxu0 0.0
        %1639 = vmatprep.subr.mxu0 0.0
        %1640 = vmatpush2.msra.mxu0 0.0
        %1641 = vmatprep.subr.mxu0 0.0
        %1642 = vmatpush2.msra.mxu0 0.0
        %1643 = vmatprep.subr.mxu0 0.0
        %1644 = vmatpush2.msra.mxu0 0.0
        %1645 = vmatprep.subr.mxu0 0.0
        %1646 = vmatpush2.msra.mxu0 0.0
        %1647 = vmatprep.subr.mxu0 0.0
        %1648 = vmatpush2.msra.mxu0 0.0
        %1649 = vmatprep.subr.mxu0 0.0
        %1650 = vmatpush2.msra.mxu0 0.0
        %1651 = vmatprep.mubr.f32.mxu0 0.0
        %1652 = vmatmul.mubr.f32.gmra.mxu0 %v812
        %v1653 = vpop.f32.mrf.mxu0
        %v1654 = vadd.f32 0.0, %v1653
        %v1655 = vpop.f32.mrf.mxu0
        %1656 = vdwg.mxu0
        %s1657 = scalar_lea.vmem %s5, 64
        %v1658 = vld [vmem:[%s1657] sm:$0xff]
        %v1659 = vld [vmem:[%s1657 + $0x8] sm:$0xff]
        %v1660 = vld [vmem:[%s1657 + $0x10] sm:$0xff]
        %v1661 = vld [vmem:[%s1657 + $0x18] sm:$0xff]
        %1662 = vmatprep.subr.mxu0 0.0
        %1663 = vmatpush1.msra.mxu0 0.0
        %1664 = vmatprep.subr.mxu0 0.0
        %1665 = vmatpush1.msra.mxu0 0.0
        %1666 = vmatprep.subr.mxu0 0.0
        %1667 = vmatpush1.msra.mxu0 0.0
        %1668 = vmatprep.subr.mxu0 0.0
        %1669 = vmatpush1.msra.mxu0 0.0
        %1670 = vmatprep.subr.mxu0 0.0
        %1671 = vmatpush1.msra.mxu0 0.0
        %1672 = vmatprep.subr.mxu0 0.0
        %1673 = vmatpush1.msra.mxu0 0.0
        %1674 = vmatprep.subr.mxu0 0.0
        %1675 = vmatpush1.msra.mxu0 0.0
        %1676 = vmatprep.subr.mxu0 0.0
        %1677 = vmatpush1.msra.mxu0 0.0
        %1678 = vmatprep.subr.mxu0 0.0
        %1679 = vmatpush1.msra.mxu0 0.0
        %1680 = vmatprep.subr.mxu0 0.0
        %1681 = vmatpush1.msra.mxu0 0.0
        %1682 = vmatprep.subr.mxu0 0.0
        %1683 = vmatpush1.msra.mxu0 0.0
        %1684 = vmatprep.subr.mxu0 0.0
        %1685 = vmatpush1.msra.mxu0 0.0
        %1686 = vmatprep.subr.mxu0 0.0
        %1687 = vmatpush1.msra.mxu0 %v1661
        %1688 = vmatprep.subr.mxu0 0.0
        %1689 = vmatpush1.msra.mxu0 %v1660
        %1690 = vmatprep.subr.mxu0 0.0
        %1691 = vmatpush1.msra.mxu0 %v1659
        %1692 = vmatprep.subr.mxu0 0.0
        %1693 = vmatpush1.msra.mxu0 %v1658
        %1694 = vmatprep.subr.mxu0 0.0
        %1695 = vmatpush2.msra.mxu0 0.0
        %1696 = vmatprep.subr.mxu0 0.0
        %1697 = vmatpush2.msra.mxu0 0.0
        %1698 = vmatprep.subr.mxu0 0.0
        %1699 = vmatpush2.msra.mxu0 0.0
        %1700 = vmatprep.subr.mxu0 0.0
        %1701 = vmatpush2.msra.mxu0 0.0
        %1702 = vmatprep.subr.mxu0 0.0
        %1703 = vmatpush2.msra.mxu0 0.0
        %1704 = vmatprep.subr.mxu0 0.0
        %1705 = vmatpush2.msra.mxu0 0.0
        %1706 = vmatprep.subr.mxu0 0.0
        %1707 = vmatpush2.msra.mxu0 0.0
        %1708 = vmatprep.subr.mxu0 0.0
        %1709 = vmatpush2.msra.mxu0 0.0
        %1710 = vmatprep.subr.mxu0 0.0
        %1711 = vmatpush2.msra.mxu0 0.0
        %1712 = vmatprep.subr.mxu0 0.0
        %1713 = vmatpush2.msra.mxu0 0.0
        %1714 = vmatprep.subr.mxu0 0.0
        %1715 = vmatpush2.msra.mxu0 0.0
        %1716 = vmatprep.subr.mxu0 0.0
        %1717 = vmatpush2.msra.mxu0 0.0
        %1718 = vmatprep.subr.mxu0 0.0
        %1719 = vmatpush2.msra.mxu0 0.0
        %1720 = vmatprep.subr.mxu0 0.0
        %1721 = vmatpush2.msra.mxu0 0.0
        %1722 = vmatprep.subr.mxu0 0.0
        %1723 = vmatpush2.msra.mxu0 0.0
        %1724 = vmatprep.subr.mxu0 0.0
        %1725 = vmatpush2.msra.mxu0 0.0
        %1726 = vmatprep.mubr.f32.mxu0 0.0
        %1727 = vmatmul.mubr.f32.gmra.mxu0 %v812
        %v1728 = vpop.f32.mrf.mxu0
        %v1729 = vadd.f32 0.0, %v1728
        %v1730 = vpop.f32.mrf.mxu0
        %1731 = vdwg.mxu0
        %s1732 = scalar_lea.vmem %s6, 64
        %v1733 = vld [vmem:[%s1732] sm:$0xff]
        %v1734 = vld [vmem:[%s1732 + $0x8] sm:$0xff]
        %v1735 = vld [vmem:[%s1732 + $0x10] sm:$0xff]
        %v1736 = vld [vmem:[%s1732 + $0x18] sm:$0xff]
        %1737 = vmatprep.subr.mxu0 0.0
        %1738 = vmatpush1.msra.mxu0 0.0
        %1739 = vmatprep.subr.mxu0 0.0
        %1740 = vmatpush1.msra.mxu0 0.0
        %1741 = vmatprep.subr.mxu0 0.0
        %1742 = vmatpush1.msra.mxu0 0.0
        %1743 = vmatprep.subr.mxu0 0.0
        %1744 = vmatpush1.msra.mxu0 0.0
        %1745 = vmatprep.subr.mxu0 0.0
        %1746 = vmatpush1.msra.mxu0 0.0
        %1747 = vmatprep.subr.mxu0 0.0
        %1748 = vmatpush1.msra.mxu0 0.0
        %1749 = vmatprep.subr.mxu0 0.0
        %1750 = vmatpush1.msra.mxu0 0.0
        %1751 = vmatprep.subr.mxu0 0.0
        %1752 = vmatpush1.msra.mxu0 0.0
        %1753 = vmatprep.subr.mxu0 0.0
        %1754 = vmatpush1.msra.mxu0 0.0
        %1755 = vmatprep.subr.mxu0 0.0
        %1756 = vmatpush1.msra.mxu0 0.0
        %1757 = vmatprep.subr.mxu0 0.0
        %1758 = vmatpush1.msra.mxu0 0.0
        %1759 = vmatprep.subr.mxu0 0.0
        %1760 = vmatpush1.msra.mxu0 0.0
        %1761 = vmatprep.subr.mxu0 0.0
        %1762 = vmatpush1.msra.mxu0 %v1736
        %1763 = vmatprep.subr.mxu0 0.0
        %1764 = vmatpush1.msra.mxu0 %v1735
        %1765 = vmatprep.subr.mxu0 0.0
        %1766 = vmatpush1.msra.mxu0 %v1734
        %1767 = vmatprep.subr.mxu0 0.0
        %1768 = vmatpush1.msra.mxu0 %v1733
        %1769 = vmatprep.subr.mxu0 0.0
        %1770 = vmatpush2.msra.mxu0 0.0
        %1771 = vmatprep.subr.mxu0 0.0
        %1772 = vmatpush2.msra.mxu0 0.0
        %1773 = vmatprep.subr.mxu0 0.0
        %1774 = vmatpush2.msra.mxu0 0.0
        %1775 = vmatprep.subr.mxu0 0.0
        %1776 = vmatpush2.msra.mxu0 0.0
        %1777 = vmatprep.subr.mxu0 0.0
        %1778 = vmatpush2.msra.mxu0 0.0
        %1779 = vmatprep.subr.mxu0 0.0
        %1780 = vmatpush2.msra.mxu0 0.0
        %1781 = vmatprep.subr.mxu0 0.0
        %1782 = vmatpush2.msra.mxu0 0.0
        %1783 = vmatprep.subr.mxu0 0.0
        %1784 = vmatpush2.msra.mxu0 0.0
        %1785 = vmatprep.subr.mxu0 0.0
        %1786 = vmatpush2.msra.mxu0 0.0
        %1787 = vmatprep.subr.mxu0 0.0
        %1788 = vmatpush2.msra.mxu0 0.0
        %1789 = vmatprep.subr.mxu0 0.0
        %1790 = vmatpush2.msra.mxu0 0.0
        %1791 = vmatprep.subr.mxu0 0.0
        %1792 = vmatpush2.msra.mxu0 0.0
        %1793 = vmatprep.subr.mxu0 0.0
        %1794 = vmatpush2.msra.mxu0 0.0
        %1795 = vmatprep.subr.mxu0 0.0
        %1796 = vmatpush2.msra.mxu0 0.0
        %1797 = vmatprep.subr.mxu0 0.0
        %1798 = vmatpush2.msra.mxu0 0.0
        %1799 = vmatprep.subr.mxu0 0.0
        %1800 = vmatpush2.msra.mxu0 0.0
        %1801 = vmatprep.mubr.f32.mxu0 0.0
        %1802 = vmatmul.mubr.f32.gmra.mxu0 %v812
        %v1803 = vpop.f32.mrf.mxu0
        %v1804 = vadd.f32 0.0, %v1803
        %v1805 = vpop.f32.mrf.mxu0
        %1806 = vdwg.mxu0
        %v1808 = vsel %vm1032, %v1654, 0
        %v1811 = vsel %vm1032, %v1729, 0
        %1813 = vmatprep.subr.mxu0 0.0
        %1814 = vmatpush1.xpose.msra.mxu0 0.0
        %1815 = vmatprep.subr.mxu0 0.0
        %1816 = vmatpush1.xpose.msra.mxu0 0.0
        %1817 = vmatprep.subr.mxu0 0.0
        %1818 = vmatpush1.xpose.msra.mxu0 0.0
        %1819 = vmatprep.subr.mxu0 0.0
        %1820 = vmatpush1.xpose.msra.mxu0 0.0
        %1821 = vmatprep.subr.mxu0 0.0
        %1822 = vmatpush1.xpose.msra.mxu0 0.0
        %1823 = vmatprep.subr.mxu0 0.0
        %1824 = vmatpush1.xpose.msra.mxu0 0.0
        %1825 = vmatprep.subr.mxu0 0.0
        %1826 = vmatpush1.xpose.msra.mxu0 0.0
        %1827 = vmatprep.subr.mxu0 0.0
        %1828 = vmatpush1.xpose.msra.mxu0 0.0
        %1829 = vmatprep.subr.mxu0 0.0
        %1830 = vmatpush1.xpose.msra.mxu0 0.0
        %1831 = vmatprep.subr.mxu0 0.0
        %1832 = vmatpush1.xpose.msra.mxu0 0.0
        %1833 = vmatprep.subr.mxu0 0.0
        %1834 = vmatpush1.xpose.msra.mxu0 0.0
        %1835 = vmatprep.subr.mxu0 0.0
        %1836 = vmatpush1.xpose.msra.mxu0 0.0
        %1837 = vmatprep.subr.mxu0 0.0
        %1838 = vmatpush1.xpose.msra.mxu0 0.0
        %1839 = vmatprep.subr.mxu0 0.0
        %1840 = vmatpush1.xpose.msra.mxu0 0.0
        %1841 = vmatprep.subr.mxu0 0.0
        %1842 = vmatpush1.xpose.msra.mxu0 0.0
        %1843 = vmatprep.subr.mxu0 0.0
        %1844 = vmatpush1.xpose.msra.mxu0 %v1811
        %1845 = vmatprep.subr.mxu0 0.0
        %1846 = vmatpush2.xpose.msra.mxu0 0.0
        %1847 = vmatprep.subr.mxu0 0.0
        %1848 = vmatpush2.xpose.msra.mxu0 0.0
        %1849 = vmatprep.subr.mxu0 0.0
        %1850 = vmatpush2.xpose.msra.mxu0 0.0
        %1851 = vmatprep.subr.mxu0 0.0
        %1852 = vmatpush2.xpose.msra.mxu0 0.0
        %1853 = vmatprep.subr.mxu0 0.0
        %1854 = vmatpush2.xpose.msra.mxu0 0.0
        %1855 = vmatprep.subr.mxu0 0.0
        %1856 = vmatpush2.xpose.msra.mxu0 0.0
        %1857 = vmatprep.subr.mxu0 0.0
        %1858 = vmatpush2.xpose.msra.mxu0 0.0
        %1859 = vmatprep.subr.mxu0 0.0
        %1860 = vmatpush2.xpose.msra.mxu0 0.0
        %1861 = vmatprep.subr.mxu0 0.0
        %1862 = vmatpush2.xpose.msra.mxu0 0.0
        %1863 = vmatprep.subr.mxu0 0.0
        %1864 = vmatpush2.xpose.msra.mxu0 0.0
        %1865 = vmatprep.subr.mxu0 0.0
        %1866 = vmatpush2.xpose.msra.mxu0 0.0
        %1867 = vmatprep.subr.mxu0 0.0
        %1868 = vmatpush2.xpose.msra.mxu0 0.0
        %1869 = vmatprep.subr.mxu0 0.0
        %1870 = vmatpush2.xpose.msra.mxu0 0.0
        %1871 = vmatprep.subr.mxu0 0.0
        %1872 = vmatpush2.xpose.msra.mxu0 0.0
        %1873 = vmatprep.subr.mxu0 0.0
        %1874 = vmatpush2.xpose.msra.mxu0 0.0
        %1875 = vmatprep.subr.mxu0 0.0
        %1876 = vmatpush2.xpose.msra.mxu0 0.0
        %1877 = vmatprep.mubr.f32.mxu0 0.0
        %1878 = vmatmul.mubr.f32.gmra.mxu0 %v1808
        %v1879 = vpop.f32.mrf.mxu0
        %v1880 = vadd.f32 0.0, %v1879
        %v1881 = vpop.f32.mrf.mxu0
        %1882 = vdwg.mxu0
        %v1883 = vmul.f32 %v1880, 0.35355338
        %v1884 = vadd.f32 %v1883, %v804
        %v1885 = vsel %vm1032, %v1884, -inf
        %1886 = vmax.xlane.f32.xlu0 %v1885
        %v1887 = vpop.xlane.xlu0 %1886
        %v1888 = vsub.f32 %v1884, %v1887
        %v1889 = vmul.f32 %v1888, 1.442695
        %v1890 = vpow.pop %v1889
        %v1891 = vsel %vm1032, %v1890, 0.0
        %1892 = vadd.xlane.f32.xlu0 %v1891
        %v1893 = vpop.xlane.xlu0 %1892
        %v1894 = vrcp.pop %v1893
        %v1895 = vmul.f32 %v1890, %v1894
        %v1897 = vsel %vm1032, %v1895, 0
        %1899 = vmatprep.subr.mxu0 0.0
        %1900 = vmatpush1.msra.mxu0 0.0
        %1901 = vmatprep.subr.mxu0 0.0
        %1902 = vmatpush1.msra.mxu0 0.0
        %1903 = vmatprep.subr.mxu0 0.0
        %1904 = vmatpush1.msra.mxu0 0.0
        %1905 = vmatprep.subr.mxu0 0.0
        %1906 = vmatpush1.msra.mxu0 0.0
        %1907 = vmatprep.subr.mxu0 0.0
        %1908 = vmatpush1.msra.mxu0 0.0
        %1909 = vmatprep.subr.mxu0 0.0
        %1910 = vmatpush1.msra.mxu0 0.0
        %1911 = vmatprep.subr.mxu0 0.0
        %1912 = vmatpush1.msra.mxu0 0.0
        %1913 = vmatprep.subr.mxu0 0.0
        %1914 = vmatpush1.msra.mxu0 0.0
        %1915 = vmatprep.subr.mxu0 0.0
        %1916 = vmatpush1.msra.mxu0 0.0
        %1917 = vmatprep.subr.mxu0 0.0
        %1918 = vmatpush1.msra.mxu0 0.0
        %1919 = vmatprep.subr.mxu0 0.0
        %1920 = vmatpush1.msra.mxu0 0.0
        %1921 = vmatprep.subr.mxu0 0.0
        %1922 = vmatpush1.msra.mxu0 0.0
        %1923 = vmatprep.subr.mxu0 0.0
        %1924 = vmatpush1.msra.mxu0 0.0
        %1925 = vmatprep.subr.mxu0 0.0
        %1926 = vmatpush1.msra.mxu0 0.0
        %1927 = vmatprep.subr.mxu0 0.0
        %1928 = vmatpush1.msra.mxu0 0.0
        %1929 = vmatprep.subr.mxu0 0.0
        %1930 = vmatpush1.msra.mxu0 %v1804
        %1931 = vmatprep.subr.mxu0 0.0
        %1932 = vmatpush2.msra.mxu0 0.0
        %1933 = vmatprep.subr.mxu0 0.0
        %1934 = vmatpush2.msra.mxu0 0.0
        %1935 = vmatprep.subr.mxu0 0.0
        %1936 = vmatpush2.msra.mxu0 0.0
        %1937 = vmatprep.subr.mxu0 0.0
        %1938 = vmatpush2.msra.mxu0 0.0
        %1939 = vmatprep.subr.mxu0 0.0
        %1940 = vmatpush2.msra.mxu0 0.0
        %1941 = vmatprep.subr.mxu0 0.0
        %1942 = vmatpush2.msra.mxu0 0.0
        %1943 = vmatprep.subr.mxu0 0.0
        %1944 = vmatpush2.msra.mxu0 0.0
        %1945 = vmatprep.subr.mxu0 0.0
        %1946 = vmatpush2.msra.mxu0 0.0
        %1947 = vmatprep.subr.mxu0 0.0
        %1948 = vmatpush2.msra.mxu0 0.0
        %1949 = vmatprep.subr.mxu0 0.0
        %1950 = vmatpush2.msra.mxu0 0.0
        %1951 = vmatprep.subr.mxu0 0.0
        %1952 = vmatpush2.msra.mxu0 0.0
        %1953 = vmatprep.subr.mxu0 0.0
        %1954 = vmatpush2.msra.mxu0 0.0
        %1955 = vmatprep.subr.mxu0 0.0
        %1956 = vmatpush2.msra.mxu0 0.0
        %1957 = vmatprep.subr.mxu0 0.0
        %1958 = vmatpush2.msra.mxu0 0.0
        %1959 = vmatprep.subr.mxu0 0.0
        %1960 = vmatpush2.msra.mxu0 0.0
        %1961 = vmatprep.subr.mxu0 0.0
        %1962 = vmatpush2.msra.mxu0 0.0
        %1963 = vmatprep.mubr.f32.mxu0 0.0
        %1964 = vmatmul.mubr.f32.gmra.mxu0 %v1897
        %v1965 = vpop.f32.mrf.mxu0
        %v1966 = vadd.f32 0.0, %v1965
        %v1967 = vpop.f32.mrf.mxu0
        %1968 = vdwg.mxu0
        %s1969 = scalar_lea.vmem %s4, 96
        %v1970 = vld [vmem:[%s1969] sm:$0xff]
        %v1971 = vld [vmem:[%s1969 + $0x8] sm:$0xff]
        %v1972 = vld [vmem:[%s1969 + $0x10] sm:$0xff]
        %v1973 = vld [vmem:[%s1969 + $0x18] sm:$0xff]
        %1974 = vmatprep.subr.mxu0 0.0
        %1975 = vmatpush1.msra.mxu0 0.0
        %1976 = vmatprep.subr.mxu0 0.0
        %1977 = vmatpush1.msra.mxu0 0.0
        %1978 = vmatprep.subr.mxu0 0.0
        %1979 = vmatpush1.msra.mxu0 0.0
        %1980 = vmatprep.subr.mxu0 0.0
        %1981 = vmatpush1.msra.mxu0 0.0
        %1982 = vmatprep.subr.mxu0 0.0
        %1983 = vmatpush1.msra.mxu0 0.0
        %1984 = vmatprep.subr.mxu0 0.0
        %1985 = vmatpush1.msra.mxu0 0.0
        %1986 = vmatprep.subr.mxu0 0.0
        %1987 = vmatpush1.msra.mxu0 0.0
        %1988 = vmatprep.subr.mxu0 0.0
        %1989 = vmatpush1.msra.mxu0 0.0
        %1990 = vmatprep.subr.mxu0 0.0
        %1991 = vmatpush1.msra.mxu0 0.0
        %1992 = vmatprep.subr.mxu0 0.0
        %1993 = vmatpush1.msra.mxu0 0.0
        %1994 = vmatprep.subr.mxu0 0.0
        %1995 = vmatpush1.msra.mxu0 0.0
        %1996 = vmatprep.subr.mxu0 0.0
        %1997 = vmatpush1.msra.mxu0 0.0
        %1998 = vmatprep.subr.mxu0 0.0
        %1999 = vmatpush1.msra.mxu0 %v1973
        %2000 = vmatprep.subr.mxu0 0.0
        %2001 = vmatpush1.msra.mxu0 %v1972
        %2002 = vmatprep.subr.mxu0 0.0
        %2003 = vmatpush1.msra.mxu0 %v1971
        %2004 = vmatprep.subr.mxu0 0.0
        %2005 = vmatpush1.msra.mxu0 %v1970
        %2006 = vmatprep.subr.mxu0 0.0
        %2007 = vmatpush2.msra.mxu0 0.0
        %2008 = vmatprep.subr.mxu0 0.0
        %2009 = vmatpush2.msra.mxu0 0.0
        %2010 = vmatprep.subr.mxu0 0.0
        %2011 = vmatpush2.msra.mxu0 0.0
        %2012 = vmatprep.subr.mxu0 0.0
        %2013 = vmatpush2.msra.mxu0 0.0
        %2014 = vmatprep.subr.mxu0 0.0
        %2015 = vmatpush2.msra.mxu0 0.0
        %2016 = vmatprep.subr.mxu0 0.0
        %2017 = vmatpush2.msra.mxu0 0.0
        %2018 = vmatprep.subr.mxu0 0.0
        %2019 = vmatpush2.msra.mxu0 0.0
        %2020 = vmatprep.subr.mxu0 0.0
        %2021 = vmatpush2.msra.mxu0 0.0
        %2022 = vmatprep.subr.mxu0 0.0
        %2023 = vmatpush2.msra.mxu0 0.0
        %2024 = vmatprep.subr.mxu0 0.0
        %2025 = vmatpush2.msra.mxu0 0.0
        %2026 = vmatprep.subr.mxu0 0.0
        %2027 = vmatpush2.msra.mxu0 0.0
        %2028 = vmatprep.subr.mxu0 0.0
        %2029 = vmatpush2.msra.mxu0 0.0
        %2030 = vmatprep.subr.mxu0 0.0
        %2031 = vmatpush2.msra.mxu0 0.0
        %2032 = vmatprep.subr.mxu0 0.0
        %2033 = vmatpush2.msra.mxu0 0.0
        %2034 = vmatprep.subr.mxu0 0.0
        %2035 = vmatpush2.msra.mxu0 0.0
        %2036 = vmatprep.subr.mxu0 0.0
        %2037 = vmatpush2.msra.mxu0 0.0
        %2038 = vmatprep.mubr.f32.mxu0 0.0
        %2039 = vmatmul.mubr.f32.gmra.mxu0 %v812
        %v2040 = vpop.f32.mrf.mxu0
        %v2041 = vadd.f32 0.0, %v2040
        %v2042 = vpop.f32.mrf.mxu0
        %2043 = vdwg.mxu0
        %s2044 = scalar_lea.vmem %s5, 96
        %v2045 = vld [vmem:[%s2044] sm:$0xff]
        %v2046 = vld [vmem:[%s2044 + $0x8] sm:$0xff]
        %v2047 = vld [vmem:[%s2044 + $0x10] sm:$0xff]
        %v2048 = vld [vmem:[%s2044 + $0x18] sm:$0xff]
        %2049 = vmatprep.subr.mxu0 0.0
        %2050 = vmatpush1.msra.mxu0 0.0
        %2051 = vmatprep.subr.mxu0 0.0
        %2052 = vmatpush1.msra.mxu0 0.0
        %2053 = vmatprep.subr.mxu0 0.0
        %2054 = vmatpush1.msra.mxu0 0.0
        %2055 = vmatprep.subr.mxu0 0.0
        %2056 = vmatpush1.msra.mxu0 0.0
        %2057 = vmatprep.subr.mxu0 0.0
        %2058 = vmatpush1.msra.mxu0 0.0
        %2059 = vmatprep.subr.mxu0 0.0
        %2060 = vmatpush1.msra.mxu0 0.0
        %2061 = vmatprep.subr.mxu0 0.0
        %2062 = vmatpush1.msra.mxu0 0.0
        %2063 = vmatprep.subr.mxu0 0.0
        %2064 = vmatpush1.msra.mxu0 0.0
        %2065 = vmatprep.subr.mxu0 0.0
        %2066 = vmatpush1.msra.mxu0 0.0
        %2067 = vmatprep.subr.mxu0 0.0
        %2068 = vmatpush1.msra.mxu0 0.0
        %2069 = vmatprep.subr.mxu0 0.0
        %2070 = vmatpush1.msra.mxu0 0.0
        %2071 = vmatprep.subr.mxu0 0.0
        %2072 = vmatpush1.msra.mxu0 0.0
        %2073 = vmatprep.subr.mxu0 0.0
        %2074 = vmatpush1.msra.mxu0 %v2048
        %2075 = vmatprep.subr.mxu0 0.0
        %2076 = vmatpush1.msra.mxu0 %v2047
        %2077 = vmatprep.subr.mxu0 0.0
        %2078 = vmatpush1.msra.mxu0 %v2046
        %2079 = vmatprep.subr.mxu0 0.0
        %2080 = vmatpush1.msra.mxu0 %v2045
        %2081 = vmatprep.subr.mxu0 0.0
        %2082 = vmatpush2.msra.mxu0 0.0
        %2083 = vmatprep.subr.mxu0 0.0
        %2084 = vmatpush2.msra.mxu0 0.0
        %2085 = vmatprep.subr.mxu0 0.0
        %2086 = vmatpush2.msra.mxu0 0.0
        %2087 = vmatprep.subr.mxu0 0.0
        %2088 = vmatpush2.msra.mxu0 0.0
        %2089 = vmatprep.subr.mxu0 0.0
        %2090 = vmatpush2.msra.mxu0 0.0
        %2091 = vmatprep.subr.mxu0 0.0
        %2092 = vmatpush2.msra.mxu0 0.0
        %2093 = vmatprep.subr.mxu0 0.0
        %2094 = vmatpush2.msra.mxu0 0.0
        %2095 = vmatprep.subr.mxu0 0.0
        %2096 = vmatpush2.msra.mxu0 0.0
        %2097 = vmatprep.subr.mxu0 0.0
        %2098 = vmatpush2.msra.mxu0 0.0
        %2099 = vmatprep.subr.mxu0 0.0
        %2100 = vmatpush2.msra.mxu0 0.0
        %2101 = vmatprep.subr.mxu0 0.0
        %2102 = vmatpush2.msra.mxu0 0.0
        %2103 = vmatprep.subr.mxu0 0.0
        %2104 = vmatpush2.msra.mxu0 0.0
        %2105 = vmatprep.subr.mxu0 0.0
        %2106 = vmatpush2.msra.mxu0 0.0
        %2107 = vmatprep.subr.mxu0 0.0
        %2108 = vmatpush2.msra.mxu0 0.0
        %2109 = vmatprep.subr.mxu0 0.0
        %2110 = vmatpush2.msra.mxu0 0.0
        %2111 = vmatprep.subr.mxu0 0.0
        %2112 = vmatpush2.msra.mxu0 0.0
        %2113 = vmatprep.mubr.f32.mxu0 0.0
        %2114 = vmatmul.mubr.f32.gmra.mxu0 %v812
        %v2115 = vpop.f32.mrf.mxu0
        %v2116 = vadd.f32 0.0, %v2115
        %v2117 = vpop.f32.mrf.mxu0
        %2118 = vdwg.mxu0
        %s2119 = scalar_lea.vmem %s6, 96
        %v2120 = vld [vmem:[%s2119] sm:$0xff]
        %v2121 = vld [vmem:[%s2119 + $0x8] sm:$0xff]
        %v2122 = vld [vmem:[%s2119 + $0x10] sm:$0xff]
        %v2123 = vld [vmem:[%s2119 + $0x18] sm:$0xff]
        %2124 = vmatprep.subr.mxu0 0.0
        %2125 = vmatpush1.msra.mxu0 0.0
        %2126 = vmatprep.subr.mxu0 0.0
        %2127 = vmatpush1.msra.mxu0 0.0
        %2128 = vmatprep.subr.mxu0 0.0
        %2129 = vmatpush1.msra.mxu0 0.0
        %2130 = vmatprep.subr.mxu0 0.0
        %2131 = vmatpush1.msra.mxu0 0.0
        %2132 = vmatprep.subr.mxu0 0.0
        %2133 = vmatpush1.msra.mxu0 0.0
        %2134 = vmatprep.subr.mxu0 0.0
        %2135 = vmatpush1.msra.mxu0 0.0
        %2136 = vmatprep.subr.mxu0 0.0
        %2137 = vmatpush1.msra.mxu0 0.0
        %2138 = vmatprep.subr.mxu0 0.0
        %2139 = vmatpush1.msra.mxu0 0.0
        %2140 = vmatprep.subr.mxu0 0.0
        %2141 = vmatpush1.msra.mxu0 0.0
        %2142 = vmatprep.subr.mxu0 0.0
        %2143 = vmatpush1.msra.mxu0 0.0
        %2144 = vmatprep.subr.mxu0 0.0
        %2145 = vmatpush1.msra.mxu0 0.0
        %2146 = vmatprep.subr.mxu0 0.0
        %2147 = vmatpush1.msra.mxu0 0.0
        %2148 = vmatprep.subr.mxu0 0.0
        %2149 = vmatpush1.msra.mxu0 %v2123
        %2150 = vmatprep.subr.mxu0 0.0
        %2151 = vmatpush1.msra.mxu0 %v2122
        %2152 = vmatprep.subr.mxu0 0.0
        %2153 = vmatpush1.msra.mxu0 %v2121
        %2154 = vmatprep.subr.mxu0 0.0
        %2155 = vmatpush1.msra.mxu0 %v2120
        %2156 = vmatprep.subr.mxu0 0.0
        %2157 = vmatpush2.msra.mxu0 0.0
        %2158 = vmatprep.subr.mxu0 0.0
        %2159 = vmatpush2.msra.mxu0 0.0
        %2160 = vmatprep.subr.mxu0 0.0
        %2161 = vmatpush2.msra.mxu0 0.0
        %2162 = vmatprep.subr.mxu0 0.0
        %2163 = vmatpush2.msra.mxu0 0.0
        %2164 = vmatprep.subr.mxu0 0.0
        %2165 = vmatpush2.msra.mxu0 0.0
        %2166 = vmatprep.subr.mxu0 0.0
        %2167 = vmatpush2.msra.mxu0 0.0
        %2168 = vmatprep.subr.mxu0 0.0
        %2169 = vmatpush2.msra.mxu0 0.0
        %2170 = vmatprep.subr.mxu0 0.0
        %2171 = vmatpush2.msra.mxu0 0.0
        %2172 = vmatprep.subr.mxu0 0.0
        %2173 = vmatpush2.msra.mxu0 0.0
        %2174 = vmatprep.subr.mxu0 0.0
        %2175 = vmatpush2.msra.mxu0 0.0
        %2176 = vmatprep.subr.mxu0 0.0
        %2177 = vmatpush2.msra.mxu0 0.0
        %2178 = vmatprep.subr.mxu0 0.0
        %2179 = vmatpush2.msra.mxu0 0.0
        %2180 = vmatprep.subr.mxu0 0.0
        %2181 = vmatpush2.msra.mxu0 0.0
        %2182 = vmatprep.subr.mxu0 0.0
        %2183 = vmatpush2.msra.mxu0 0.0
        %2184 = vmatprep.subr.mxu0 0.0
        %2185 = vmatpush2.msra.mxu0 0.0
        %2186 = vmatprep.subr.mxu0 0.0
        %2187 = vmatpush2.msra.mxu0 0.0
        %2188 = vmatprep.mubr.f32.mxu0 0.0
        %2189 = vmatmul.mubr.f32.gmra.mxu0 %v812
        %v2190 = vpop.f32.mrf.mxu0
        %v2191 = vadd.f32 0.0, %v2190
        %v2192 = vpop.f32.mrf.mxu0
        %2193 = vdwg.mxu0
        %v2195 = vsel %vm1032, %v2041, 0
        %v2198 = vsel %vm1032, %v2116, 0
        %2200 = vmatprep.subr.mxu0 0.0
        %2201 = vmatpush1.xpose.msra.mxu0 0.0
        %2202 = vmatprep.subr.mxu0 0.0
        %2203 = vmatpush1.xpose.msra.mxu0 0.0
        %2204 = vmatprep.subr.mxu0 0.0
        %2205 = vmatpush1.xpose.msra.mxu0 0.0
        %2206 = vmatprep.subr.mxu0 0.0
        %2207 = vmatpush1.xpose.msra.mxu0 0.0
        %2208 = vmatprep.subr.mxu0 0.0
        %2209 = vmatpush1.xpose.msra.mxu0 0.0
        %2210 = vmatprep.subr.mxu0 0.0
        %2211 = vmatpush1.xpose.msra.mxu0 0.0
        %2212 = vmatprep.subr.mxu0 0.0
        %2213 = vmatpush1.xpose.msra.mxu0 0.0
        %2214 = vmatprep.subr.mxu0 0.0
        %2215 = vmatpush1.xpose.msra.mxu0 0.0
        %2216 = vmatprep.subr.mxu0 0.0
        %2217 = vmatpush1.xpose.msra.mxu0 0.0
        %2218 = vmatprep.subr.mxu0 0.0
        %2219 = vmatpush1.xpose.msra.mxu0 0.0
        %2220 = vmatprep.subr.mxu0 0.0
        %2221 = vmatpush1.xpose.msra.mxu0 0.0
        %2222 = vmatprep.subr.mxu0 0.0
        %2223 = vmatpush1.xpose.msra.mxu0 0.0
        %2224 = vmatprep.subr.mxu0 0.0
        %2225 = vmatpush1.xpose.msra.mxu0 0.0
        %2226 = vmatprep.subr.mxu0 0.0
        %2227 = vmatpush1.xpose.msra.mxu0 0.0
        %2228 = vmatprep.subr.mxu0 0.0
        %2229 = vmatpush1.xpose.msra.mxu0 0.0
        %2230 = vmatprep.subr.mxu0 0.0
        %2231 = vmatpush1.xpose.msra.mxu0 %v2198
        %2232 = vmatprep.subr.mxu0 0.0
        %2233 = vmatpush2.xpose.msra.mxu0 0.0
        %2234 = vmatprep.subr.mxu0 0.0
        %2235 = vmatpush2.xpose.msra.mxu0 0.0
        %2236 = vmatprep.subr.mxu0 0.0
        %2237 = vmatpush2.xpose.msra.mxu0 0.0
        %2238 = vmatprep.subr.mxu0 0.0
        %2239 = vmatpush2.xpose.msra.mxu0 0.0
        %2240 = vmatprep.subr.mxu0 0.0
        %2241 = vmatpush2.xpose.msra.mxu0 0.0
        %2242 = vmatprep.subr.mxu0 0.0
        %2243 = vmatpush2.xpose.msra.mxu0 0.0
        %2244 = vmatprep.subr.mxu0 0.0
        %2245 = vmatpush2.xpose.msra.mxu0 0.0
        %2246 = vmatprep.subr.mxu0 0.0
        %2247 = vmatpush2.xpose.msra.mxu0 0.0
        %2248 = vmatprep.subr.mxu0 0.0
        %2249 = vmatpush2.xpose.msra.mxu0 0.0
        %2250 = vmatprep.subr.mxu0 0.0
        %2251 = vmatpush2.xpose.msra.mxu0 0.0
        %2252 = vmatprep.subr.mxu0 0.0
        %2253 = vmatpush2.xpose.msra.mxu0 0.0
        %2254 = vmatprep.subr.mxu0 0.0
        %2255 = vmatpush2.xpose.msra.mxu0 0.0
        %2256 = vmatprep.subr.mxu0 0.0
        %2257 = vmatpush2.xpose.msra.mxu0 0.0
        %2258 = vmatprep.subr.mxu0 0.0
        %2259 = vmatpush2.xpose.msra.mxu0 0.0
        %2260 = vmatprep.subr.mxu0 0.0
        %2261 = vmatpush2.xpose.msra.mxu0 0.0
        %2262 = vmatprep.subr.mxu0 0.0
        %2263 = vmatpush2.xpose.msra.mxu0 0.0
        %2264 = vmatprep.mubr.f32.mxu0 0.0
        %2265 = vmatmul.mubr.f32.gmra.mxu0 %v2195
        %v2266 = vpop.f32.mrf.mxu0
        %v2267 = vadd.f32 0.0, %v2266
        %v2268 = vpop.f32.mrf.mxu0
        %2269 = vdwg.mxu0
        %v2270 = vmul.f32 %v2267, 0.35355338
        %v2271 = vadd.f32 %v2270, %v804
        %v2272 = vsel %vm1032, %v2271, -inf
        %2273 = vmax.xlane.f32.xlu0 %v2272
        %v2274 = vpop.xlane.xlu0 %2273
        %v2275 = vsub.f32 %v2271, %v2274
        %v2276 = vmul.f32 %v2275, 1.442695
        %v2277 = vpow.pop %v2276
        %v2278 = vsel %vm1032, %v2277, 0.0
        %2279 = vadd.xlane.f32.xlu0 %v2278
        %v2280 = vpop.xlane.xlu0 %2279
        %v2281 = vrcp.pop %v2280
        %v2282 = vmul.f32 %v2277, %v2281
        %v2284 = vsel %vm1032, %v2282, 0
        %2286 = vmatprep.subr.mxu0 0.0
        %2287 = vmatpush1.msra.mxu0 0.0
        %2288 = vmatprep.subr.mxu0 0.0
        %2289 = vmatpush1.msra.mxu0 0.0
        %2290 = vmatprep.subr.mxu0 0.0
        %2291 = vmatpush1.msra.mxu0 0.0
        %2292 = vmatprep.subr.mxu0 0.0
        %2293 = vmatpush1.msra.mxu0 0.0
        %2294 = vmatprep.subr.mxu0 0.0
        %2295 = vmatpush1.msra.mxu0 0.0
        %2296 = vmatprep.subr.mxu0 0.0
        %2297 = vmatpush1.msra.mxu0 0.0
        %2298 = vmatprep.subr.mxu0 0.0
        %2299 = vmatpush1.msra.mxu0 0.0
        %2300 = vmatprep.subr.mxu0 0.0
        %2301 = vmatpush1.msra.mxu0 0.0
        %2302 = vmatprep.subr.mxu0 0.0
        %2303 = vmatpush1.msra.mxu0 0.0
        %2304 = vmatprep.subr.mxu0 0.0
        %2305 = vmatpush1.msra.mxu0 0.0
        %2306 = vmatprep.subr.mxu0 0.0
        %2307 = vmatpush1.msra.mxu0 0.0
        %2308 = vmatprep.subr.mxu0 0.0
        %2309 = vmatpush1.msra.mxu0 0.0
        %2310 = vmatprep.subr.mxu0 0.0
        %2311 = vmatpush1.msra.mxu0 0.0
        %2312 = vmatprep.subr.mxu0 0.0
        %2313 = vmatpush1.msra.mxu0 0.0
        %2314 = vmatprep.subr.mxu0 0.0
        %2315 = vmatpush1.msra.mxu0 0.0
        %2316 = vmatprep.subr.mxu0 0.0
        %2317 = vmatpush1.msra.mxu0 %v2191
        %2318 = vmatprep.subr.mxu0 0.0
        %2319 = vmatpush2.msra.mxu0 0.0
        %2320 = vmatprep.subr.mxu0 0.0
        %2321 = vmatpush2.msra.mxu0 0.0
        %2322 = vmatprep.subr.mxu0 0.0
        %2323 = vmatpush2.msra.mxu0 0.0
        %2324 = vmatprep.subr.mxu0 0.0
        %2325 = vmatpush2.msra.mxu0 0.0
        %2326 = vmatprep.subr.mxu0 0.0
        %2327 = vmatpush2.msra.mxu0 0.0
        %2328 = vmatprep.subr.mxu0 0.0
        %2329 = vmatpush2.msra.mxu0 0.0
        %2330 = vmatprep.subr.mxu0 0.0
        %2331 = vmatpush2.msra.mxu0 0.0
        %2332 = vmatprep.subr.mxu0 0.0
        %2333 = vmatpush2.msra.mxu0 0.0
        %2334 = vmatprep.subr.mxu0 0.0
        %2335 = vmatpush2.msra.mxu0 0.0
        %2336 = vmatprep.subr.mxu0 0.0
        %2337 = vmatpush2.msra.mxu0 0.0
        %2338 = vmatprep.subr.mxu0 0.0
        %2339 = vmatpush2.msra.mxu0 0.0
        %2340 = vmatprep.subr.mxu0 0.0
        %2341 = vmatpush2.msra.mxu0 0.0
        %2342 = vmatprep.subr.mxu0 0.0
        %2343 = vmatpush2.msra.mxu0 0.0
        %2344 = vmatprep.subr.mxu0 0.0
        %2345 = vmatpush2.msra.mxu0 0.0
        %2346 = vmatprep.subr.mxu0 0.0
        %2347 = vmatpush2.msra.mxu0 0.0
        %2348 = vmatprep.subr.mxu0 0.0
        %2349 = vmatpush2.msra.mxu0 0.0
        %2350 = vmatprep.mubr.f32.mxu0 0.0
        %2351 = vmatmul.mubr.f32.gmra.mxu0 %v2284
        %v2352 = vpop.f32.mrf.mxu0
        %v2353 = vadd.f32 0.0, %v2352
        %v2354 = vpop.f32.mrf.mxu0
        %2355 = vdwg.mxu0
        %2356 = vrot.lane.b32.xlu0 %v1508, 8
        %v2357 = vpop.permute.xlu0 %2356
        %2359 = vrot.lane.b32.xlu0 %v1895, 16
        %v2360 = vpop.permute.xlu0 %2359
        %2362 = vrot.lane.b32.xlu0 %v2282, 24
        %v2363 = vpop.permute.xlu0 %2362
        %v2365 = vsel %vm1032, %v1121, %v2357
        %vm2366 = vcmask 130048
        %v2367 = vsel %vm2366, %v2365, %v2360
        %vm2368 = vcmask 195584
        %v2369 = vsel %vm2368, %v2367, %v2363
        %2371 = vrot.lane.b32.xlu0 %v1579, 8
        %v2372 = vpop.permute.xlu0 %2371
        %2375 = vrot.lane.b32.xlu0 %v1966, 16
        %v2376 = vpop.permute.xlu0 %2375
        %2379 = vrot.lane.b32.xlu0 %v2353, 24
        %v2380 = vpop.permute.xlu0 %2379
        %v2382 = vsel %vm1032, %v1192, %v2372
        %v2383 = vsel %vm2366, %v2382, %v2376
        %v2384 = vsel %vm2368, %v2383, %v2380
        %v2385 = vld [vmem:[%s7] sm:$0xff]
        %v2386 = vld [vmem:[%s7 + $0x8] sm:$0xff]
        %v2387 = vld [vmem:[%s7 + $0x10] sm:$0xff]
        %v2388 = vld [vmem:[%s7 + $0x18] sm:$0xff]
        %v2390 = vsel %vm810, %v2384, 0
        %2392 = vmatprep.subr.mxu0 0.0
        %2393 = vmatpush1.msra.mxu0 0.0
        %2394 = vmatprep.subr.mxu0 0.0
        %2395 = vmatpush1.msra.mxu0 0.0
        %2396 = vmatprep.subr.mxu0 0.0
        %2397 = vmatpush1.msra.mxu0 0.0
        %2398 = vmatprep.subr.mxu0 0.0
        %2399 = vmatpush1.msra.mxu0 0.0
        %2400 = vmatprep.subr.mxu0 0.0
        %2401 = vmatpush1.msra.mxu0 0.0
        %2402 = vmatprep.subr.mxu0 0.0
        %2403 = vmatpush1.msra.mxu0 0.0
        %2404 = vmatprep.subr.mxu0 0.0
        %2405 = vmatpush1.msra.mxu0 0.0
        %2406 = vmatprep.subr.mxu0 0.0
        %2407 = vmatpush1.msra.mxu0 0.0
        %2408 = vmatprep.subr.mxu0 0.0
        %2409 = vmatpush1.msra.mxu0 0.0
        %2410 = vmatprep.subr.mxu0 0.0
        %2411 = vmatpush1.msra.mxu0 0.0
        %2412 = vmatprep.subr.mxu0 0.0
        %2413 = vmatpush1.msra.mxu0 0.0
        %2414 = vmatprep.subr.mxu0 0.0
        %2415 = vmatpush1.msra.mxu0 0.0
        %2416 = vmatprep.subr.mxu0 0.0
        %2417 = vmatpush1.msra.mxu0 %v2388
        %2418 = vmatprep.subr.mxu0 0.0
        %2419 = vmatpush1.msra.mxu0 %v2387
        %2420 = vmatprep.subr.mxu0 0.0
        %2421 = vmatpush1.msra.mxu0 %v2386
        %2422 = vmatprep.subr.mxu0 0.0
        %2423 = vmatpush1.msra.mxu0 %v2385
        %2424 = vmatprep.subr.mxu0 0.0
        %2425 = vmatpush2.msra.mxu0 0.0
        %2426 = vmatprep.subr.mxu0 0.0
        %2427 = vmatpush2.msra.mxu0 0.0
        %2428 = vmatprep.subr.mxu0 0.0
        %2429 = vmatpush2.msra.mxu0 0.0
        %2430 = vmatprep.subr.mxu0 0.0
        %2431 = vmatpush2.msra.mxu0 0.0
        %2432 = vmatprep.subr.mxu0 0.0
        %2433 = vmatpush2.msra.mxu0 0.0
        %2434 = vmatprep.subr.mxu0 0.0
        %2435 = vmatpush2.msra.mxu0 0.0
        %2436 = vmatprep.subr.mxu0 0.0
        %2437 = vmatpush2.msra.mxu0 0.0
        %2438 = vmatprep.subr.mxu0 0.0
        %2439 = vmatpush2.msra.mxu0 0.0
        %2440 = vmatprep.subr.mxu0 0.0
        %2441 = vmatpush2.msra.mxu0 0.0
        %2442 = vmatprep.subr.mxu0 0.0
        %2443 = vmatpush2.msra.mxu0 0.0
        %2444 = vmatprep.subr.mxu0 0.0
        %2445 = vmatpush2.msra.mxu0 0.0
        %2446 = vmatprep.subr.mxu0 0.0
        %2447 = vmatpush2.msra.mxu0 0.0
        %2448 = vmatprep.subr.mxu0 0.0
        %2449 = vmatpush2.msra.mxu0 0.0
        %2450 = vmatprep.subr.mxu0 0.0
        %2451 = vmatpush2.msra.mxu0 0.0
        %2452 = vmatprep.subr.mxu0 0.0
        %2453 = vmatpush2.msra.mxu0 0.0
        %2454 = vmatprep.subr.mxu0 0.0
        %2455 = vmatpush2.msra.mxu0 0.0
        %2456 = vmatprep.mubr.f32.mxu0 0.0
        %2457 = vmatmul.mubr.f32.gmra.mxu0 %v2390
        %v2458 = vpop.f32.mrf.mxu0
        %v2459 = vadd.f32 %v802, %v2458
        %v2460 = vpop.f32.mrf.mxu0
        %2461 = vdwg.mxu0
        %v2462 = vld [vmem:[%s8] sm:$0x1]
        %v2463 = vld [vmem:[%s9] sm:$0x1]
        %v2464 = vsel %vm810, %v2459, 0.0
        %2465 = vadd.xlane.f32.xlu0 %v2464
        %v2466 = vpop.xlane.xlu0 %2465
        %v2467 = vrcp.pop 32.0
        %v2468 = vmul.f32 %v2466, %v2467
        %v2469 = vsub.f32 %v2459, %v2468
        %v2470 = vmul.f32 %v2469, %v2469
        %v2471 = vsel %vm810, %v2470, 0.0
        %2472 = vadd.xlane.f32.xlu0 %v2471
        %v2473 = vpop.xlane.xlu0 %2472
        %v2474 = vmul.f32 %v2473, %v2467
        %v2475 = vadd.f32 %v2474, 1e-06
        %v2476 = vrsqrt.pop %v2475
        %v2477 = vmul.f32 %v2469, %v2476
        %v2479 = vlaneseq
        %v2480 = vshrl.u32 %v2479, 7
        %v2481 = vsub.s32 0, %v2480
        %v2482 = vrot.slane %v2462, %v2481
        %v2484 = vmul.f32 %v2477, %v2482
        %v2486 = vlaneseq
        %v2487 = vshrl.u32 %v2486, 7
        %v2488 = vsub.s32 0, %v2487
        %v2489 = vrot.slane %v2463, %v2488
        %v2491 = vadd.f32 %v2484, %v2489
        %v2492 = vld [vmem:[%s10] sm:$0xff]
        %v2493 = vld [vmem:[%s10 + $0x8] sm:$0xff]
        %v2494 = vld [vmem:[%s10 + $0x10] sm:$0xff]
        %v2495 = vld [vmem:[%s10 + $0x18] sm:$0xff]
        %v2497 = vsel %vm810, %v2491, 0
        %2499 = vmatprep.subr.mxu0 0.0
        %2500 = vmatpush1.msra.mxu0 0.0
        %2501 = vmatprep.subr.mxu0 0.0
        %2502 = vmatpush1.msra.mxu0 0.0
        %2503 = vmatprep.subr.mxu0 0.0
        %2504 = vmatpush1.msra.mxu0 0.0
        %2505 = vmatprep.subr.mxu0 0.0
        %2506 = vmatpush1.msra.mxu0 0.0
        %2507 = vmatprep.subr.mxu0 0.0
        %2508 = vmatpush1.msra.mxu0 0.0
        %2509 = vmatprep.subr.mxu0 0.0
        %2510 = vmatpush1.msra.mxu0 0.0
        %2511 = vmatprep.subr.mxu0 0.0
        %2512 = vmatpush1.msra.mxu0 0.0
        %2513 = vmatprep.subr.mxu0 0.0
        %2514 = vmatpush1.msra.mxu0 0.0
        %2515 = vmatprep.subr.mxu0 0.0
        %2516 = vmatpush1.msra.mxu0 0.0
        %2517 = vmatprep.subr.mxu0 0.0
        %2518 = vmatpush1.msra.mxu0 0.0
        %2519 = vmatprep.subr.mxu0 0.0
        %2520 = vmatpush1.msra.mxu0 0.0
        %2521 = vmatprep.subr.mxu0 0.0
        %2522 = vmatpush1.msra.mxu0 0.0
        %2523 = vmatprep.subr.mxu0 0.0
        %2524 = vmatpush1.msra.mxu0 %v2495
        %2525 = vmatprep.subr.mxu0 0.0
        %2526 = vmatpush1.msra.mxu0 %v2494
        %2527 = vmatprep.subr.mxu0 0.0
        %2528 = vmatpush1.msra.mxu0 %v2493
        %2529 = vmatprep.subr.mxu0 0.0
        %2530 = vmatpush1.msra.mxu0 %v2492
        %2531 = vmatprep.subr.mxu0 0.0
        %2532 = vmatpush2.msra.mxu0 0.0
        %2533 = vmatprep.subr.mxu0 0.0
        %2534 = vmatpush2.msra.mxu0 0.0
        %2535 = vmatprep.subr.mxu0 0.0
        %2536 = vmatpush2.msra.mxu0 0.0
        %2537 = vmatprep.subr.mxu0 0.0
        %2538 = vmatpush2.msra.mxu0 0.0
        %2539 = vmatprep.subr.mxu0 0.0
        %2540 = vmatpush2.msra.mxu0 0.0
        %2541 = vmatprep.subr.mxu0 0.0
        %2542 = vmatpush2.msra.mxu0 0.0
        %2543 = vmatprep.subr.mxu0 0.0
        %2544 = vmatpush2.msra.mxu0 0.0
        %2545 = vmatprep.subr.mxu0 0.0
        %2546 = vmatpush2.msra.mxu0 0.0
        %2547 = vmatprep.subr.mxu0 0.0
        %2548 = vmatpush2.msra.mxu0 0.0
        %2549 = vmatprep.subr.mxu0 0.0
        %2550 = vmatpush2.msra.mxu0 0.0
        %2551 = vmatprep.subr.mxu0 0.0
        %2552 = vmatpush2.msra.mxu0 0.0
        %2553 = vmatprep.subr.mxu0 0.0
        %2554 = vmatpush2.msra.mxu0 0.0
        %2555 = vmatprep.subr.mxu0 0.0
        %2556 = vmatpush2.msra.mxu0 0.0
        %2557 = vmatprep.subr.mxu0 0.0
        %2558 = vmatpush2.msra.mxu0 0.0
        %2559 = vmatprep.subr.mxu0 0.0
        %2560 = vmatpush2.msra.mxu0 0.0
        %2561 = vmatprep.subr.mxu0 0.0
        %2562 = vmatpush2.msra.mxu0 0.0
        %2563 = vmatprep.mubr.f32.mxu0 0.0
        %2564 = vmatmul.mubr.f32.gmra.mxu0 %v2497
        %v2565 = vpop.f32.mrf.mxu0
        %v2566 = vadd.f32 0.0, %v2565
        %v2567 = vpop.f32.mrf.mxu0
        %2568 = vdwg.mxu0
        %v2569 = vld [vmem:[%s11] sm:$0xff]
        %v2570 = vld [vmem:[%s11 + $0x8] sm:$0xff]
        %v2571 = vld [vmem:[%s11 + $0x10] sm:$0xff]
        %v2572 = vld [vmem:[%s11 + $0x18] sm:$0xff]
        %v2574 = vsel %vm810, %v803, 0
        %2576 = vmatprep.subr.mxu0 0.0
        %2577 = vmatpush1.msra.mxu0 0.0
        %2578 = vmatprep.subr.mxu0 0.0
        %2579 = vmatpush1.msra.mxu0 0.0
        %2580 = vmatprep.subr.mxu0 0.0
        %2581 = vmatpush1.msra.mxu0 0.0
        %2582 = vmatprep.subr.mxu0 0.0
        %2583 = vmatpush1.msra.mxu0 0.0
        %2584 = vmatprep.subr.mxu0 0.0
        %2585 = vmatpush1.msra.mxu0 0.0
        %2586 = vmatprep.subr.mxu0 0.0
        %2587 = vmatpush1.msra.mxu0 0.0
        %2588 = vmatprep.subr.mxu0 0.0
        %2589 = vmatpush1.msra.mxu0 0.0
        %2590 = vmatprep.subr.mxu0 0.0
        %2591 = vmatpush1.msra.mxu0 0.0
        %2592 = vmatprep.subr.mxu0 0.0
        %2593 = vmatpush1.msra.mxu0 0.0
        %2594 = vmatprep.subr.mxu0 0.0
        %2595 = vmatpush1.msra.mxu0 0.0
        %2596 = vmatprep.subr.mxu0 0.0
        %2597 = vmatpush1.msra.mxu0 0.0
        %2598 = vmatprep.subr.mxu0 0.0
        %2599 = vmatpush1.msra.mxu0 0.0
        %2600 = vmatprep.subr.mxu0 0.0
        %2601 = vmatpush1.msra.mxu0 %v2572
        %2602 = vmatprep.subr.mxu0 0.0
        %2603 = vmatpush1.msra.mxu0 %v2571
        %2604 = vmatprep.subr.mxu0 0.0
        %2605 = vmatpush1.msra.mxu0 %v2570
        %2606 = vmatprep.subr.mxu0 0.0
        %2607 = vmatpush1.msra.mxu0 %v2569
        %2608 = vmatprep.subr.mxu0 0.0
        %2609 = vmatpush2.msra.mxu0 0.0
        %2610 = vmatprep.subr.mxu0 0.0
        %2611 = vmatpush2.msra.mxu0 0.0
        %2612 = vmatprep.subr.mxu0 0.0
        %2613 = vmatpush2.msra.mxu0 0.0
        %2614 = vmatprep.subr.mxu0 0.0
        %2615 = vmatpush2.msra.mxu0 0.0
        %2616 = vmatprep.subr.mxu0 0.0
        %2617 = vmatpush2.msra.mxu0 0.0
        %2618 = vmatprep.subr.mxu0 0.0
        %2619 = vmatpush2.msra.mxu0 0.0
        %2620 = vmatprep.subr.mxu0 0.0
        %2621 = vmatpush2.msra.mxu0 0.0
        %2622 = vmatprep.subr.mxu0 0.0
        %2623 = vmatpush2.msra.mxu0 0.0
        %2624 = vmatprep.subr.mxu0 0.0
        %2625 = vmatpush2.msra.mxu0 0.0
        %2626 = vmatprep.subr.mxu0 0.0
        %2627 = vmatpush2.msra.mxu0 0.0
        %2628 = vmatprep.subr.mxu0 0.0
        %2629 = vmatpush2.msra.mxu0 0.0
        %2630 = vmatprep.subr.mxu0 0.0
        %2631 = vmatpush2.msra.mxu0 0.0
        %2632 = vmatprep.subr.mxu0 0.0
        %2633 = vmatpush2.msra.mxu0 0.0
        %2634 = vmatprep.subr.mxu0 0.0
        %2635 = vmatpush2.msra.mxu0 0.0
        %2636 = vmatprep.subr.mxu0 0.0
        %2637 = vmatpush2.msra.mxu0 0.0
        %2638 = vmatprep.subr.mxu0 0.0
        %2639 = vmatpush2.msra.mxu0 0.0
        %2640 = vmatprep.mubr.f32.mxu0 0.0
        %2641 = vmatmul.mubr.f32.gmra.mxu0 %v2574
        %v2642 = vpop.f32.mrf.mxu0
        %v2643 = vadd.f32 0.0, %v2642
        %v2644 = vpop.f32.mrf.mxu0
        %2645 = vdwg.mxu0
        %v2646 = vld [vmem:[%s12] sm:$0xff]
        %v2647 = vld [vmem:[%s12 + $0x8] sm:$0xff]
        %v2648 = vld [vmem:[%s12 + $0x10] sm:$0xff]
        %v2649 = vld [vmem:[%s12 + $0x18] sm:$0xff]
        %2650 = vmatprep.subr.mxu0 0.0
        %2651 = vmatpush1.msra.mxu0 0.0
        %2652 = vmatprep.subr.mxu0 0.0
        %2653 = vmatpush1.msra.mxu0 0.0
        %2654 = vmatprep.subr.mxu0 0.0
        %2655 = vmatpush1.msra.mxu0 0.0
        %2656 = vmatprep.subr.mxu0 0.0
        %2657 = vmatpush1.msra.mxu0 0.0
        %2658 = vmatprep.subr.mxu0 0.0
        %2659 = vmatpush1.msra.mxu0 0.0
        %2660 = vmatprep.subr.mxu0 0.0
        %2661 = vmatpush1.msra.mxu0 0.0
        %2662 = vmatprep.subr.mxu0 0.0
        %2663 = vmatpush1.msra.mxu0 0.0
        %2664 = vmatprep.subr.mxu0 0.0
        %2665 = vmatpush1.msra.mxu0 0.0
        %2666 = vmatprep.subr.mxu0 0.0
        %2667 = vmatpush1.msra.mxu0 0.0
        %2668 = vmatprep.subr.mxu0 0.0
        %2669 = vmatpush1.msra.mxu0 0.0
        %2670 = vmatprep.subr.mxu0 0.0
        %2671 = vmatpush1.msra.mxu0 0.0
        %2672 = vmatprep.subr.mxu0 0.0
        %2673 = vmatpush1.msra.mxu0 0.0
        %2674 = vmatprep.subr.mxu0 0.0
        %2675 = vmatpush1.msra.mxu0 %v2649
        %2676 = vmatprep.subr.mxu0 0.0
        %2677 = vmatpush1.msra.mxu0 %v2648
        %2678 = vmatprep.subr.mxu0 0.0
        %2679 = vmatpush1.msra.mxu0 %v2647
        %2680 = vmatprep.subr.mxu0 0.0
        %2681 = vmatpush1.msra.mxu0 %v2646
        %2682 = vmatprep.subr.mxu0 0.0
        %2683 = vmatpush2.msra.mxu0 0.0
        %2684 = vmatprep.subr.mxu0 0.0
        %2685 = vmatpush2.msra.mxu0 0.0
        %2686 = vmatprep.subr.mxu0 0.0
        %2687 = vmatpush2.msra.mxu0 0.0
        %2688 = vmatprep.subr.mxu0 0.0
        %2689 = vmatpush2.msra.mxu0 0.0
        %2690 = vmatprep.subr.mxu0 0.0
        %2691 = vmatpush2.msra.mxu0 0.0
        %2692 = vmatprep.subr.mxu0 0.0
        %2693 = vmatpush2.msra.mxu0 0.0
        %2694 = vmatprep.subr.mxu0 0.0
        %2695 = vmatpush2.msra.mxu0 0.0
        %2696 = vmatprep.subr.mxu0 0.0
        %2697 = vmatpush2.msra.mxu0 0.0
        %2698 = vmatprep.subr.mxu0 0.0
        %2699 = vmatpush2.msra.mxu0 0.0
        %2700 = vmatprep.subr.mxu0 0.0
        %2701 = vmatpush2.msra.mxu0 0.0
        %2702 = vmatprep.subr.mxu0 0.0
        %2703 = vmatpush2.msra.mxu0 0.0
        %2704 = vmatprep.subr.mxu0 0.0
        %2705 = vmatpush2.msra.mxu0 0.0
        %2706 = vmatprep.subr.mxu0 0.0
        %2707 = vmatpush2.msra.mxu0 0.0
        %2708 = vmatprep.subr.mxu0 0.0
        %2709 = vmatpush2.msra.mxu0 0.0
        %2710 = vmatprep.subr.mxu0 0.0
        %2711 = vmatpush2.msra.mxu0 0.0
        %2712 = vmatprep.subr.mxu0 0.0
        %2713 = vmatpush2.msra.mxu0 0.0
        %2714 = vmatprep.mubr.f32.mxu0 0.0
        %2715 = vmatmul.mubr.f32.gmra.mxu0 %v2574
        %v2716 = vpop.f32.mrf.mxu0
        %v2717 = vadd.f32 0.0, %v2716
        %v2718 = vpop.f32.mrf.mxu0
        %2719 = vdwg.mxu0
        %v2721 = vsel %vm1032, %v2566, 0
        %v2724 = vsel %vm1032, %v2643, 0
        %2726 = vmatprep.subr.mxu0 0.0
        %2727 = vmatpush1.xpose.msra.mxu0 0.0
        %2728 = vmatprep.subr.mxu0 0.0
        %2729 = vmatpush1.xpose.msra.mxu0 0.0
        %2730 = vmatprep.subr.mxu0 0.0
        %2731 = vmatpush1.xpose.msra.mxu0 0.0
        %2732 = vmatprep.subr.mxu0 0.0
        %2733 = vmatpush1.xpose.msra.mxu0 0.0
        %2734 = vmatprep.subr.mxu0 0.0
        %2735 = vmatpush1.xpose.msra.mxu0 0.0
        %2736 = vmatprep.subr.mxu0 0.0
        %2737 = vmatpush1.xpose.msra.mxu0 0.0
        %2738 = vmatprep.subr.mxu0 0.0
        %2739 = vmatpush1.xpose.msra.mxu0 0.0
        %2740 = vmatprep.subr.mxu0 0.0
        %2741 = vmatpush1.xpose.msra.mxu0 0.0
        %2742 = vmatprep.subr.mxu0 0.0
        %2743 = vmatpush1.xpose.msra.mxu0 0.0
        %2744 = vmatprep.subr.mxu0 0.0
        %2745 = vmatpush1.xpose.msra.mxu0 0.0
        %2746 = vmatprep.subr.mxu0 0.0
        %2747 = vmatpush1.xpose.msra.mxu0 0.0
        %2748 = vmatprep.subr.mxu0 0.0
        %2749 = vmatpush1.xpose.msra.mxu0 0.0
        %2750 = vmatprep.subr.mxu0 0.0
        %2751 = vmatpush1.xpose.msra.mxu0 0.0
        %2752 = vmatprep.subr.mxu0 0.0
        %2753 = vmatpush1.xpose.msra.mxu0 0.0
        %2754 = vmatprep.subr.mxu0 0.0
        %2755 = vmatpush1.xpose.msra.mxu0 0.0
        %2756 = vmatprep.subr.mxu0 0.0
        %2757 = vmatpush1.xpose.msra.mxu0 %v2724
        %2758 = vmatprep.subr.mxu0 0.0
        %2759 = vmatpush2.xpose.msra.mxu0 0.0
        %2760 = vmatprep.subr.mxu0 0.0
        %2761 = vmatpush2.xpose.msra.mxu0 0.0
        %2762 = vmatprep.subr.mxu0 0.0
        %2763 = vmatpush2.xpose.msra.mxu0 0.0
        %2764 = vmatprep.subr.mxu0 0.0
        %2765 = vmatpush2.xpose.msra.mxu0 0.0
        %2766 = vmatprep.subr.mxu0 0.0
        %2767 = vmatpush2.xpose.msra.mxu0 0.0
        %2768 = vmatprep.subr.mxu0 0.0
        %2769 = vmatpush2.xpose.msra.mxu0 0.0
        %2770 = vmatprep.subr.mxu0 0.0
        %2771 = vmatpush2.xpose.msra.mxu0 0.0
        %2772 = vmatprep.subr.mxu0 0.0
        %2773 = vmatpush2.xpose.msra.mxu0 0.0
        %2774 = vmatprep.subr.mxu0 0.0
        %2775 = vmatpush2.xpose.msra.mxu0 0.0
        %2776 = vmatprep.subr.mxu0 0.0
        %2777 = vmatpush2.xpose.msra.mxu0 0.0
        %2778 = vmatprep.subr.mxu0 0.0
        %2779 = vmatpush2.xpose.msra.mxu0 0.0
        %2780 = vmatprep.subr.mxu0 0.0
        %2781 = vmatpush2.xpose.msra.mxu0 0.0
        %2782 = vmatprep.subr.mxu0 0.0
        %2783 = vmatpush2.xpose.msra.mxu0 0.0
        %2784 = vmatprep.subr.mxu0 0.0
        %2785 = vmatpush2.xpose.msra.mxu0 0.0
        %2786 = vmatprep.subr.mxu0 0.0
        %2787 = vmatpush2.xpose.msra.mxu0 0.0
        %2788 = vmatprep.subr.mxu0 0.0
        %2789 = vmatpush2.xpose.msra.mxu0 0.0
        %2790 = vmatprep.mubr.f32.mxu0 0.0
        %2791 = vmatmul.mubr.f32.gmra.mxu0 %v2721
        %v2792 = vpop.f32.mrf.mxu0
        %v2793 = vadd.f32 0.0, %v2792
        %v2794 = vpop.f32.mrf.mxu0
        %2795 = vdwg.mxu0
        %v2796 = vmul.f32 %v2793, 0.35355338
        %v2797 = vadd.f32 %v2796, %v805
        %v2798 = vsel %vm1032, %v2797, -inf
        %2799 = vmax.xlane.f32.xlu0 %v2798
        %v2800 = vpop.xlane.xlu0 %2799
        %v2801 = vsub.f32 %v2797, %v2800
        %v2802 = vmul.f32 %v2801, 1.442695
        %v2803 = vpow.pop %v2802
        %v2804 = vsel %vm1032, %v2803, 0.0
        %2805 = vadd.xlane.f32.xlu0 %v2804
        %v2806 = vpop.xlane.xlu0 %2805
        %v2807 = vrcp.pop %v2806
        %v2808 = vmul.f32 %v2803, %v2807
        %v2810 = vsel %vm1032, %v2808, 0
        %2812 = vmatprep.subr.mxu0 0.0
        %2813 = vmatpush1.msra.mxu0 0.0
        %2814 = vmatprep.subr.mxu0 0.0
        %2815 = vmatpush1.msra.mxu0 0.0
        %2816 = vmatprep.subr.mxu0 0.0
        %2817 = vmatpush1.msra.mxu0 0.0
        %2818 = vmatprep.subr.mxu0 0.0
        %2819 = vmatpush1.msra.mxu0 0.0
        %2820 = vmatprep.subr.mxu0 0.0
        %2821 = vmatpush1.msra.mxu0 0.0
        %2822 = vmatprep.subr.mxu0 0.0
        %2823 = vmatpush1.msra.mxu0 0.0
        %2824 = vmatprep.subr.mxu0 0.0
        %2825 = vmatpush1.msra.mxu0 0.0
        %2826 = vmatprep.subr.mxu0 0.0
        %2827 = vmatpush1.msra.mxu0 0.0
        %2828 = vmatprep.subr.mxu0 0.0
        %2829 = vmatpush1.msra.mxu0 0.0
        %2830 = vmatprep.subr.mxu0 0.0
        %2831 = vmatpush1.msra.mxu0 0.0
        %2832 = vmatprep.subr.mxu0 0.0
        %2833 = vmatpush1.msra.mxu0 0.0
        %2834 = vmatprep.subr.mxu0 0.0
        %2835 = vmatpush1.msra.mxu0 0.0
        %2836 = vmatprep.subr.mxu0 0.0
        %2837 = vmatpush1.msra.mxu0 0.0
        %2838 = vmatprep.subr.mxu0 0.0
        %2839 = vmatpush1.msra.mxu0 0.0
        %2840 = vmatprep.subr.mxu0 0.0
        %2841 = vmatpush1.msra.mxu0 0.0
        %2842 = vmatprep.subr.mxu0 0.0
        %2843 = vmatpush1.msra.mxu0 %v2717
        %2844 = vmatprep.subr.mxu0 0.0
        %2845 = vmatpush2.msra.mxu0 0.0
        %2846 = vmatprep.subr.mxu0 0.0
        %2847 = vmatpush2.msra.mxu0 0.0
        %2848 = vmatprep.subr.mxu0 0.0
        %2849 = vmatpush2.msra.mxu0 0.0
        %2850 = vmatprep.subr.mxu0 0.0
        %2851 = vmatpush2.msra.mxu0 0.0
        %2852 = vmatprep.subr.mxu0 0.0
        %2853 = vmatpush2.msra.mxu0 0.0
        %2854 = vmatprep.subr.mxu0 0.0
        %2855 = vmatpush2.msra.mxu0 0.0
        %2856 = vmatprep.subr.mxu0 0.0
        %2857 = vmatpush2.msra.mxu0 0.0
        %2858 = vmatprep.subr.mxu0 0.0
        %2859 = vmatpush2.msra.mxu0 0.0
        %2860 = vmatprep.subr.mxu0 0.0
        %2861 = vmatpush2.msra.mxu0 0.0
        %2862 = vmatprep.subr.mxu0 0.0
        %2863 = vmatpush2.msra.mxu0 0.0
        %2864 = vmatprep.subr.mxu0 0.0
        %2865 = vmatpush2.msra.mxu0 0.0
        %2866 = vmatprep.subr.mxu0 0.0
        %2867 = vmatpush2.msra.mxu0 0.0
        %2868 = vmatprep.subr.mxu0 0.0
        %2869 = vmatpush2.msra.mxu0 0.0
        %2870 = vmatprep.subr.mxu0 0.0
        %2871 = vmatpush2.msra.mxu0 0.0
        %2872 = vmatprep.subr.mxu0 0.0
        %2873 = vmatpush2.msra.mxu0 0.0
        %2874 = vmatprep.subr.mxu0 0.0
        %2875 = vmatpush2.msra.mxu0 0.0
        %2876 = vmatprep.mubr.f32.mxu0 0.0
        %2877 = vmatmul.mubr.f32.gmra.mxu0 %v2810
        %v2878 = vpop.f32.mrf.mxu0
        %v2879 = vadd.f32 0.0, %v2878
        %v2880 = vpop.f32.mrf.mxu0
        %2881 = vdwg.mxu0
        %s2882 = scalar_lea.vmem %s10, 32
        %v2883 = vld [vmem:[%s2882] sm:$0xff]
        %v2884 = vld [vmem:[%s2882 + $0x8] sm:$0xff]
        %v2885 = vld [vmem:[%s2882 + $0x10] sm:$0xff]
        %v2886 = vld [vmem:[%s2882 + $0x18] sm:$0xff]
        %2887 = vmatprep.subr.mxu0 0.0
        %2888 = vmatpush1.msra.mxu0 0.0
        %2889 = vmatprep.subr.mxu0 0.0
        %2890 = vmatpush1.msra.mxu0 0.0
        %2891 = vmatprep.subr.mxu0 0.0
        %2892 = vmatpush1.msra.mxu0 0.0
        %2893 = vmatprep.subr.mxu0 0.0
        %2894 = vmatpush1.msra.mxu0 0.0
        %2895 = vmatprep.subr.mxu0 0.0
        %2896 = vmatpush1.msra.mxu0 0.0
        %2897 = vmatprep.subr.mxu0 0.0
        %2898 = vmatpush1.msra.mxu0 0.0
        %2899 = vmatprep.subr.mxu0 0.0
        %2900 = vmatpush1.msra.mxu0 0.0
        %2901 = vmatprep.subr.mxu0 0.0
        %2902 = vmatpush1.msra.mxu0 0.0
        %2903 = vmatprep.subr.mxu0 0.0
        %2904 = vmatpush1.msra.mxu0 0.0
        %2905 = vmatprep.subr.mxu0 0.0
        %2906 = vmatpush1.msra.mxu0 0.0
        %2907 = vmatprep.subr.mxu0 0.0
        %2908 = vmatpush1.msra.mxu0 0.0
        %2909 = vmatprep.subr.mxu0 0.0
        %2910 = vmatpush1.msra.mxu0 0.0
        %2911 = vmatprep.subr.mxu0 0.0
        %2912 = vmatpush1.msra.mxu0 %v2886
        %2913 = vmatprep.subr.mxu0 0.0
        %2914 = vmatpush1.msra.mxu0 %v2885
        %2915 = vmatprep.subr.mxu0 0.0
        %2916 = vmatpush1.msra.mxu0 %v2884
        %2917 = vmatprep.subr.mxu0 0.0
        %2918 = vmatpush1.msra.mxu0 %v2883
        %2919 = vmatprep.subr.mxu0 0.0
        %2920 = vmatpush2.msra.mxu0 0.0
        %2921 = vmatprep.subr.mxu0 0.0
        %2922 = vmatpush2.msra.mxu0 0.0
        %2923 = vmatprep.subr.mxu0 0.0
        %2924 = vmatpush2.msra.mxu0 0.0
        %2925 = vmatprep.subr.mxu0 0.0
        %2926 = vmatpush2.msra.mxu0 0.0
        %2927 = vmatprep.subr.mxu0 0.0
        %2928 = vmatpush2.msra.mxu0 0.0
        %2929 = vmatprep.subr.mxu0 0.0
        %2930 = vmatpush2.msra.mxu0 0.0
        %2931 = vmatprep.subr.mxu0 0.0
        %2932 = vmatpush2.msra.mxu0 0.0
        %2933 = vmatprep.subr.mxu0 0.0
        %2934 = vmatpush2.msra.mxu0 0.0
        %2935 = vmatprep.subr.mxu0 0.0
        %2936 = vmatpush2.msra.mxu0 0.0
        %2937 = vmatprep.subr.mxu0 0.0
        %2938 = vmatpush2.msra.mxu0 0.0
        %2939 = vmatprep.subr.mxu0 0.0
        %2940 = vmatpush2.msra.mxu0 0.0
        %2941 = vmatprep.subr.mxu0 0.0
        %2942 = vmatpush2.msra.mxu0 0.0
        %2943 = vmatprep.subr.mxu0 0.0
        %2944 = vmatpush2.msra.mxu0 0.0
        %2945 = vmatprep.subr.mxu0 0.0
        %2946 = vmatpush2.msra.mxu0 0.0
        %2947 = vmatprep.subr.mxu0 0.0
        %2948 = vmatpush2.msra.mxu0 0.0
        %2949 = vmatprep.subr.mxu0 0.0
        %2950 = vmatpush2.msra.mxu0 0.0
        %2951 = vmatprep.mubr.f32.mxu0 0.0
        %2952 = vmatmul.mubr.f32.gmra.mxu0 %v2497
        %v2953 = vpop.f32.mrf.mxu0
        %v2954 = vadd.f32 0.0, %v2953
        %v2955 = vpop.f32.mrf.mxu0
        %2956 = vdwg.mxu0
        %s2957 = scalar_lea.vmem %s11, 32
        %v2958 = vld [vmem:[%s2957] sm:$0xff]
        %v2959 = vld [vmem:[%s2957 + $0x8] sm:$0xff]
        %v2960 = vld [vmem:[%s2957 + $0x10] sm:$0xff]
        %v2961 = vld [vmem:[%s2957 + $0x18] sm:$0xff]
        %2962 = vmatprep.subr.mxu0 0.0
        %2963 = vmatpush1.msra.mxu0 0.0
        %2964 = vmatprep.subr.mxu0 0.0
        %2965 = vmatpush1.msra.mxu0 0.0
        %2966 = vmatprep.subr.mxu0 0.0
        %2967 = vmatpush1.msra.mxu0 0.0
        %2968 = vmatprep.subr.mxu0 0.0
        %2969 = vmatpush1.msra.mxu0 0.0
        %2970 = vmatprep.subr.mxu0 0.0
        %2971 = vmatpush1.msra.mxu0 0.0
        %2972 = vmatprep.subr.mxu0 0.0
        %2973 = vmatpush1.msra.mxu0 0.0
        %2974 = vmatprep.subr.mxu0 0.0
        %2975 = vmatpush1.msra.mxu0 0.0
        %2976 = vmatprep.subr.mxu0 0.0
        %2977 = vmatpush1.msra.mxu0 0.0
        %2978 = vmatprep.subr.mxu0 0.0
        %2979 = vmatpush1.msra.mxu0 0.0
        %2980 = vmatprep.subr.mxu0 0.0
        %2981 = vmatpush1.msra.mxu0 0.0
        %2982 = vmatprep.subr.mxu0 0.0
        %2983 = vmatpush1.msra.mxu0 0.0
        %2984 = vmatprep.subr.mxu0 0.0
        %2985 = vmatpush1.msra.mxu0 0.0
        %2986 = vmatprep.subr.mxu0 0.0
        %2987 = vmatpush1.msra.mxu0 %v2961
        %2988 = vmatprep.subr.mxu0 0.0
        %2989 = vmatpush1.msra.mxu0 %v2960
        %2990 = vmatprep.subr.mxu0 0.0
        %2991 = vmatpush1.msra.mxu0 %v2959
        %2992 = vmatprep.subr.mxu0 0.0
        %2993 = vmatpush1.msra.mxu0 %v2958
        %2994 = vmatprep.subr.mxu0 0.0
        %2995 = vmatpush2.msra.mxu0 0.0
        %2996 = vmatprep.subr.mxu0 0.0
        %2997 = vmatpush2.msra.mxu0 0.0
        %2998 = vmatprep.subr.mxu0 0.0
        %2999 = vmatpush2.msra.mxu0 0.0
        %3000 = vmatprep.subr.mxu0 0.0
        %3001 = vmatpush2.msra.mxu0 0.0
        %3002 = vmatprep.subr.mxu0 0.0
        %3003 = vmatpush2.msra.mxu0 0.0
        %3004 = vmatprep.subr.mxu0 0.0
        %3005 = vmatpush2.msra.mxu0 0.0
        %3006 = vmatprep.subr.mxu0 0.0
        %3007 = vmatpush2.msra.mxu0 0.0
        %3008 = vmatprep.subr.mxu0 0.0
        %3009 = vmatpush2.msra.mxu0 0.0
        %3010 = vmatprep.subr.mxu0 0.0
        %3011 = vmatpush2.msra.mxu0 0.0
        %3012 = vmatprep.subr.mxu0 0.0
        %3013 = vmatpush2.msra.mxu0 0.0
        %3014 = vmatprep.subr.mxu0 0.0
        %3015 = vmatpush2.msra.mxu0 0.0
        %3016 = vmatprep.subr.mxu0 0.0
        %3017 = vmatpush2.msra.mxu0 0.0
        %3018 = vmatprep.subr.mxu0 0.0
        %3019 = vmatpush2.msra.mxu0 0.0
        %3020 = vmatprep.subr.mxu0 0.0
        %3021 = vmatpush2.msra.mxu0 0.0
        %3022 = vmatprep.subr.mxu0 0.0
        %3023 = vmatpush2.msra.mxu0 0.0
        %3024 = vmatprep.subr.mxu0 0.0
        %3025 = vmatpush2.msra.mxu0 0.0
        %3026 = vmatprep.mubr.f32.mxu0 0.0
        %3027 = vmatmul.mubr.f32.gmra.mxu0 %v2574
        %v3028 = vpop.f32.mrf.mxu0
        %v3029 = vadd.f32 0.0, %v3028
        %v3030 = vpop.f32.mrf.mxu0
        %3031 = vdwg.mxu0
        %s3032 = scalar_lea.vmem %s12, 32
        %v3033 = vld [vmem:[%s3032] sm:$0xff]
        %v3034 = vld [vmem:[%s3032 + $0x8] sm:$0xff]
        %v3035 = vld [vmem:[%s3032 + $0x10] sm:$0xff]
        %v3036 = vld [vmem:[%s3032 + $0x18] sm:$0xff]
        %3037 = vmatprep.subr.mxu0 0.0
        %3038 = vmatpush1.msra.mxu0 0.0
        %3039 = vmatprep.subr.mxu0 0.0
        %3040 = vmatpush1.msra.mxu0 0.0
        %3041 = vmatprep.subr.mxu0 0.0
        %3042 = vmatpush1.msra.mxu0 0.0
        %3043 = vmatprep.subr.mxu0 0.0
        %3044 = vmatpush1.msra.mxu0 0.0
        %3045 = vmatprep.subr.mxu0 0.0
        %3046 = vmatpush1.msra.mxu0 0.0
        %3047 = vmatprep.subr.mxu0 0.0
        %3048 = vmatpush1.msra.mxu0 0.0
        %3049 = vmatprep.subr.mxu0 0.0
        %3050 = vmatpush1.msra.mxu0 0.0
        %3051 = vmatprep.subr.mxu0 0.0
        %3052 = vmatpush1.msra.mxu0 0.0
        %3053 = vmatprep.subr.mxu0 0.0
        %3054 = vmatpush1.msra.mxu0 0.0
        %3055 = vmatprep.subr.mxu0 0.0
        %3056 = vmatpush1.msra.mxu0 0.0
        %3057 = vmatprep.subr.mxu0 0.0
        %3058 = vmatpush1.msra.mxu0 0.0
        %3059 = vmatprep.subr.mxu0 0.0
        %3060 = vmatpush1.msra.mxu0 0.0
        %3061 = vmatprep.subr.mxu0 0.0
        %3062 = vmatpush1.msra.mxu0 %v3036
        %3063 = vmatprep.subr.mxu0 0.0
        %3064 = vmatpush1.msra.mxu0 %v3035
        %3065 = vmatprep.subr.mxu0 0.0
        %3066 = vmatpush1.msra.mxu0 %v3034
        %3067 = vmatprep.subr.mxu0 0.0
        %3068 = vmatpush1.msra.mxu0 %v3033
        %3069 = vmatprep.subr.mxu0 0.0
        %3070 = vmatpush2.msra.mxu0 0.0
        %3071 = vmatprep.subr.mxu0 0.0
        %3072 = vmatpush2.msra.mxu0 0.0
        %3073 = vmatprep.subr.mxu0 0.0
        %3074 = vmatpush2.msra.mxu0 0.0
        %3075 = vmatprep.subr.mxu0 0.0
        %3076 = vmatpush2.msra.mxu0 0.0
        %3077 = vmatprep.subr.mxu0 0.0
        %3078 = vmatpush2.msra.mxu0 0.0
        %3079 = vmatprep.subr.mxu0 0.0
        %3080 = vmatpush2.msra.mxu0 0.0
        %3081 = vmatprep.subr.mxu0 0.0
        %3082 = vmatpush2.msra.mxu0 0.0
        %3083 = vmatprep.subr.mxu0 0.0
        %3084 = vmatpush2.msra.mxu0 0.0
        %3085 = vmatprep.subr.mxu0 0.0
        %3086 = vmatpush2.msra.mxu0 0.0
        %3087 = vmatprep.subr.mxu0 0.0
        %3088 = vmatpush2.msra.mxu0 0.0
        %3089 = vmatprep.subr.mxu0 0.0
        %3090 = vmatpush2.msra.mxu0 0.0
        %3091 = vmatprep.subr.mxu0 0.0
        %3092 = vmatpush2.msra.mxu0 0.0
        %3093 = vmatprep.subr.mxu0 0.0
        %3094 = vmatpush2.msra.mxu0 0.0
        %3095 = vmatprep.subr.mxu0 0.0
        %3096 = vmatpush2.msra.mxu0 0.0
        %3097 = vmatprep.subr.mxu0 0.0
        %3098 = vmatpush2.msra.mxu0 0.0
        %3099 = vmatprep.subr.mxu0 0.0
        %3100 = vmatpush2.msra.mxu0 0.0
        %3101 = vmatprep.mubr.f32.mxu0 0.0
        %3102 = vmatmul.mubr.f32.gmra.mxu0 %v2574
        %v3103 = vpop.f32.mrf.mxu0
        %v3104 = vadd.f32 0.0, %v3103
        %v3105 = vpop.f32.mrf.mxu0
        %3106 = vdwg.mxu0
        %v3108 = vsel %vm1032, %v2954, 0
        %v3111 = vsel %vm1032, %v3029, 0
        %3113 = vmatprep.subr.mxu0 0.0
        %3114 = vmatpush1.xpose.msra.mxu0 0.0
        %3115 = vmatprep.subr.mxu0 0.0
        %3116 = vmatpush1.xpose.msra.mxu0 0.0
        %3117 = vmatprep.subr.mxu0 0.0
        %3118 = vmatpush1.xpose.msra.mxu0 0.0
        %3119 = vmatprep.subr.mxu0 0.0
        %3120 = vmatpush1.xpose.msra.mxu0 0.0
        %3121 = vmatprep.subr.mxu0 0.0
        %3122 = vmatpush1.xpose.msra.mxu0 0.0
        %3123 = vmatprep.subr.mxu0 0.0
        %3124 = vmatpush1.xpose.msra.mxu0 0.0
        %3125 = vmatprep.subr.mxu0 0.0
        %3126 = vmatpush1.xpose.msra.mxu0 0.0
        %3127 = vmatprep.subr.mxu0 0.0
        %3128 = vmatpush1.xpose.msra.mxu0 0.0
        %3129 = vmatprep.subr.mxu0 0.0
        %3130 = vmatpush1.xpose.msra.mxu0 0.0
        %3131 = vmatprep.subr.mxu0 0.0
        %3132 = vmatpush1.xpose.msra.mxu0 0.0
        %3133 = vmatprep.subr.mxu0 0.0
        %3134 = vmatpush1.xpose.msra.mxu0 0.0
        %3135 = vmatprep.subr.mxu0 0.0
        %3136 = vmatpush1.xpose.msra.mxu0 0.0
        %3137 = vmatprep.subr.mxu0 0.0
        %3138 = vmatpush1.xpose.msra.mxu0 0.0
        %3139 = vmatprep.subr.mxu0 0.0
        %3140 = vmatpush1.xpose.msra.mxu0 0.0
        %3141 = vmatprep.subr.mxu0 0.0
        %3142 = vmatpush1.xpose.msra.mxu0 0.0
        %3143 = vmatprep.subr.mxu0 0.0
        %3144 = vmatpush1.xpose.msra.mxu0 %v3111
        %3145 = vmatprep.subr.mxu0 0.0
        %3146 = vmatpush2.xpose.msra.mxu0 0.0
        %3147 = vmatprep.subr.mxu0 0.0
        %3148 = vmatpush2.xpose.msra.mxu0 0.0
        %3149 = vmatprep.subr.mxu0 0.0
        %3150 = vmatpush2.xpose.msra.mxu0 0.0
        %3151 = vmatprep.subr.mxu0 0.0
        %3152 = vmatpush2.xpose.msra.mxu0 0.0
        %3153 = vmatprep.subr.mxu0 0.0
        %3154 = vmatpush2.xpose.msra.mxu0 0.0
        %3155 = vmatprep.subr.mxu0 0.0
        %3156 = vmatpush2.xpose.msra.mxu0 0.0
        %3157 = vmatprep.subr.mxu0 0.0
        %3158 = vmatpush2.xpose.msra.mxu0 0.0
        %3159 = vmatprep.subr.mxu0 0.0
        %3160 = vmatpush2.xpose.msra.mxu0 0.0
        %3161 = vmatprep.subr.mxu0 0.0
        %3162 = vmatpush2.xpose.msra.mxu0 0.0
        %3163 = vmatprep.subr.mxu0 0.0
        %3164 = vmatpush2.xpose.msra.mxu0 0.0
        %3165 = vmatprep.subr.mxu0 0.0
        %3166 = vmatpush2.xpose.msra.mxu0 0.0
        %3167 = vmatprep.subr.mxu0 0.0
        %3168 = vmatpush2.xpose.msra.mxu0 0.0
        %3169 = vmatprep.subr.mxu0 0.0
        %3170 = vmatpush2.xpose.msra.mxu0 0.0
        %3171 = vmatprep.subr.mxu0 0.0
        %3172 = vmatpush2.xpose.msra.mxu0 0.0
        %3173 = vmatprep.subr.mxu0 0.0
        %3174 = vmatpush2.xpose.msra.mxu0 0.0
        %3175 = vmatprep.subr.mxu0 0.0
        %3176 = vmatpush2.xpose.msra.mxu0 0.0
        %3177 = vmatprep.mubr.f32.mxu0 0.0
        %3178 = vmatmul.mubr.f32.gmra.mxu0 %v3108
        %v3179 = vpop.f32.mrf.mxu0
        %v3180 = vadd.f32 0.0, %v3179
        %v3181 = vpop.f32.mrf.mxu0
        %3182 = vdwg.mxu0
        %v3183 = vmul.f32 %v3180, 0.35355338
        %v3184 = vadd.f32 %v3183, %v805
        %v3185 = vsel %vm1032, %v3184, -inf
        %3186 = vmax.xlane.f32.xlu0 %v3185
        %v3187 = vpop.xlane.xlu0 %3186
        %v3188 = vsub.f32 %v3184, %v3187
        %v3189 = vmul.f32 %v3188, 1.442695
        %v3190 = vpow.pop %v3189
        %v3191 = vsel %vm1032, %v3190, 0.0
        %3192 = vadd.xlane.f32.xlu0 %v3191
        %v3193 = vpop.xlane.xlu0 %3192
        %v3194 = vrcp.pop %v3193
        %v3195 = vmul.f32 %v3190, %v3194
        %v3197 = vsel %vm1032, %v3195, 0
        %3199 = vmatprep.subr.mxu0 0.0
        %3200 = vmatpush1.msra.mxu0 0.0
        %3201 = vmatprep.subr.mxu0 0.0
        %3202 = vmatpush1.msra.mxu0 0.0
        %3203 = vmatprep.subr.mxu0 0.0
        %3204 = vmatpush1.msra.mxu0 0.0
        %3205 = vmatprep.subr.mxu0 0.0
        %3206 = vmatpush1.msra.mxu0 0.0
        %3207 = vmatprep.subr.mxu0 0.0
        %3208 = vmatpush1.msra.mxu0 0.0
        %3209 = vmatprep.subr.mxu0 0.0
        %3210 = vmatpush1.msra.mxu0 0.0
        %3211 = vmatprep.subr.mxu0 0.0
        %3212 = vmatpush1.msra.mxu0 0.0
        %3213 = vmatprep.subr.mxu0 0.0
        %3214 = vmatpush1.msra.mxu0 0.0
        %3215 = vmatprep.subr.mxu0 0.0
        %3216 = vmatpush1.msra.mxu0 0.0
        %3217 = vmatprep.subr.mxu0 0.0
        %3218 = vmatpush1.msra.mxu0 0.0
        %3219 = vmatprep.subr.mxu0 0.0
        %3220 = vmatpush1.msra.mxu0 0.0
        %3221 = vmatprep.subr.mxu0 0.0
        %3222 = vmatpush1.msra.mxu0 0.0
        %3223 = vmatprep.subr.mxu0 0.0
        %3224 = vmatpush1.msra.mxu0 0.0
        %3225 = vmatprep.subr.mxu0 0.0
        %3226 = vmatpush1.msra.mxu0 0.0
        %3227 = vmatprep.subr.mxu0 0.0
        %3228 = vmatpush1.msra.mxu0 0.0
        %3229 = vmatprep.subr.mxu0 0.0
        %3230 = vmatpush1.msra.mxu0 %v3104
        %3231 = vmatprep.subr.mxu0 0.0
        %3232 = vmatpush2.msra.mxu0 0.0
        %3233 = vmatprep.subr.mxu0 0.0
        %3234 = vmatpush2.msra.mxu0 0.0
        %3235 = vmatprep.subr.mxu0 0.0
        %3236 = vmatpush2.msra.mxu0 0.0
        %3237 = vmatprep.subr.mxu0 0.0
        %3238 = vmatpush2.msra.mxu0 0.0
        %3239 = vmatprep.subr.mxu0 0.0
        %3240 = vmatpush2.msra.mxu0 0.0
        %3241 = vmatprep.subr.mxu0 0.0
        %3242 = vmatpush2.msra.mxu0 0.0
        %3243 = vmatprep.subr.mxu0 0.0
        %3244 = vmatpush2.msra.mxu0 0.0
        %3245 = vmatprep.subr.mxu0 0.0
        %3246 = vmatpush2.msra.mxu0 0.0
        %3247 = vmatprep.subr.mxu0 0.0
        %3248 = vmatpush2.msra.mxu0 0.0
        %3249 = vmatprep.subr.mxu0 0.0
        %3250 = vmatpush2.msra.mxu0 0.0
        %3251 = vmatprep.subr.mxu0 0.0
        %3252 = vmatpush2.msra.mxu0 0.0
        %3253 = vmatprep.subr.mxu0 0.0
        %3254 = vmatpush2.msra.mxu0 0.0
        %3255 = vmatprep.subr.mxu0 0.0
        %3256 = vmatpush2.msra.mxu0 0.0
        %3257 = vmatprep.subr.mxu0 0.0
        %3258 = vmatpush2.msra.mxu0 0.0
        %3259 = vmatprep.subr.mxu0 0.0
        %3260 = vmatpush2.msra.mxu0 0.0
        %3261 = vmatprep.subr.mxu0 0.0
        %3262 = vmatpush2.msra.mxu0 0.0
        %3263 = vmatprep.mubr.f32.mxu0 0.0
        %3264 = vmatmul.mubr.f32.gmra.mxu0 %v3197
        %v3265 = vpop.f32.mrf.mxu0
        %v3266 = vadd.f32 0.0, %v3265
        %v3267 = vpop.f32.mrf.mxu0
        %3268 = vdwg.mxu0
        %s3269 = scalar_lea.vmem %s10, 64
        %v3270 = vld [vmem:[%s3269] sm:$0xff]
        %v3271 = vld [vmem:[%s3269 + $0x8] sm:$0xff]
        %v3272 = vld [vmem:[%s3269 + $0x10] sm:$0xff]
        %v3273 = vld [vmem:[%s3269 + $0x18] sm:$0xff]
        %3274 = vmatprep.subr.mxu0 0.0
        %3275 = vmatpush1.msra.mxu0 0.0
        %3276 = vmatprep.subr.mxu0 0.0
        %3277 = vmatpush1.msra.mxu0 0.0
        %3278 = vmatprep.subr.mxu0 0.0
        %3279 = vmatpush1.msra.mxu0 0.0
        %3280 = vmatprep.subr.mxu0 0.0
        %3281 = vmatpush1.msra.mxu0 0.0
        %3282 = vmatprep.subr.mxu0 0.0
        %3283 = vmatpush1.msra.mxu0 0.0
        %3284 = vmatprep.subr.mxu0 0.0
        %3285 = vmatpush1.msra.mxu0 0.0
        %3286 = vmatprep.subr.mxu0 0.0
        %3287 = vmatpush1.msra.mxu0 0.0
        %3288 = vmatprep.subr.mxu0 0.0
        %3289 = vmatpush1.msra.mxu0 0.0
        %3290 = vmatprep.subr.mxu0 0.0
        %3291 = vmatpush1.msra.mxu0 0.0
        %3292 = vmatprep.subr.mxu0 0.0
        %3293 = vmatpush1.msra.mxu0 0.0
        %3294 = vmatprep.subr.mxu0 0.0
        %3295 = vmatpush1.msra.mxu0 0.0
        %3296 = vmatprep.subr.mxu0 0.0
        %3297 = vmatpush1.msra.mxu0 0.0
        %3298 = vmatprep.subr.mxu0 0.0
        %3299 = vmatpush1.msra.mxu0 %v3273
        %3300 = vmatprep.subr.mxu0 0.0
        %3301 = vmatpush1.msra.mxu0 %v3272
        %3302 = vmatprep.subr.mxu0 0.0
        %3303 = vmatpush1.msra.mxu0 %v3271
        %3304 = vmatprep.subr.mxu0 0.0
        %3305 = vmatpush1.msra.mxu0 %v3270
        %3306 = vmatprep.subr.mxu0 0.0
        %3307 = vmatpush2.msra.mxu0 0.0
        %3308 = vmatprep.subr.mxu0 0.0
        %3309 = vmatpush2.msra.mxu0 0.0
        %3310 = vmatprep.subr.mxu0 0.0
        %3311 = vmatpush2.msra.mxu0 0.0
        %3312 = vmatprep.subr.mxu0 0.0
        %3313 = vmatpush2.msra.mxu0 0.0
        %3314 = vmatprep.subr.mxu0 0.0
        %3315 = vmatpush2.msra.mxu0 0.0
        %3316 = vmatprep.subr.mxu0 0.0
        %3317 = vmatpush2.msra.mxu0 0.0
        %3318 = vmatprep.subr.mxu0 0.0
        %3319 = vmatpush2.msra.mxu0 0.0
        %3320 = vmatprep.subr.mxu0 0.0
        %3321 = vmatpush2.msra.mxu0 0.0
        %3322 = vmatprep.subr.mxu0 0.0
        %3323 = vmatpush2.msra.mxu0 0.0
        %3324 = vmatprep.subr.mxu0 0.0
        %3325 = vmatpush2.msra.mxu0 0.0
        %3326 = vmatprep.subr.mxu0 0.0
        %3327 = vmatpush2.msra.mxu0 0.0
        %3328 = vmatprep.subr.mxu0 0.0
        %3329 = vmatpush2.msra.mxu0 0.0
        %3330 = vmatprep.subr.mxu0 0.0
        %3331 = vmatpush2.msra.mxu0 0.0
        %3332 = vmatprep.subr.mxu0 0.0
        %3333 = vmatpush2.msra.mxu0 0.0
        %3334 = vmatprep.subr.mxu0 0.0
        %3335 = vmatpush2.msra.mxu0 0.0
        %3336 = vmatprep.subr.mxu0 0.0
        %3337 = vmatpush2.msra.mxu0 0.0
        %3338 = vmatprep.mubr.f32.mxu0 0.0
        %3339 = vmatmul.mubr.f32.gmra.mxu0 %v2497
        %v3340 = vpop.f32.mrf.mxu0
        %v3341 = vadd.f32 0.0, %v3340
        %v3342 = vpop.f32.mrf.mxu0
        %3343 = vdwg.mxu0
        %s3344 = scalar_lea.vmem %s11, 64
        %v3345 = vld [vmem:[%s3344] sm:$0xff]
        %v3346 = vld [vmem:[%s3344 + $0x8] sm:$0xff]
        %v3347 = vld [vmem:[%s3344 + $0x10] sm:$0xff]
        %v3348 = vld [vmem:[%s3344 + $0x18] sm:$0xff]
        %3349 = vmatprep.subr.mxu0 0.0
        %3350 = vmatpush1.msra.mxu0 0.0
        %3351 = vmatprep.subr.mxu0 0.0
        %3352 = vmatpush1.msra.mxu0 0.0
        %3353 = vmatprep.subr.mxu0 0.0
        %3354 = vmatpush1.msra.mxu0 0.0
        %3355 = vmatprep.subr.mxu0 0.0
        %3356 = vmatpush1.msra.mxu0 0.0
        %3357 = vmatprep.subr.mxu0 0.0
        %3358 = vmatpush1.msra.mxu0 0.0
        %3359 = vmatprep.subr.mxu0 0.0
        %3360 = vmatpush1.msra.mxu0 0.0
        %3361 = vmatprep.subr.mxu0 0.0
        %3362 = vmatpush1.msra.mxu0 0.0
        %3363 = vmatprep.subr.mxu0 0.0
        %3364 = vmatpush1.msra.mxu0 0.0
        %3365 = vmatprep.subr.mxu0 0.0
        %3366 = vmatpush1.msra.mxu0 0.0
        %3367 = vmatprep.subr.mxu0 0.0
        %3368 = vmatpush1.msra.mxu0 0.0
        %3369 = vmatprep.subr.mxu0 0.0
        %3370 = vmatpush1.msra.mxu0 0.0
        %3371 = vmatprep.subr.mxu0 0.0
        %3372 = vmatpush1.msra.mxu0 0.0
        %3373 = vmatprep.subr.mxu0 0.0
        %3374 = vmatpush1.msra.mxu0 %v3348
        %3375 = vmatprep.subr.mxu0 0.0
        %3376 = vmatpush1.msra.mxu0 %v3347
        %3377 = vmatprep.subr.mxu0 0.0
        %3378 = vmatpush1.msra.mxu0 %v3346
        %3379 = vmatprep.subr.mxu0 0.0
        %3380 = vmatpush1.msra.mxu0 %v3345
        %3381 = vmatprep.subr.mxu0 0.0
        %3382 = vmatpush2.msra.mxu0 0.0
        %3383 = vmatprep.subr.mxu0 0.0
        %3384 = vmatpush2.msra.mxu0 0.0
        %3385 = vmatprep.subr.mxu0 0.0
        %3386 = vmatpush2.msra.mxu0 0.0
        %3387 = vmatprep.subr.mxu0 0.0
        %3388 = vmatpush2.msra.mxu0 0.0
        %3389 = vmatprep.subr.mxu0 0.0
        %3390 = vmatpush2.msra.mxu0 0.0
        %3391 = vmatprep.subr.mxu0 0.0
        %3392 = vmatpush2.msra.mxu0 0.0
        %3393 = vmatprep.subr.mxu0 0.0
        %3394 = vmatpush2.msra.mxu0 0.0
        %3395 = vmatprep.subr.mxu0 0.0
        %3396 = vmatpush2.msra.mxu0 0.0
        %3397 = vmatprep.subr.mxu0 0.0
        %3398 = vmatpush2.msra.mxu0 0.0
        %3399 = vmatprep.subr.mxu0 0.0
        %3400 = vmatpush2.msra.mxu0 0.0
        %3401 = vmatprep.subr.mxu0 0.0
        %3402 = vmatpush2.msra.mxu0 0.0
        %3403 = vmatprep.subr.mxu0 0.0
        %3404 = vmatpush2.msra.mxu0 0.0
        %3405 = vmatprep.subr.mxu0 0.0
        %3406 = vmatpush2.msra.mxu0 0.0
        %3407 = vmatprep.subr.mxu0 0.0
        %3408 = vmatpush2.msra.mxu0 0.0
        %3409 = vmatprep.subr.mxu0 0.0
        %3410 = vmatpush2.msra.mxu0 0.0
        %3411 = vmatprep.subr.mxu0 0.0
        %3412 = vmatpush2.msra.mxu0 0.0
        %3413 = vmatprep.mubr.f32.mxu0 0.0
        %3414 = vmatmul.mubr.f32.gmra.mxu0 %v2574
        %v3415 = vpop.f32.mrf.mxu0
        %v3416 = vadd.f32 0.0, %v3415
        %v3417 = vpop.f32.mrf.mxu0
        %3418 = vdwg.mxu0
        %s3419 = scalar_lea.vmem %s12, 64
        %v3420 = vld [vmem:[%s3419] sm:$0xff]
        %v3421 = vld [vmem:[%s3419 + $0x8] sm:$0xff]
        %v3422 = vld [vmem:[%s3419 + $0x10] sm:$0xff]
        %v3423 = vld [vmem:[%s3419 + $0x18] sm:$0xff]
        %3424 = vmatprep.subr.mxu0 0.0
        %3425 = vmatpush1.msra.mxu0 0.0
        %3426 = vmatprep.subr.mxu0 0.0
        %3427 = vmatpush1.msra.mxu0 0.0
        %3428 = vmatprep.subr.mxu0 0.0
        %3429 = vmatpush1.msra.mxu0 0.0
        %3430 = vmatprep.subr.mxu0 0.0
        %3431 = vmatpush1.msra.mxu0 0.0
        %3432 = vmatprep.subr.mxu0 0.0
        %3433 = vmatpush1.msra.mxu0 0.0
        %3434 = vmatprep.subr.mxu0 0.0
        %3435 = vmatpush1.msra.mxu0 0.0
        %3436 = vmatprep.subr.mxu0 0.0
        %3437 = vmatpush1.msra.mxu0 0.0
        %3438 = vmatprep.subr.mxu0 0.0
        %3439 = vmatpush1.msra.mxu0 0.0
        %3440 = vmatprep.subr.mxu0 0.0
        %3441 = vmatpush1.msra.mxu0 0.0
        %3442 = vmatprep.subr.mxu0 0.0
        %3443 = vmatpush1.msra.mxu0 0.0
        %3444 = vmatprep.subr.mxu0 0.0
        %3445 = vmatpush1.msra.mxu0 0.0
        %3446 = vmatprep.subr.mxu0 0.0
        %3447 = vmatpush1.msra.mxu0 0.0
        %3448 = vmatprep.subr.mxu0 0.0
        %3449 = vmatpush1.msra.mxu0 %v3423
        %3450 = vmatprep.subr.mxu0 0.0
        %3451 = vmatpush1.msra.mxu0 %v3422
        %3452 = vmatprep.subr.mxu0 0.0
        %3453 = vmatpush1.msra.mxu0 %v3421
        %3454 = vmatprep.subr.mxu0 0.0
        %3455 = vmatpush1.msra.mxu0 %v3420
        %3456 = vmatprep.subr.mxu0 0.0
        %3457 = vmatpush2.msra.mxu0 0.0
        %3458 = vmatprep.subr.mxu0 0.0
        %3459 = vmatpush2.msra.mxu0 0.0
        %3460 = vmatprep.subr.mxu0 0.0
        %3461 = vmatpush2.msra.mxu0 0.0
        %3462 = vmatprep.subr.mxu0 0.0
        %3463 = vmatpush2.msra.mxu0 0.0
        %3464 = vmatprep.subr.mxu0 0.0
        %3465 = vmatpush2.msra.mxu0 0.0
        %3466 = vmatprep.subr.mxu0 0.0
        %3467 = vmatpush2.msra.mxu0 0.0
        %3468 = vmatprep.subr.mxu0 0.0
        %3469 = vmatpush2.msra.mxu0 0.0
        %3470 = vmatprep.subr.mxu0 0.0
        %3471 = vmatpush2.msra.mxu0 0.0
        %3472 = vmatprep.subr.mxu0 0.0
        %3473 = vmatpush2.msra.mxu0 0.0
        %3474 = vmatprep.subr.mxu0 0.0
        %3475 = vmatpush2.msra.mxu0 0.0
        %3476 = vmatprep.subr.mxu0 0.0
        %3477 = vmatpush2.msra.mxu0 0.0
        %3478 = vmatprep.subr.mxu0 0.0
        %3479 = vmatpush2.msra.mxu0 0.0
        %3480 = vmatprep.subr.mxu0 0.0
        %3481 = vmatpush2.msra.mxu0 0.0
        %3482 = vmatprep.subr.mxu0 0.0
        %3483 = vmatpush2.msra.mxu0 0.0
        %3484 = vmatprep.subr.mxu0 0.0
        %3485 = vmatpush2.msra.mxu0 0.0
        %3486 = vmatprep.subr.mxu0 0.0
        %3487 = vmatpush2.msra.mxu0 0.0
        %3488 = vmatprep.mubr.f32.mxu0 0.0
        %3489 = vmatmul.mubr.f32.gmra.mxu0 %v2574
        %v3490 = vpop.f32.mrf.mxu0
        %v3491 = vadd.f32 0.0, %v3490
        %v3492 = vpop.f32.mrf.mxu0
        %3493 = vdwg.mxu0
        %v3495 = vsel %vm1032, %v3341, 0
        %v3498 = vsel %vm1032, %v3416, 0
        %3500 = vmatprep.subr.mxu0 0.0
        %3501 = vmatpush1.xpose.msra.mxu0 0.0
        %3502 = vmatprep.subr.mxu0 0.0
        %3503 = vmatpush1.xpose.msra.mxu0 0.0
        %3504 = vmatprep.subr.mxu0 0.0
        %3505 = vmatpush1.xpose.msra.mxu0 0.0
        %3506 = vmatprep.subr.mxu0 0.0
        %3507 = vmatpush1.xpose.msra.mxu0 0.0
        %3508 = vmatprep.subr.mxu0 0.0
        %3509 = vmatpush1.xpose.msra.mxu0 0.0
        %3510 = vmatprep.subr.mxu0 0.0
        %3511 = vmatpush1.xpose.msra.mxu0 0.0
        %3512 = vmatprep.subr.mxu0 0.0
        %3513 = vmatpush1.xpose.msra.mxu0 0.0
        %3514 = vmatprep.subr.mxu0 0.0
        %3515 = vmatpush1.xpose.msra.mxu0 0.0
        %3516 = vmatprep.subr.mxu0 0.0
        %3517 = vmatpush1.xpose.msra.mxu0 0.0
        %3518 = vmatprep.subr.mxu0 0.0
        %3519 = vmatpush1.xpose.msra.mxu0 0.0
        %3520 = vmatprep.subr.mxu0 0.0
        %3521 = vmatpush1.xpose.msra.mxu0 0.0
        %3522 = vmatprep.subr.mxu0 0.0
        %3523 = vmatpush1.xpose.msra.mxu0 0.0
        %3524 = vmatprep.subr.mxu0 0.0
        %3525 = vmatpush1.xpose.msra.mxu0 0.0
        %3526 = vmatprep.subr.mxu0 0.0
        %3527 = vmatpush1.xpose.msra.mxu0 0.0
        %3528 = vmatprep.subr.mxu0 0.0
        %3529 = vmatpush1.xpose.msra.mxu0 0.0
        %3530 = vmatprep.subr.mxu0 0.0
        %3531 = vmatpush1.xpose.msra.mxu0 %v3498
        %3532 = vmatprep.subr.mxu0 0.0
        %3533 = vmatpush2.xpose.msra.mxu0 0.0
        %3534 = vmatprep.subr.mxu0 0.0
        %3535 = vmatpush2.xpose.msra.mxu0 0.0
        %3536 = vmatprep.subr.mxu0 0.0
        %3537 = vmatpush2.xpose.msra.mxu0 0.0
        %3538 = vmatprep.subr.mxu0 0.0
        %3539 = vmatpush2.xpose.msra.mxu0 0.0
        %3540 = vmatprep.subr.mxu0 0.0
        %3541 = vmatpush2.xpose.msra.mxu0 0.0
        %3542 = vmatprep.subr.mxu0 0.0
        %3543 = vmatpush2.xpose.msra.mxu0 0.0
        %3544 = vmatprep.subr.mxu0 0.0
        %3545 = vmatpush2.xpose.msra.mxu0 0.0
        %3546 = vmatprep.subr.mxu0 0.0
        %3547 = vmatpush2.xpose.msra.mxu0 0.0
        %3548 = vmatprep.subr.mxu0 0.0
        %3549 = vmatpush2.xpose.msra.mxu0 0.0
        %3550 = vmatprep.subr.mxu0 0.0
        %3551 = vmatpush2.xpose.msra.mxu0 0.0
        %3552 = vmatprep.subr.mxu0 0.0
        %3553 = vmatpush2.xpose.msra.mxu0 0.0
        %3554 = vmatprep.subr.mxu0 0.0
        %3555 = vmatpush2.xpose.msra.mxu0 0.0
        %3556 = vmatprep.subr.mxu0 0.0
        %3557 = vmatpush2.xpose.msra.mxu0 0.0
        %3558 = vmatprep.subr.mxu0 0.0
        %3559 = vmatpush2.xpose.msra.mxu0 0.0
        %3560 = vmatprep.subr.mxu0 0.0
        %3561 = vmatpush2.xpose.msra.mxu0 0.0
        %3562 = vmatprep.subr.mxu0 0.0
        %3563 = vmatpush2.xpose.msra.mxu0 0.0
        %3564 = vmatprep.mubr.f32.mxu0 0.0
        %3565 = vmatmul.mubr.f32.gmra.mxu0 %v3495
        %v3566 = vpop.f32.mrf.mxu0
        %v3567 = vadd.f32 0.0, %v3566
        %v3568 = vpop.f32.mrf.mxu0
        %3569 = vdwg.mxu0
        %v3570 = vmul.f32 %v3567, 0.35355338
        %v3571 = vadd.f32 %v3570, %v805
        %v3572 = vsel %vm1032, %v3571, -inf
        %3573 = vmax.xlane.f32.xlu0 %v3572
        %v3574 = vpop.xlane.xlu0 %3573
        %v3575 = vsub.f32 %v3571, %v3574
        %v3576 = vmul.f32 %v3575, 1.442695
        %v3577 = vpow.pop %v3576
        %v3578 = vsel %vm1032, %v3577, 0.0
        %3579 = vadd.xlane.f32.xlu0 %v3578
        %v3580 = vpop.xlane.xlu0 %3579
        %v3581 = vrcp.pop %v3580
        %v3582 = vmul.f32 %v3577, %v3581
        %v3584 = vsel %vm1032, %v3582, 0
        %3586 = vmatprep.subr.mxu0 0.0
        %3587 = vmatpush1.msra.mxu0 0.0
        %3588 = vmatprep.subr.mxu0 0.0
        %3589 = vmatpush1.msra.mxu0 0.0
        %3590 = vmatprep.subr.mxu0 0.0
        %3591 = vmatpush1.msra.mxu0 0.0
        %3592 = vmatprep.subr.mxu0 0.0
        %3593 = vmatpush1.msra.mxu0 0.0
        %3594 = vmatprep.subr.mxu0 0.0
        %3595 = vmatpush1.msra.mxu0 0.0
        %3596 = vmatprep.subr.mxu0 0.0
        %3597 = vmatpush1.msra.mxu0 0.0
        %3598 = vmatprep.subr.mxu0 0.0
        %3599 = vmatpush1.msra.mxu0 0.0
        %3600 = vmatprep.subr.mxu0 0.0
        %3601 = vmatpush1.msra.mxu0 0.0
        %3602 = vmatprep.subr.mxu0 0.0
        %3603 = vmatpush1.msra.mxu0 0.0
        %3604 = vmatprep.subr.mxu0 0.0
        %3605 = vmatpush1.msra.mxu0 0.0
        %3606 = vmatprep.subr.mxu0 0.0
        %3607 = vmatpush1.msra.mxu0 0.0
        %3608 = vmatprep.subr.mxu0 0.0
        %3609 = vmatpush1.msra.mxu0 0.0
        %3610 = vmatprep.subr.mxu0 0.0
        %3611 = vmatpush1.msra.mxu0 0.0
        %3612 = vmatprep.subr.mxu0 0.0
        %3613 = vmatpush1.msra.mxu0 0.0
        %3614 = vmatprep.subr.mxu0 0.0
        %3615 = vmatpush1.msra.mxu0 0.0
        %3616 = vmatprep.subr.mxu0 0.0
        %3617 = vmatpush1.msra.mxu0 %v3491
        %3618 = vmatprep.subr.mxu0 0.0
        %3619 = vmatpush2.msra.mxu0 0.0
        %3620 = vmatprep.subr.mxu0 0.0
        %3621 = vmatpush2.msra.mxu0 0.0
        %3622 = vmatprep.subr.mxu0 0.0
        %3623 = vmatpush2.msra.mxu0 0.0
        %3624 = vmatprep.subr.mxu0 0.0
        %3625 = vmatpush2.msra.mxu0 0.0
        %3626 = vmatprep.subr.mxu0 0.0
        %3627 = vmatpush2.msra.mxu0 0.0
        %3628 = vmatprep.subr.mxu0 0.0
        %3629 = vmatpush2.msra.mxu0 0.0
        %3630 = vmatprep.subr.mxu0 0.0
        %3631 = vmatpush2.msra.mxu0 0.0
        %3632 = vmatprep.subr.mxu0 0.0
        %3633 = vmatpush2.msra.mxu0 0.0
        %3634 = vmatprep.subr.mxu0 0.0
        %3635 = vmatpush2.msra.mxu0 0.0
        %3636 = vmatprep.subr.mxu0 0.0
        %3637 = vmatpush2.msra.mxu0 0.0
        %3638 = vmatprep.subr.mxu0 0.0
        %3639 = vmatpush2.msra.mxu0 0.0
        %3640 = vmatprep.subr.mxu0 0.0
        %3641 = vmatpush2.msra.mxu0 0.0
        %3642 = vmatprep.subr.mxu0 0.0
        %3643 = vmatpush2.msra.mxu0 0.0
        %3644 = vmatprep.subr.mxu0 0.0
        %3645 = vmatpush2.msra.mxu0 0.0
        %3646 = vmatprep.subr.mxu0 0.0
        %3647 = vmatpush2.msra.mxu0 0.0
        %3648 = vmatprep.subr.mxu0 0.0
        %3649 = vmatpush2.msra.mxu0 0.0
        %3650 = vmatprep.mubr.f32.mxu0 0.0
        %3651 = vmatmul.mubr.f32.gmra.mxu0 %v3584
        %v3652 = vpop.f32.mrf.mxu0
        %v3653 = vadd.f32 0.0, %v3652
        %v3654 = vpop.f32.mrf.mxu0
        %3655 = vdwg.mxu0
        %s3656 = scalar_lea.vmem %s10, 96
        %v3657 = vld [vmem:[%s3656] sm:$0xff]
        %v3658 = vld [vmem:[%s3656 + $0x8] sm:$0xff]
        %v3659 = vld [vmem:[%s3656 + $0x10] sm:$0xff]
        %v3660 = vld [vmem:[%s3656 + $0x18] sm:$0xff]
        %3661 = vmatprep.subr.mxu0 0.0
        %3662 = vmatpush1.msra.mxu0 0.0
        %3663 = vmatprep.subr.mxu0 0.0
        %3664 = vmatpush1.msra.mxu0 0.0
        %3665 = vmatprep.subr.mxu0 0.0
        %3666 = vmatpush1.msra.mxu0 0.0
        %3667 = vmatprep.subr.mxu0 0.0
        %3668 = vmatpush1.msra.mxu0 0.0
        %3669 = vmatprep.subr.mxu0 0.0
        %3670 = vmatpush1.msra.mxu0 0.0
        %3671 = vmatprep.subr.mxu0 0.0
        %3672 = vmatpush1.msra.mxu0 0.0
        %3673 = vmatprep.subr.mxu0 0.0
        %3674 = vmatpush1.msra.mxu0 0.0
        %3675 = vmatprep.subr.mxu0 0.0
        %3676 = vmatpush1.msra.mxu0 0.0
        %3677 = vmatprep.subr.mxu0 0.0
        %3678 = vmatpush1.msra.mxu0 0.0
        %3679 = vmatprep.subr.mxu0 0.0
        %3680 = vmatpush1.msra.mxu0 0.0
        %3681 = vmatprep.subr.mxu0 0.0
        %3682 = vmatpush1.msra.mxu0 0.0
        %3683 = vmatprep.subr.mxu0 0.0
        %3684 = vmatpush1.msra.mxu0 0.0
        %3685 = vmatprep.subr.mxu0 0.0
        %3686 = vmatpush1.msra.mxu0 %v3660
        %3687 = vmatprep.subr.mxu0 0.0
        %3688 = vmatpush1.msra.mxu0 %v3659
        %3689 = vmatprep.subr.mxu0 0.0
        %3690 = vmatpush1.msra.mxu0 %v3658
        %3691 = vmatprep.subr.mxu0 0.0
        %3692 = vmatpush1.msra.mxu0 %v3657
        %3693 = vmatprep.subr.mxu0 0.0
        %3694 = vmatpush2.msra.mxu0 0.0
        %3695 = vmatprep.subr.mxu0 0.0
        %3696 = vmatpush2.msra.mxu0 0.0
        %3697 = vmatprep.subr.mxu0 0.0
        %3698 = vmatpush2.msra.mxu0 0.0
        %3699 = vmatprep.subr.mxu0 0.0
        %3700 = vmatpush2.msra.mxu0 0.0
        %3701 = vmatprep.subr.mxu0 0.0
        %3702 = vmatpush2.msra.mxu0 0.0
        %3703 = vmatprep.subr.mxu0 0.0
        %3704 = vmatpush2.msra.mxu0 0.0
        %3705 = vmatprep.subr.mxu0 0.0
        %3706 = vmatpush2.msra.mxu0 0.0
        %3707 = vmatprep.subr.mxu0 0.0
        %3708 = vmatpush2.msra.mxu0 0.0
        %3709 = vmatprep.subr.mxu0 0.0
        %3710 = vmatpush2.msra.mxu0 0.0
        %3711 = vmatprep.subr.mxu0 0.0
        %3712 = vmatpush2.msra.mxu0 0.0
        %3713 = vmatprep.subr.mxu0 0.0
        %3714 = vmatpush2.msra.mxu0 0.0
        %3715 = vmatprep.subr.mxu0 0.0
        %3716 = vmatpush2.msra.mxu0 0.0
        %3717 = vmatprep.subr.mxu0 0.0
        %3718 = vmatpush2.msra.mxu0 0.0
        %3719 = vmatprep.subr.mxu0 0.0
        %3720 = vmatpush2.msra.mxu0 0.0
        %3721 = vmatprep.subr.mxu0 0.0
        %3722 = vmatpush2.msra.mxu0 0.0
        %3723 = vmatprep.subr.mxu0 0.0
        %3724 = vmatpush2.msra.mxu0 0.0
        %3725 = vmatprep.mubr.f32.mxu0 0.0
        %3726 = vmatmul.mubr.f32.gmra.mxu0 %v2497
        %v3727 = vpop.f32.mrf.mxu0
        %v3728 = vadd.f32 0.0, %v3727
        %v3729 = vpop.f32.mrf.mxu0
        %3730 = vdwg.mxu0
        %s3731 = scalar_lea.vmem %s11, 96
        %v3732 = vld [vmem:[%s3731] sm:$0xff]
        %v3733 = vld [vmem:[%s3731 + $0x8] sm:$0xff]
        %v3734 = vld [vmem:[%s3731 + $0x10] sm:$0xff]
        %v3735 = vld [vmem:[%s3731 + $0x18] sm:$0xff]
        %3736 = vmatprep.subr.mxu0 0.0
        %3737 = vmatpush1.msra.mxu0 0.0
        %3738 = vmatprep.subr.mxu0 0.0
        %3739 = vmatpush1.msra.mxu0 0.0
        %3740 = vmatprep.subr.mxu0 0.0
        %3741 = vmatpush1.msra.mxu0 0.0
        %3742 = vmatprep.subr.mxu0 0.0
        %3743 = vmatpush1.msra.mxu0 0.0
        %3744 = vmatprep.subr.mxu0 0.0
        %3745 = vmatpush1.msra.mxu0 0.0
        %3746 = vmatprep.subr.mxu0 0.0
        %3747 = vmatpush1.msra.mxu0 0.0
        %3748 = vmatprep.subr.mxu0 0.0
        %3749 = vmatpush1.msra.mxu0 0.0
        %3750 = vmatprep.subr.mxu0 0.0
        %3751 = vmatpush1.msra.mxu0 0.0
        %3752 = vmatprep.subr.mxu0 0.0
        %3753 = vmatpush1.msra.mxu0 0.0
        %3754 = vmatprep.subr.mxu0 0.0
        %3755 = vmatpush1.msra.mxu0 0.0
        %3756 = vmatprep.subr.mxu0 0.0
        %3757 = vmatpush1.msra.mxu0 0.0
        %3758 = vmatprep.subr.mxu0 0.0
        %3759 = vmatpush1.msra.mxu0 0.0
        %3760 = vmatprep.subr.mxu0 0.0
        %3761 = vmatpush1.msra.mxu0 %v3735
        %3762 = vmatprep.subr.mxu0 0.0
        %3763 = vmatpush1.msra.mxu0 %v3734
        %3764 = vmatprep.subr.mxu0 0.0
        %3765 = vmatpush1.msra.mxu0 %v3733
        %3766 = vmatprep.subr.mxu0 0.0
        %3767 = vmatpush1.msra.mxu0 %v3732
        %3768 = vmatprep.subr.mxu0 0.0
        %3769 = vmatpush2.msra.mxu0 0.0
        %3770 = vmatprep.subr.mxu0 0.0
        %3771 = vmatpush2.msra.mxu0 0.0
        %3772 = vmatprep.subr.mxu0 0.0
        %3773 = vmatpush2.msra.mxu0 0.0
        %3774 = vmatprep.subr.mxu0 0.0
        %3775 = vmatpush2.msra.mxu0 0.0
        %3776 = vmatprep.subr.mxu0 0.0
        %3777 = vmatpush2.msra.mxu0 0.0
        %3778 = vmatprep.subr.mxu0 0.0
        %3779 = vmatpush2.msra.mxu0 0.0
        %3780 = vmatprep.subr.mxu0 0.0
        %3781 = vmatpush2.msra.mxu0 0.0
        %3782 = vmatprep.subr.mxu0 0.0
        %3783 = vmatpush2.msra.mxu0 0.0
        %3784 = vmatprep.subr.mxu0 0.0
        %3785 = vmatpush2.msra.mxu0 0.0
        %3786 = vmatprep.subr.mxu0 0.0
        %3787 = vmatpush2.msra.mxu0 0.0
        %3788 = vmatprep.subr.mxu0 0.0
        %3789 = vmatpush2.msra.mxu0 0.0
        %3790 = vmatprep.subr.mxu0 0.0
        %3791 = vmatpush2.msra.mxu0 0.0
        %3792 = vmatprep.subr.mxu0 0.0
        %3793 = vmatpush2.msra.mxu0 0.0
        %3794 = vmatprep.subr.mxu0 0.0
        %3795 = vmatpush2.msra.mxu0 0.0
        %3796 = vmatprep.subr.mxu0 0.0
        %3797 = vmatpush2.msra.mxu0 0.0
        %3798 = vmatprep.subr.mxu0 0.0
        %3799 = vmatpush2.msra.mxu0 0.0
        %3800 = vmatprep.mubr.f32.mxu0 0.0
        %3801 = vmatmul.mubr.f32.gmra.mxu0 %v2574
        %v3802 = vpop.f32.mrf.mxu0
        %v3803 = vadd.f32 0.0, %v3802
        %v3804 = vpop.f32.mrf.mxu0
        %3805 = vdwg.mxu0
        %s3806 = scalar_lea.vmem %s12, 96
        %v3807 = vld [vmem:[%s3806] sm:$0xff]
        %v3808 = vld [vmem:[%s3806 + $0x8] sm:$0xff]
        %v3809 = vld [vmem:[%s3806 + $0x10] sm:$0xff]
        %v3810 = vld [vmem:[%s3806 + $0x18] sm:$0xff]
        %3811 = vmatprep.subr.mxu0 0.0
        %3812 = vmatpush1.msra.mxu0 0.0
        %3813 = vmatprep.subr.mxu0 0.0
        %3814 = vmatpush1.msra.mxu0 0.0
        %3815 = vmatprep.subr.mxu0 0.0
        %3816 = vmatpush1.msra.mxu0 0.0
        %3817 = vmatprep.subr.mxu0 0.0
        %3818 = vmatpush1.msra.mxu0 0.0
        %3819 = vmatprep.subr.mxu0 0.0
        %3820 = vmatpush1.msra.mxu0 0.0
        %3821 = vmatprep.subr.mxu0 0.0
        %3822 = vmatpush1.msra.mxu0 0.0
        %3823 = vmatprep.subr.mxu0 0.0
        %3824 = vmatpush1.msra.mxu0 0.0
        %3825 = vmatprep.subr.mxu0 0.0
        %3826 = vmatpush1.msra.mxu0 0.0
        %3827 = vmatprep.subr.mxu0 0.0
        %3828 = vmatpush1.msra.mxu0 0.0
        %3829 = vmatprep.subr.mxu0 0.0
        %3830 = vmatpush1.msra.mxu0 0.0
        %3831 = vmatprep.subr.mxu0 0.0
        %3832 = vmatpush1.msra.mxu0 0.0
        %3833 = vmatprep.subr.mxu0 0.0
        %3834 = vmatpush1.msra.mxu0 0.0
        %3835 = vmatprep.subr.mxu0 0.0
        %3836 = vmatpush1.msra.mxu0 %v3810
        %3837 = vmatprep.subr.mxu0 0.0
        %3838 = vmatpush1.msra.mxu0 %v3809
        %3839 = vmatprep.subr.mxu0 0.0
        %3840 = vmatpush1.msra.mxu0 %v3808
        %3841 = vmatprep.subr.mxu0 0.0
        %3842 = vmatpush1.msra.mxu0 %v3807
        %3843 = vmatprep.subr.mxu0 0.0
        %3844 = vmatpush2.msra.mxu0 0.0
        %3845 = vmatprep.subr.mxu0 0.0
        %3846 = vmatpush2.msra.mxu0 0.0
        %3847 = vmatprep.subr.mxu0 0.0
        %3848 = vmatpush2.msra.mxu0 0.0
        %3849 = vmatprep.subr.mxu0 0.0
        %3850 = vmatpush2.msra.mxu0 0.0
        %3851 = vmatprep.subr.mxu0 0.0
        %3852 = vmatpush2.msra.mxu0 0.0
        %3853 = vmatprep.subr.mxu0 0.0
        %3854 = vmatpush2.msra.mxu0 0.0
        %3855 = vmatprep.subr.mxu0 0.0
        %3856 = vmatpush2.msra.mxu0 0.0
        %3857 = vmatprep.subr.mxu0 0.0
        %3858 = vmatpush2.msra.mxu0 0.0
        %3859 = vmatprep.subr.mxu0 0.0
        %3860 = vmatpush2.msra.mxu0 0.0
        %3861 = vmatprep.subr.mxu0 0.0
        %3862 = vmatpush2.msra.mxu0 0.0
        %3863 = vmatprep.subr.mxu0 0.0
        %3864 = vmatpush2.msra.mxu0 0.0
        %3865 = vmatprep.subr.mxu0 0.0
        %3866 = vmatpush2.msra.mxu0 0.0
        %3867 = vmatprep.subr.mxu0 0.0
        %3868 = vmatpush2.msra.mxu0 0.0
        %3869 = vmatprep.subr.mxu0 0.0
        %3870 = vmatpush2.msra.mxu0 0.0
        %3871 = vmatprep.subr.mxu0 0.0
        %3872 = vmatpush2.msra.mxu0 0.0
        %3873 = vmatprep.subr.mxu0 0.0
        %3874 = vmatpush2.msra.mxu0 0.0
        %3875 = vmatprep.mubr.f32.mxu0 0.0
        %3876 = vmatmul.mubr.f32.gmra.mxu0 %v2574
        %v3877 = vpop.f32.mrf.mxu0
        %v3878 = vadd.f32 0.0, %v3877
        %v3879 = vpop.f32.mrf.mxu0
        %3880 = vdwg.mxu0
        %v3882 = vsel %vm1032, %v3728, 0
        %v3885 = vsel %vm1032, %v3803, 0
        %3887 = vmatprep.subr.mxu0 0.0
        %3888 = vmatpush1.xpose.msra.mxu0 0.0
        %3889 = vmatprep.subr.mxu0 0.0
        %3890 = vmatpush1.xpose.msra.mxu0 0.0
        %3891 = vmatprep.subr.mxu0 0.0
        %3892 = vmatpush1.xpose.msra.mxu0 0.0
        %3893 = vmatprep.subr.mxu0 0.0
        %3894 = vmatpush1.xpose.msra.mxu0 0.0
        %3895 = vmatprep.subr.mxu0 0.0
        %3896 = vmatpush1.xpose.msra.mxu0 0.0
        %3897 = vmatprep.subr.mxu0 0.0
        %3898 = vmatpush1.xpose.msra.mxu0 0.0
        %3899 = vmatprep.subr.mxu0 0.0
        %3900 = vmatpush1.xpose.msra.mxu0 0.0
        %3901 = vmatprep.subr.mxu0 0.0
        %3902 = vmatpush1.xpose.msra.mxu0 0.0
        %3903 = vmatprep.subr.mxu0 0.0
        %3904 = vmatpush1.xpose.msra.mxu0 0.0
        %3905 = vmatprep.subr.mxu0 0.0
        %3906 = vmatpush1.xpose.msra.mxu0 0.0
        %3907 = vmatprep.subr.mxu0 0.0
        %3908 = vmatpush1.xpose.msra.mxu0 0.0
        %3909 = vmatprep.subr.mxu0 0.0
        %3910 = vmatpush1.xpose.msra.mxu0 0.0
        %3911 = vmatprep.subr.mxu0 0.0
        %3912 = vmatpush1.xpose.msra.mxu0 0.0
        %3913 = vmatprep.subr.mxu0 0.0
        %3914 = vmatpush1.xpose.msra.mxu0 0.0
        %3915 = vmatprep.subr.mxu0 0.0
        %3916 = vmatpush1.xpose.msra.mxu0 0.0
        %3917 = vmatprep.subr.mxu0 0.0
        %3918 = vmatpush1.xpose.msra.mxu0 %v3885
        %3919 = vmatprep.subr.mxu0 0.0
        %3920 = vmatpush2.xpose.msra.mxu0 0.0
        %3921 = vmatprep.subr.mxu0 0.0
        %3922 = vmatpush2.xpose.msra.mxu0 0.0
        %3923 = vmatprep.subr.mxu0 0.0
        %3924 = vmatpush2.xpose.msra.mxu0 0.0
        %3925 = vmatprep.subr.mxu0 0.0
        %3926 = vmatpush2.xpose.msra.mxu0 0.0
        %3927 = vmatprep.subr.mxu0 0.0
        %3928 = vmatpush2.xpose.msra.mxu0 0.0
        %3929 = vmatprep.subr.mxu0 0.0
        %3930 = vmatpush2.xpose.msra.mxu0 0.0
        %3931 = vmatprep.subr.mxu0 0.0
        %3932 = vmatpush2.xpose.msra.mxu0 0.0
        %3933 = vmatprep.subr.mxu0 0.0
        %3934 = vmatpush2.xpose.msra.mxu0 0.0
        %3935 = vmatprep.subr.mxu0 0.0
        %3936 = vmatpush2.xpose.msra.mxu0 0.0
        %3937 = vmatprep.subr.mxu0 0.0
        %3938 = vmatpush2.xpose.msra.mxu0 0.0
        %3939 = vmatprep.subr.mxu0 0.0
        %3940 = vmatpush2.xpose.msra.mxu0 0.0
        %3941 = vmatprep.subr.mxu0 0.0
        %3942 = vmatpush2.xpose.msra.mxu0 0.0
        %3943 = vmatprep.subr.mxu0 0.0
        %3944 = vmatpush2.xpose.msra.mxu0 0.0
        %3945 = vmatprep.subr.mxu0 0.0
        %3946 = vmatpush2.xpose.msra.mxu0 0.0
        %3947 = vmatprep.subr.mxu0 0.0
        %3948 = vmatpush2.xpose.msra.mxu0 0.0
        %3949 = vmatprep.subr.mxu0 0.0
        %3950 = vmatpush2.xpose.msra.mxu0 0.0
        %3951 = vmatprep.mubr.f32.mxu0 0.0
        %3952 = vmatmul.mubr.f32.gmra.mxu0 %v3882
        %v3953 = vpop.f32.mrf.mxu0
        %v3954 = vadd.f32 0.0, %v3953
        %v3955 = vpop.f32.mrf.mxu0
        %3956 = vdwg.mxu0
        %v3957 = vmul.f32 %v3954, 0.35355338
        %v3958 = vadd.f32 %v3957, %v805
        %v3959 = vsel %vm1032, %v3958, -inf
        %3960 = vmax.xlane.f32.xlu0 %v3959
        %v3961 = vpop.xlane.xlu0 %3960
        %v3962 = vsub.f32 %v3958, %v3961
        %v3963 = vmul.f32 %v3962, 1.442695
        %v3964 = vpow.pop %v3963
        %v3965 = vsel %vm1032, %v3964, 0.0
        %3966 = vadd.xlane.f32.xlu0 %v3965
        %v3967 = vpop.xlane.xlu0 %3966
        %v3968 = vrcp.pop %v3967
        %v3969 = vmul.f32 %v3964, %v3968
        %v3971 = vsel %vm1032, %v3969, 0
        %3973 = vmatprep.subr.mxu0 0.0
        %3974 = vmatpush1.msra.mxu0 0.0
        %3975 = vmatprep.subr.mxu0 0.0
        %3976 = vmatpush1.msra.mxu0 0.0
        %3977 = vmatprep.subr.mxu0 0.0
        %3978 = vmatpush1.msra.mxu0 0.0
        %3979 = vmatprep.subr.mxu0 0.0
        %3980 = vmatpush1.msra.mxu0 0.0
        %3981 = vmatprep.subr.mxu0 0.0
        %3982 = vmatpush1.msra.mxu0 0.0
        %3983 = vmatprep.subr.mxu0 0.0
        %3984 = vmatpush1.msra.mxu0 0.0
        %3985 = vmatprep.subr.mxu0 0.0
        %3986 = vmatpush1.msra.mxu0 0.0
        %3987 = vmatprep.subr.mxu0 0.0
        %3988 = vmatpush1.msra.mxu0 0.0
        %3989 = vmatprep.subr.mxu0 0.0
        %3990 = vmatpush1.msra.mxu0 0.0
        %3991 = vmatprep.subr.mxu0 0.0
        %3992 = vmatpush1.msra.mxu0 0.0
        %3993 = vmatprep.subr.mxu0 0.0
        %3994 = vmatpush1.msra.mxu0 0.0
        %3995 = vmatprep.subr.mxu0 0.0
        %3996 = vmatpush1.msra.mxu0 0.0
        %3997 = vmatprep.subr.mxu0 0.0
        %3998 = vmatpush1.msra.mxu0 0.0
        %3999 = vmatprep.subr.mxu0 0.0
        %4000 = vmatpush1.msra.mxu0 0.0
        %4001 = vmatprep.subr.mxu0 0.0
        %4002 = vmatpush1.msra.mxu0 0.0
        %4003 = vmatprep.subr.mxu0 0.0
        %4004 = vmatpush1.msra.mxu0 %v3878
        %4005 = vmatprep.subr.mxu0 0.0
        %4006 = vmatpush2.msra.mxu0 0.0
        %4007 = vmatprep.subr.mxu0 0.0
        %4008 = vmatpush2.msra.mxu0 0.0
        %4009 = vmatprep.subr.mxu0 0.0
        %4010 = vmatpush2.msra.mxu0 0.0
        %4011 = vmatprep.subr.mxu0 0.0
        %4012 = vmatpush2.msra.mxu0 0.0
        %4013 = vmatprep.subr.mxu0 0.0
        %4014 = vmatpush2.msra.mxu0 0.0
        %4015 = vmatprep.subr.mxu0 0.0
        %4016 = vmatpush2.msra.mxu0 0.0
        %4017 = vmatprep.subr.mxu0 0.0
        %4018 = vmatpush2.msra.mxu0 0.0
        %4019 = vmatprep.subr.mxu0 0.0
        %4020 = vmatpush2.msra.mxu0 0.0
        %4021 = vmatprep.subr.mxu0 0.0
        %4022 = vmatpush2.msra.mxu0 0.0
        %4023 = vmatprep.subr.mxu0 0.0
        %4024 = vmatpush2.msra.mxu0 0.0
        %4025 = vmatprep.subr.mxu0 0.0
        %4026 = vmatpush2.msra.mxu0 0.0
        %4027 = vmatprep.subr.mxu0 0.0
        %4028 = vmatpush2.msra.mxu0 0.0
        %4029 = vmatprep.subr.mxu0 0.0
        %4030 = vmatpush2.msra.mxu0 0.0
        %4031 = vmatprep.subr.mxu0 0.0
        %4032 = vmatpush2.msra.mxu0 0.0
        %4033 = vmatprep.subr.mxu0 0.0
        %4034 = vmatpush2.msra.mxu0 0.0
        %4035 = vmatprep.subr.mxu0 0.0
        %4036 = vmatpush2.msra.mxu0 0.0
        %4037 = vmatprep.mubr.f32.mxu0 0.0
        %4038 = vmatmul.mubr.f32.gmra.mxu0 %v3971
        %v4039 = vpop.f32.mrf.mxu0
        %v4040 = vadd.f32 0.0, %v4039
        %v4041 = vpop.f32.mrf.mxu0
        %4042 = vdwg.mxu0
        %4043 = vrot.lane.b32.xlu0 %v3195, 8
        %v4044 = vpop.permute.xlu0 %4043
        %4046 = vrot.lane.b32.xlu0 %v3582, 16
        %v4047 = vpop.permute.xlu0 %4046
        %4049 = vrot.lane.b32.xlu0 %v3969, 24
        %v4050 = vpop.permute.xlu0 %4049
        %v4052 = vsel %vm1032, %v2808, %v4044
        %v4053 = vsel %vm2366, %v4052, %v4047
        %v4054 = vsel %vm2368, %v4053, %v4050
        %4056 = vrot.lane.b32.xlu0 %v3266, 8
        %v4057 = vpop.permute.xlu0 %4056
        %4060 = vrot.lane.b32.xlu0 %v3653, 16
        %v4061 = vpop.permute.xlu0 %4060
        %4064 = vrot.lane.b32.xlu0 %v4040, 24
        %v4065 = vpop.permute.xlu0 %4064
        %v4067 = vsel %vm1032, %v2879, %v4057
        %v4068 = vsel %vm2366, %v4067, %v4061
        %v4069 = vsel %vm2368, %v4068, %v4065
        %v4070 = vld [vmem:[%s13] sm:$0xff]
        %v4071 = vld [vmem:[%s13 + $0x8] sm:$0xff]
        %v4072 = vld [vmem:[%s13 + $0x10] sm:$0xff]
        %v4073 = vld [vmem:[%s13 + $0x18] sm:$0xff]
        %v4075 = vsel %vm810, %v4069, 0
        %4077 = vmatprep.subr.mxu0 0.0
        %4078 = vmatpush1.msra.mxu0 0.0
        %4079 = vmatprep.subr.mxu0 0.0
        %4080 = vmatpush1.msra.mxu0 0.0
        %4081 = vmatprep.subr.mxu0 0.0
        %4082 = vmatpush1.msra.mxu0 0.0
        %4083 = vmatprep.subr.mxu0 0.0
        %4084 = vmatpush1.msra.mxu0 0.0
        %4085 = vmatprep.subr.mxu0 0.0
        %4086 = vmatpush1.msra.mxu0 0.0
        %4087 = vmatprep.subr.mxu0 0.0
        %4088 = vmatpush1.msra.mxu0 0.0
        %4089 = vmatprep.subr.mxu0 0.0
        %4090 = vmatpush1.msra.mxu0 0.0
        %4091 = vmatprep.subr.mxu0 0.0
        %4092 = vmatpush1.msra.mxu0 0.0
        %4093 = vmatprep.subr.mxu0 0.0
        %4094 = vmatpush1.msra.mxu0 0.0
        %4095 = vmatprep.subr.mxu0 0.0
        %4096 = vmatpush1.msra.mxu0 0.0
        %4097 = vmatprep.subr.mxu0 0.0
        %4098 = vmatpush1.msra.mxu0 0.0
        %4099 = vmatprep.subr.mxu0 0.0
        %4100 = vmatpush1.msra.mxu0 0.0
        %4101 = vmatprep.subr.mxu0 0.0
        %4102 = vmatpush1.msra.mxu0 %v4073
        %4103 = vmatprep.subr.mxu0 0.0
        %4104 = vmatpush1.msra.mxu0 %v4072
        %4105 = vmatprep.subr.mxu0 0.0
        %4106 = vmatpush1.msra.mxu0 %v4071
        %4107 = vmatprep.subr.mxu0 0.0
        %4108 = vmatpush1.msra.mxu0 %v4070
        %4109 = vmatprep.subr.mxu0 0.0
        %4110 = vmatpush2.msra.mxu0 0.0
        %4111 = vmatprep.subr.mxu0 0.0
        %4112 = vmatpush2.msra.mxu0 0.0
        %4113 = vmatprep.subr.mxu0 0.0
        %4114 = vmatpush2.msra.mxu0 0.0
        %4115 = vmatprep.subr.mxu0 0.0
        %4116 = vmatpush2.msra.mxu0 0.0
        %4117 = vmatprep.subr.mxu0 0.0
        %4118 = vmatpush2.msra.mxu0 0.0
        %4119 = vmatprep.subr.mxu0 0.0
        %4120 = vmatpush2.msra.mxu0 0.0
        %4121 = vmatprep.subr.mxu0 0.0
        %4122 = vmatpush2.msra.mxu0 0.0
        %4123 = vmatprep.subr.mxu0 0.0
        %4124 = vmatpush2.msra.mxu0 0.0
        %4125 = vmatprep.subr.mxu0 0.0
        %4126 = vmatpush2.msra.mxu0 0.0
        %4127 = vmatprep.subr.mxu0 0.0
        %4128 = vmatpush2.msra.mxu0 0.0
        %4129 = vmatprep.subr.mxu0 0.0
        %4130 = vmatpush2.msra.mxu0 0.0
        %4131 = vmatprep.subr.mxu0 0.0
        %4132 = vmatpush2.msra.mxu0 0.0
        %4133 = vmatprep.subr.mxu0 0.0
        %4134 = vmatpush2.msra.mxu0 0.0
        %4135 = vmatprep.subr.mxu0 0.0
        %4136 = vmatpush2.msra.mxu0 0.0
        %4137 = vmatprep.subr.mxu0 0.0
        %4138 = vmatpush2.msra.mxu0 0.0
        %4139 = vmatprep.subr.mxu0 0.0
        %4140 = vmatpush2.msra.mxu0 0.0
        %4141 = vmatprep.mubr.f32.mxu0 0.0
        %4142 = vmatmul.mubr.f32.gmra.mxu0 %v4075
        %v4143 = vpop.f32.mrf.mxu0
        %v4144 = vadd.f32 %v2491, %v4143
        %v4145 = vpop.f32.mrf.mxu0
        %4146 = vdwg.mxu0
        %v4147 = vld [vmem:[%s14] sm:$0x1]
        %v4148 = vld [vmem:[%s15] sm:$0x1]
        %v4149 = vsel %vm810, %v4144, 0.0
        %4150 = vadd.xlane.f32.xlu0 %v4149
        %v4151 = vpop.xlane.xlu0 %4150
        %v4152 = vmul.f32 %v4151, %v2467
        %v4153 = vsub.f32 %v4144, %v4152
        %v4154 = vmul.f32 %v4153, %v4153
        %v4155 = vsel %vm810, %v4154, 0.0
        %4156 = vadd.xlane.f32.xlu0 %v4155
        %v4157 = vpop.xlane.xlu0 %4156
        %v4158 = vmul.f32 %v4157, %v2467
        %v4159 = vadd.f32 %v4158, 1e-06
        %v4160 = vrsqrt.pop %v4159
        %v4161 = vmul.f32 %v4153, %v4160
        %v4163 = vlaneseq
        %v4164 = vshrl.u32 %v4163, 7
        %v4165 = vsub.s32 0, %v4164
        %v4166 = vrot.slane %v4147, %v4165
        %v4168 = vmul.f32 %v4161, %v4166
        %v4170 = vlaneseq
        %v4171 = vshrl.u32 %v4170, 7
        %v4172 = vsub.s32 0, %v4171
        %v4173 = vrot.slane %v4148, %v4172
        %v4175 = vadd.f32 %v4168, %v4173
        %v4176 = vld [vmem:[%s16] sm:$0xff]
        %v4177 = vld [vmem:[%s16 + $0x8] sm:$0xff]
        %v4178 = vld [vmem:[%s16 + $0x10] sm:$0xff]
        %v4179 = vld [vmem:[%s16 + $0x18] sm:$0xff]
        %v4180 = vld [vmem:[%s17] sm:$0x1]
        %v4182 = vlaneseq
        %v4183 = vshrl.u32 %v4182, 7
        %v4184 = vsub.s32 0, %v4183
        %v4185 = vrot.slane %v4180, %v4184
        %v4188 = vsel %vm810, %v4175, 0
        %4190 = vmatprep.subr.mxu0 0.0
        %4191 = vmatpush1.msra.mxu0 0.0
        %4192 = vmatprep.subr.mxu0 0.0
        %4193 = vmatpush1.msra.mxu0 0.0
        %4194 = vmatprep.subr.mxu0 0.0
        %4195 = vmatpush1.msra.mxu0 0.0
        %4196 = vmatprep.subr.mxu0 0.0
        %4197 = vmatpush1.msra.mxu0 0.0
        %4198 = vmatprep.subr.mxu0 0.0
        %4199 = vmatpush1.msra.mxu0 0.0
        %4200 = vmatprep.subr.mxu0 0.0
        %4201 = vmatpush1.msra.mxu0 0.0
        %4202 = vmatprep.subr.mxu0 0.0
        %4203 = vmatpush1.msra.mxu0 0.0
        %4204 = vmatprep.subr.mxu0 0.0
        %4205 = vmatpush1.msra.mxu0 0.0
        %4206 = vmatprep.subr.mxu0 0.0
        %4207 = vmatpush1.msra.mxu0 0.0
        %4208 = vmatprep.subr.mxu0 0.0
        %4209 = vmatpush1.msra.mxu0 0.0
        %4210 = vmatprep.subr.mxu0 0.0
        %4211 = vmatpush1.msra.mxu0 0.0
        %4212 = vmatprep.subr.mxu0 0.0
        %4213 = vmatpush1.msra.mxu0 0.0
        %4214 = vmatprep.subr.mxu0 0.0
        %4215 = vmatpush1.msra.mxu0 %v4179
        %4216 = vmatprep.subr.mxu0 0.0
        %4217 = vmatpush1.msra.mxu0 %v4178
        %4218 = vmatprep.subr.mxu0 0.0
        %4219 = vmatpush1.msra.mxu0 %v4177
        %4220 = vmatprep.subr.mxu0 0.0
        %4221 = vmatpush1.msra.mxu0 %v4176
        %4222 = vmatprep.subr.mxu0 0.0
        %4223 = vmatpush2.msra.mxu0 0.0
        %4224 = vmatprep.subr.mxu0 0.0
        %4225 = vmatpush2.msra.mxu0 0.0
        %4226 = vmatprep.subr.mxu0 0.0
        %4227 = vmatpush2.msra.mxu0 0.0
        %4228 = vmatprep.subr.mxu0 0.0
        %4229 = vmatpush2.msra.mxu0 0.0
        %4230 = vmatprep.subr.mxu0 0.0
        %4231 = vmatpush2.msra.mxu0 0.0
        %4232 = vmatprep.subr.mxu0 0.0
        %4233 = vmatpush2.msra.mxu0 0.0
        %4234 = vmatprep.subr.mxu0 0.0
        %4235 = vmatpush2.msra.mxu0 0.0
        %4236 = vmatprep.subr.mxu0 0.0
        %4237 = vmatpush2.msra.mxu0 0.0
        %4238 = vmatprep.subr.mxu0 0.0
        %4239 = vmatpush2.msra.mxu0 0.0
        %4240 = vmatprep.subr.mxu0 0.0
        %4241 = vmatpush2.msra.mxu0 0.0
        %4242 = vmatprep.subr.mxu0 0.0
        %4243 = vmatpush2.msra.mxu0 0.0
        %4244 = vmatprep.subr.mxu0 0.0
        %4245 = vmatpush2.msra.mxu0 0.0
        %4246 = vmatprep.subr.mxu0 0.0
        %4247 = vmatpush2.msra.mxu0 0.0
        %4248 = vmatprep.subr.mxu0 0.0
        %4249 = vmatpush2.msra.mxu0 0.0
        %4250 = vmatprep.subr.mxu0 0.0
        %4251 = vmatpush2.msra.mxu0 0.0
        %4252 = vmatprep.subr.mxu0 0.0
        %4253 = vmatpush2.msra.mxu0 0.0
        %4254 = vmatprep.mubr.f32.mxu0 0.0
        %4255 = vmatmul.mubr.f32.gmra.mxu0 %v4188
        %v4256 = vpop.f32.mrf.mxu0
        %v4257 = vadd.f32 %v4185, %v4256
        %v4258 = vpop.f32.mrf.mxu0
        %4259 = vdwg.mxu0
        %v4260 = vmax.f32 %v4257, 0.0
        %v4261 = vld [vmem:[%s18] sm:$0xff]
        %v4262 = vld [vmem:[%s18 + $0x8] sm:$0xff]
        %v4263 = vld [vmem:[%s18 + $0x10] sm:$0xff]
        %v4264 = vld [vmem:[%s18 + $0x18] sm:$0xff]
        %v4265 = vld [vmem:[%s18 + $0x20] sm:$0xff]
        %v4266 = vld [vmem:[%s18 + $0x28] sm:$0xff]
        %v4267 = vld [vmem:[%s18 + $0x30] sm:$0xff]
        %v4268 = vld [vmem:[%s18 + $0x38] sm:$0xff]
        %v4269 = vld [vmem:[%s19] sm:$0x1]
        %v4271 = vlaneseq
        %v4272 = vshrl.u32 %v4271, 7
        %v4273 = vsub.s32 0, %v4272
        %v4274 = vrot.slane %v4269, %v4273
        %vm4276 = vcmask 523264
        %v4278 = vsel %vm4276, %v4260, 0
        %4280 = vmatprep.subr.mxu0 0.0
        %4281 = vmatpush1.msra.mxu0 0.0
        %4282 = vmatprep.subr.mxu0 0.0
        %4283 = vmatpush1.msra.mxu0 0.0
        %4284 = vmatprep.subr.mxu0 0.0
        %4285 = vmatpush1.msra.mxu0 0.0
        %4286 = vmatprep.subr.mxu0 0.0
        %4287 = vmatpush1.msra.mxu0 0.0
        %4288 = vmatprep.subr.mxu0 0.0
        %4289 = vmatpush1.msra.mxu0 0.0
        %4290 = vmatprep.subr.mxu0 0.0
        %4291 = vmatpush1.msra.mxu0 0.0
        %4292 = vmatprep.subr.mxu0 0.0
        %4293 = vmatpush1.msra.mxu0 0.0
        %4294 = vmatprep.subr.mxu0 0.0
        %4295 = vmatpush1.msra.mxu0 0.0
        %4296 = vmatprep.subr.mxu0 0.0
        %4297 = vmatpush1.msra.mxu0 %v4268
        %4298 = vmatprep.subr.mxu0 0.0
        %4299 = vmatpush1.msra.mxu0 %v4267
        %4300 = vmatprep.subr.mxu0 0.0
        %4301 = vmatpush1.msra.mxu0 %v4266
        %4302 = vmatprep.subr.mxu0 0.0
        %4303 = vmatpush1.msra.mxu0 %v4265
        %4304 = vmatprep.subr.mxu0 0.0
        %4305 = vmatpush1.msra.mxu0 %v4264
        %4306 = vmatprep.subr.mxu0 0.0
        %4307 = vmatpush1.msra.mxu0 %v4263
        %4308 = vmatprep.subr.mxu0 0.0
        %4309 = vmatpush1.msra.mxu0 %v4262
        %4310 = vmatprep.subr.mxu0 0.0
        %4311 = vmatpush1.msra.mxu0 %v4261
        %4312 = vmatprep.subr.mxu0 0.0
        %4313 = vmatpush2.msra.mxu0 0.0
        %4314 = vmatprep.subr.mxu0 0.0
        %4315 = vmatpush2.msra.mxu0 0.0
        %4316 = vmatprep.subr.mxu0 0.0
        %4317 = vmatpush2.msra.mxu0 0.0
        %4318 = vmatprep.subr.mxu0 0.0
        %4319 = vmatpush2.msra.mxu0 0.0
        %4320 = vmatprep.subr.mxu0 0.0
        %4321 = vmatpush2.msra.mxu0 0.0
        %4322 = vmatprep.subr.mxu0 0.0
        %4323 = vmatpush2.msra.mxu0 0.0
        %4324 = vmatprep.subr.mxu0 0.0
        %4325 = vmatpush2.msra.mxu0 0.0
        %4326 = vmatprep.subr.mxu0 0.0
        %4327 = vmatpush2.msra.mxu0 0.0
        %4328 = vmatprep.subr.mxu0 0.0
        %4329 = vmatpush2.msra.mxu0 0.0
        %4330 = vmatprep.subr.mxu0 0.0
        %4331 = vmatpush2.msra.mxu0 0.0
        %4332 = vmatprep.subr.mxu0 0.0
        %4333 = vmatpush2.msra.mxu0 0.0
        %4334 = vmatprep.subr.mxu0 0.0
        %4335 = vmatpush2.msra.mxu0 0.0
        %4336 = vmatprep.subr.mxu0 0.0
        %4337 = vmatpush2.msra.mxu0 0.0
        %4338 = vmatprep.subr.mxu0 0.0
        %4339 = vmatpush2.msra.mxu0 0.0
        %4340 = vmatprep.subr.mxu0 0.0
        %4341 = vmatpush2.msra.mxu0 0.0
        %4342 = vmatprep.subr.mxu0 0.0
        %4343 = vmatpush2.msra.mxu0 0.0
        %4344 = vmatprep.mubr.f32.mxu0 0.0
        %4345 = vmatmul.mubr.f32.gmra.mxu0 %v4278
        %v4346 = vpop.f32.mrf.mxu0
        %v4347 = vadd.f32 %v4274, %v4346
        %v4348 = vpop.f32.mrf.mxu0
        %4349 = vdwg.mxu0
        %v4350 = vadd.f32 %v4347, %v4175
        %v4351 = vld [vmem:[%s20] sm:$0x1]
        %v4352 = vld [vmem:[%s21] sm:$0x1]
        %v4353 = vsel %vm810, %v4350, 0.0
        %4354 = vadd.xlane.f32.xlu0 %v4353
        %v4355 = vpop.xlane.xlu0 %4354
        %v4356 = vmul.f32 %v4355, %v2467
        %v4357 = vsub.f32 %v4350, %v4356
        %v4358 = vmul.f32 %v4357, %v4357
        %v4359 = vsel %vm810, %v4358, 0.0
        %4360 = vadd.xlane.f32.xlu0 %v4359
        %v4361 = vpop.xlane.xlu0 %4360
        %v4362 = vmul.f32 %v4361, %v2467
        %v4363 = vadd.f32 %v4362, 1e-06
        %v4364 = vrsqrt.pop %v4363
        %v4365 = vmul.f32 %v4357, %v4364
        %v4367 = vlaneseq
        %v4368 = vshrl.u32 %v4367, 7
        %v4369 = vsub.s32 0, %v4368
        %v4370 = vrot.slane %v4351, %v4369
        %v4372 = vmul.f32 %v4365, %v4370
        %v4374 = vlaneseq
        %v4375 = vshrl.u32 %v4374, 7
        %v4376 = vsub.s32 0, %v4375
        %v4377 = vrot.slane %v4352, %v4376
        %v4379 = vadd.f32 %v4372, %v4377
        %4380 = vst.msk [vmem:[%s771] sm:$0xff] %vm810, %v4379
        %4381 = vst.msk [vmem:[%s778] sm:$0xff] %vm810, %v2369
        %4382 = vst.msk [vmem:[%s785] sm:$0xff] %vm810, %v4054
        %s4383 = sand.u32 %s532, 1
        %s4384 = scalar_lea.sflag [#allocation3], %s4383
        %s4385 = sand.u32 %s532, 1
        %s4386 = smul.addr %s4385, 8
        %s4387 = scalar_lea.vmem [#allocation2], %s4386
        %s4388 = sand.u32 %s42, 1
        %s4389 = scalar_lea.sflag [#allocation5], %s4388
        %s4390 = sand.u32 %s558, 1
        %s4391 = smul.addr %s4390, 8
        %s4392 = scalar_lea.vmem [#allocation4], %s4391
        %s4393 = sand.u32 %s42, 1
        %s4394 = scalar_lea.sflag [#allocation5], %s4393
        %s4395 = sand.u32 %s584, 1
        %s4396 = smul.addr %s4395, 8
        %s4397 = scalar_lea.vmem [#allocation6], %s4396
        // Predicated region
        $region109: #{tpu_custom_call.1} parent=107 // pred_check
          %p4398 = pneg %p542
        $region110: #{tpu_custom_call.1} parent=107 // pred_check_branch
          %4400 = sbr.rel (%p4398) target = $region112
        $region111: #{tpu_custom_call.1} parent=107 // pred_region
          %s4402 = ssub.s32 128, 128
          %4403 = vsyncadd %s4384, %s4402
          %s4404 = smul.addr %s42, 128
          %s4405 = scalar_lea.hbm %s22, %s4404
          %s4407 = sshll.u32 %s4387, 4
          %s4408 = int_to_ptr.vmem [resolvable:$true] %s4407
          %4410 = dma.vmem_to_hbm [thread:$0]  %s4408, 128, %s4405, %s4384
        $region112: #{tpu_custom_call.1} parent=107 // pred_fallthru
          _
        // Predicated region
        $region113: #{tpu_custom_call.1} parent=107 // pred_check
          %p4411 = pneg %p568
        $region114: #{tpu_custom_call.1} parent=107 // pred_check_branch
          %4413 = sbr.rel (%p4411) target = $region116
        $region115: #{tpu_custom_call.1} parent=107 // pred_region
          %s4415 = ssub.s32 128, 128
          %4416 = vsyncadd %s4389, %s4415
          %s4417 = smul.addr %s42, 128
          %s4418 = scalar_lea.hbm %s23, %s4417
          %s4420 = sshll.u32 %s4392, 4
          %s4421 = int_to_ptr.vmem [resolvable:$true] %s4420
          %4423 = dma.vmem_to_hbm [thread:$0]  %s4421, 128, %s4418, %s4389
        $region116: #{tpu_custom_call.1} parent=107 // pred_fallthru
          _
        // Predicated region
        $region117: #{tpu_custom_call.1} parent=107 // pred_check
          %p4424 = pneg %p594
        $region118: #{tpu_custom_call.1} parent=107 // pred_check_branch
          %4426 = sbr.rel (%p4424) target = $region120
        $region119: #{tpu_custom_call.1} parent=107 // pred_region
          %s4428 = ssub.s32 128, 128
          %4429 = vsyncadd %s4394, %s4428
          %s4430 = smul.addr %s42, 128
          %s4431 = scalar_lea.hbm %s24, %s4430
          %s4433 = sshll.u32 %s4397, 4
          %s4434 = int_to_ptr.vmem [resolvable:$true] %s4433
          %4436 = dma.vmem_to_hbm [thread:$0]  %s4434, 128, %s4431, %s4394
        $region120: #{tpu_custom_call.1} parent=107 // pred_fallthru
          _
      $region108: #{tpu_custom_call.1} parent=5 // pred_fallthru
        _
      %p4437 = scmp.le.s32.totalorder 2, %s37
      // Predicated region
      $region121: #{tpu_custom_call.1} parent=5 // pred_check
        %p4438 = pneg %p4437
      $region122: #{tpu_custom_call.1} parent=5 // pred_check_branch
        %4440 = sbr.rel (%p4438) target = $region124
      $region123: #{tpu_custom_call.1} parent=5 // pred_region
        %s4441 = ssub.s32 %s37, 2
        // Predicated region
        $region125: #{tpu_custom_call.1} parent=123 // pred_check
          %p4442 = pneg %p548
        $region126: #{tpu_custom_call.1} parent=123 // pred_check_branch
          %4444 = sbr.rel (%p4442) target = $region128
        $region127: #{tpu_custom_call.1} parent=123 // pred_region
          %s4445 = sand.u32 %s533, 1
          %s4446 = scalar_lea.sflag [#allocation3], %s4445
          %s4447 = sand.u32 %s533, 1
          %s4448 = smul.addr %s4447, 8
          %s4449 = scalar_lea.vmem [#allocation2], %s4448
          %4450 = dma.done %s4446, 128
        $region128: #{tpu_custom_call.1} parent=123 // pred_fallthru
          _
        // Predicated region
        $region129: #{tpu_custom_call.1} parent=123 // pred_check
          %p4451 = pneg %p574
        $region130: #{tpu_custom_call.1} parent=123 // pred_check_branch
          %4453 = sbr.rel (%p4451) target = $region132
        $region131: #{tpu_custom_call.1} parent=123 // pred_region
          %s4454 = sand.u32 %s43, 1
          %s4455 = scalar_lea.sflag [#allocation5], %s4454
          %s4456 = sand.u32 %s559, 1
          %s4457 = smul.addr %s4456, 8
          %s4458 = scalar_lea.vmem [#allocation4], %s4457
          %4459 = dma.done %s4455, 128
        $region132: #{tpu_custom_call.1} parent=123 // pred_fallthru
          _
        // Predicated region
        $region133: #{tpu_custom_call.1} parent=123 // pred_check
          %p4460 = pneg %p600
        $region134: #{tpu_custom_call.1} parent=123 // pred_check_branch
          %4462 = sbr.rel (%p4460) target = $region136
        $region135: #{tpu_custom_call.1} parent=123 // pred_region
          %s4463 = sand.u32 %s43, 1
          %s4464 = scalar_lea.sflag [#allocation5], %s4463
          %s4465 = sand.u32 %s585, 1
          %s4466 = smul.addr %s4465, 8
          %s4467 = scalar_lea.vmem [#allocation6], %s4466
          %4468 = dma.done %s4464, 128
        $region136: #{tpu_custom_call.1} parent=123 // pred_fallthru
          _
      $region124: #{tpu_custom_call.1} parent=5 // pred_fallthru
        _
    $region6: #{tpu_custom_call.1} parent=1 // loop_footer
      %s41 = sadd.s32 1, %s37
    $region7: #{tpu_custom_call.1} parent=1 // loop_footer_branch
      %36 = sbr.rel target = $region3
    $region8: #{tpu_custom_call.1} parent=1 // loop_exit
      _
    %4469 = vsyncpa [#allocation3], 1
    %s4470 = scalar_lea.sflag [#allocation3], 1
    %4471 = vsyncpa %s4470, 1
    %4472 = vsyncpa [#allocation5], 1
    %s4473 = scalar_lea.sflag [#allocation5], 1
    %4474 = vsyncpa %s4473, 1

</llo_original>
